<compile_context>
chip_gen: v7x
topology: tpu7x:2x2x1
jax: 0.10.0
libtpu: 0.0.40
codegen_flags: <defaults>
</compile_context>

<pallas_src>
import functools
import math

import jax
import jax.numpy as jnp
from jax.experimental import pallas as pl
from jax.experimental.pallas import tpu as pltpu


# ----------------------------------------------------------------------------
# Fused kernel: embed prologue + all transformer layers + classifier epilogue
# ----------------------------------------------------------------------------
def _clip_fwd_kernel(
    patches_ref, convw_ref, tokadd_ref, bias_ref, sel_ref,
    lnpre_g_ref, lnpre_b_ref,
    ln1g_ref, ln1b_ref, qkvw_ref, qkvb_ref, outw_ref, outb_ref,
    ln2g_ref, ln2b_ref, fcw_ref, fcb_ref, pjw_ref, pjb_ref,
    lnpost_g_ref, lnpost_b_ref, proj_ref, clsw_ref, clsb_ref,
    o_ref, x_acc,
    *, heads, head_dim, eps):
  l = pl.program_id(1)
  W = heads * head_dim

  def ln(v, g, b):
    # single-pass variance: E[x^2] - mu^2 (halves dependent XLU reductions)
    mu = jnp.mean(v, axis=-1, keepdims=True)
    msq = jnp.mean(v * v, axis=-1, keepdims=True)
    var = msq - mu * mu
    return (v - mu) * jax.lax.rsqrt(var + eps) * g + b

  # ---- prologue (layer 0): patch embed + class/pos embed + pre-LN ----------
  @pl.when(l == 0)
  def _():
    xe = jnp.dot(patches_ref[...].astype(jnp.bfloat16), convw_ref[...],
                 preferred_element_type=jnp.float32)            # (M, W)
    xe = xe + tokadd_ref[...]                                   # class+pos emb
    x_acc[...] = ln(xe, lnpre_g_ref[...], lnpre_b_ref[...])

  x = x_acc[...]                                                # (M, W) f32

  # ---- multi-head self-attention -------------------------------------------
  h = ln(x, ln1g_ref[...], ln1b_ref[...])
  qkv = jnp.dot(h.astype(jnp.bfloat16), qkvw_ref[...],
                preferred_element_type=jnp.float32) + qkvb_ref[...]  # (M, 3W)

  scale = 1.0 / math.sqrt(head_dim)
  q = (qkv[:, 0 * W:1 * W] * scale).astype(jnp.bfloat16)        # 128-aligned slices
  k = qkv[:, 1 * W:2 * W].astype(jnp.bfloat16)
  v = qkv[:, 2 * W:3 * W].astype(jnp.bfloat16)
  bias = bias_ref[...]                                          # (M, M) block-diag
  outw = outw_ref[...]                                          # (W, W) bf16

  a = None
  for hd in range(heads):                                       # static unroll
    lo = hd * head_dim
    qh = q[:, lo:lo + head_dim]
    kh = k[:, lo:lo + head_dim]
    vh = v[:, lo:lo + head_dim]
    # q @ k^T over all B*S rows (contract head dim directly, no transpose);
    # cross-image entries are killed by the -1e30 bias before softmax.
    s = jax.lax.dot_general(qh, kh, (((1,), (1,)), ((), ())),
                            preferred_element_type=jnp.float32) + bias
    p = jnp.exp(s - jnp.max(s, axis=-1, keepdims=True))
    p = p / jnp.sum(p, axis=-1, keepdims=True)
    oh = jnp.dot(p.astype(jnp.bfloat16), vh,
                 preferred_element_type=jnp.float32)            # (M, Dh)
    # fused head-merge + out-projection: concat(oh) @ Wout == sum_h oh @ Wout[h]
    ph = jnp.dot(oh.astype(jnp.bfloat16), outw[lo:lo + head_dim, :],
                 preferred_element_type=jnp.float32)            # (M, W)
    a = ph if a is None else a + ph
  x = x + a + outb_ref[...]

  # ---- MLP with QuickGELU ---------------------------------------------------
  h2 = ln(x, ln2g_ref[...], ln2b_ref[...])
  f = jnp.dot(h2.astype(jnp.bfloat16), fcw_ref[...],
              preferred_element_type=jnp.float32) + fcb_ref[...]
  f = f * jax.nn.sigmoid(1.702 * f)                             # QuickGELU (f32)
  f = jnp.dot(f.astype(jnp.bfloat16), pjw_ref[...],
              preferred_element_type=jnp.float32) + pjb_ref[...]
  x = x + f
  x_acc[...] = x

  # ---- epilogue (last layer): post-LN on CLS + projection + classifier ------
  @pl.when(l == pl.num_programs(1) - 1)
  def _():
    # gather CLS rows with a tiny constant selector matmul (no row slicing)
    cls = jnp.dot(sel_ref[...], x, preferred_element_type=jnp.float32)  # (B, W)
    cls = ln(cls, lnpost_g_ref[...], lnpost_b_ref[...])
    feat = jnp.dot(cls.astype(jnp.bfloat16), proj_ref[...],
                   preferred_element_type=jnp.float32)                  # (B, 512)
    o_ref[...] = jnp.dot(feat.astype(jnp.bfloat16), clsw_ref[...],
                         preferred_element_type=jnp.float32) + clsb_ref[...]


def clip_fused_pallas(patches, tok_add, attn_bias, cls_sel, params,
                      *, batch, seq, batch_chunks=1, eps=1e-5):
  blocks = params["blocks"]
  L = blocks["qkv_w"].shape[0]
  W = params["width"]
  heads = params["heads"]
  head_dim = W // heads
  embed_dim = params["proj"].shape[1]
  n_out = params["cls_w"].shape[1]
  CPP = patches.shape[1]

  assert batch % batch_chunks == 0
  cb = batch // batch_chunks         # images per chunk (use batch_chunks=2 on v7x)
  M = cb * seq                       # token rows per chunk

  # per-layer stacked weights, selected by the layer grid index
  def wspec(shape):
    nd = len(shape)
    return pl.BlockSpec((None,) + shape, lambda c, l, _nd=nd: (l,) + (0,) * _nd)

  kernel = functools.partial(_clip_fwd_kernel, heads=heads, head_dim=head_dim,
                             eps=eps)

  return pl.pallas_call(
      kernel,
      out_shape=jax.ShapeDtypeStruct((batch, n_out), jnp.float32),
      grid=(batch_chunks, L),
      in_specs=[
          pl.BlockSpec((M, CPP), lambda c, l: (c, 0)),            # patches (+CLS zero row)
          pl.BlockSpec((CPP, W), lambda c, l: (0, 0)),            # conv weight (bf16)
          pl.BlockSpec((M, W), lambda c, l: (c, 0)),              # class+pos embed (tiled)
          pl.BlockSpec((M, M), lambda c, l: (c, c)),              # block-diag attn bias
          pl.BlockSpec((cb, M), lambda c, l: (c, c)),             # CLS selector
          pl.BlockSpec((1, W), lambda c, l: (0, 0)),              # ln_pre gamma
          pl.BlockSpec((1, W), lambda c, l: (0, 0)),              # ln_pre beta
          wspec((1, W)), wspec((1, W)),                           # ln1 gamma/beta
          wspec((W, 3 * W)), wspec((1, 3 * W)),                   # qkv w/b
          wspec((W, W)), wspec((1, W)),                           # attn out-proj w/b
          wspec((1, W)), wspec((1, W)),                           # ln2 gamma/beta
          wspec((W, 4 * W)), wspec((1, 4 * W)),                   # mlp fc w/b
          wspec((4 * W, W)), wspec((1, W)),                       # mlp proj w/b
          pl.BlockSpec((1, W), lambda c, l: (0, 0)),              # ln_post gamma
          pl.BlockSpec((1, W), lambda c, l: (0, 0)),              # ln_post beta
          pl.BlockSpec((W, embed_dim), lambda c, l: (0, 0)),      # visual projection
          pl.BlockSpec((embed_dim, n_out), lambda c, l: (0, 0)),  # classifier weight
          pl.BlockSpec((1, n_out), lambda c, l: (0, 0)),          # classifier bias
      ],
      out_specs=pl.BlockSpec((cb, n_out), lambda c, l: (c, 0)),
      scratch_shapes=[pltpu.VMEM((M, W), jnp.float32)],           # residual stream
      compiler_params=pltpu.CompilerParams(
          dimension_semantics=("parallel", "arbitrary")),
  )(patches, params["conv_w"], tok_add, attn_bias, cls_sel,
    params["ln_pre_g"], params["ln_pre_b"],
    blocks["ln1_g"], blocks["ln1_b"],
    blocks["qkv_w"], blocks["qkv_b"],
    blocks["out_w"], blocks["out_b"],
    blocks["ln2_g"], blocks["ln2_b"],
    blocks["fc_w"], blocks["fc_b"],
    blocks["proj_w"], blocks["proj_b"],
    params["ln_post_g"], params["ln_post_b"],
    params["proj"], params["cls_w"], params["cls_b"])


# ----------------------------------------------------------------------------
# Parameter construction (deterministic, synthetic CLIP-visual + classifier)
# ----------------------------------------------------------------------------
def init_params(key, *, in_ch=3, patch=16, image_size=32, width=128, layers=2,
                heads=2, embed_dim=512, n_output=2):
  def normal(k, shape, std=0.02):
    return std * jax.random.normal(k, shape, dtype=jnp.float32)

  def bf16(x):
    return x.astype(jnp.bfloat16)

  gh = image_size // patch
  S = gh * gh + 1
  keys = iter(jax.random.split(key, 16))

  class_emb = normal(next(keys), (width,))
  pos_emb = normal(next(keys), (S, width))
  # CLS slot of the patch matrix is a zero row, so folding class_emb into row 0
  # of the additive term reproduces [class_emb; patch_emb] + pos_emb exactly
  # (CLIP's patch conv has bias=False, so the zero row is mapped to zero).
  tok_add = pos_emb.at[0, :].add(class_emb)

  return {
      "patch": patch, "width": width, "heads": heads,
      "embed_dim": embed_dim, "n_output": n_output, "seq": S,
      "conv_w": bf16(normal(next(keys), (in_ch * patch * patch, width))),
      "tok_add": tok_add,
      "ln_pre_g": jnp.ones((1, width), jnp.float32),
      "ln_pre_b": jnp.zeros((1, width), jnp.float32),
      "ln_post_g": jnp.ones((1, width), jnp.float32),
      "ln_post_b": jnp.zeros((1, width), jnp.float32),
      "proj": bf16(normal(next(keys), (width, embed_dim))),
      "cls_w": bf16(normal(next(keys), (embed_dim, n_output))),
      "cls_b": jnp.zeros((1, n_output), jnp.float32),
      "blocks": {
          "ln1_g": jnp.ones((layers, 1, width), jnp.float32),
          "ln1_b": jnp.zeros((layers, 1, width), jnp.float32),
          "qkv_w": bf16(normal(next(keys), (layers, width, 3 * width))),
          "qkv_b": jnp.zeros((layers, 1, 3 * width), jnp.float32),
          "out_w": bf16(normal(next(keys), (layers, width, width))),
          "out_b": jnp.zeros((layers, 1, width), jnp.float32),
          "ln2_g": jnp.ones((layers, 1, width), jnp.float32),
          "ln2_b": jnp.zeros((layers, 1, width), jnp.float32),
          "fc_w": bf16(normal(next(keys), (layers, width, 4 * width))),
          "fc_b": jnp.zeros((layers, 1, 4 * width), jnp.float32),
          "proj_w": bf16(normal(next(keys), (layers, 4 * width, width))),
          "proj_b": jnp.zeros((layers, 1, width), jnp.float32),
      },
  }


# ----------------------------------------------------------------------------
# Forward pass (only im2col patch extraction + constant mask/selector are XLA glue)
# ----------------------------------------------------------------------------
def clip_image_classifier_forward(x_nchw, params, *, batch_chunks=1):
  B, C, H, Wimg = x_nchw.shape
  P = params["patch"]
  gh, gw = H // P, Wimg // P
  npatch = gh * gw
  S = npatch + 1
  assert S == params["seq"], "pos_emb was built for a different image size"

  # im2col patch extraction (pure data-layout glue); prepend a zero row per
  # image as the class-token slot, then fold batch into the row dimension.
  patches = (x_nchw.reshape(B, C, gh, P, gw, P)
             .transpose(0, 2, 4, 1, 3, 5)
             .reshape(B, npatch, C * P * P))
  patches_aug = jnp.concatenate(
      [jnp.zeros((B, 1, C * P * P), patches.dtype), patches], axis=1)
  patches_flat = patches_aug.reshape(B * S, C * P * P)           # (B*S, CPP)

  tok_add_tiled = jnp.tile(params["tok_add"], (B, 1))            # (B*S, W)

  # Block-diagonal additive attention bias (0 within an image, -1e30 across)
  # and a CLS-row selector matrix — tiny compile-time constants.
  img_id = jnp.repeat(jnp.arange(B), S)
  attn_bias = jnp.where(img_id[:, None] == img_id[None, :],
                        0.0, -1e30).astype(jnp.float32)          # (B*S, B*S)
  cls_sel = jnp.zeros((B, B * S), jnp.float32).at[
      jnp.arange(B), jnp.arange(B) * S].set(1.0)                 # (B, B*S)

  return clip_fused_pallas(patches_flat, tok_add_tiled, attn_bias, cls_sel,
                           params, batch=B, seq=S, batch_chunks=batch_chunks)


# ----------------------------------------------------------------------------
if __name__ == "__main__":
  key = jax.random.PRNGKey(0)
  k_img, k_par = jax.random.split(key)

  # batch=2, 3x32x32 image, patch 16 -> 5 tokens, width 128, 2 layers, 2 heads
  x = jax.random.normal(k_img, (2, 3, 32, 32), dtype=jnp.float32)
  params = init_params(k_par, in_ch=3, patch=16, image_size=32, width=128,
                       layers=2, heads=2, embed_dim=512, n_output=2)

  fwd = jax.jit(lambda inp: clip_image_classifier_forward(inp, params))
  out = fwd(x)
  jax.block_until_ready(out)
  assert out.shape == (2, 2), out.shape
  print("KERNEL_OK")
</pallas_src>

<mosaic_0001>
module attributes {stable_mosaic.version = 11 : i64} {
  func.func @_clip_fwd_kernel(%arg0: i32, %arg1: i32, %arg2: memref<10x768xf32, #tpu.memory_space<vmem>>, %arg3: memref<768x128xbf16, #tpu.memory_space<vmem>>, %arg4: memref<10x128xf32, #tpu.memory_space<vmem>>, %arg5: memref<10x10xf32, #tpu.memory_space<vmem>>, %arg6: memref<2x10xf32, #tpu.memory_space<vmem>>, %arg7: memref<1x128xf32, #tpu.memory_space<vmem>>, %arg8: memref<1x128xf32, #tpu.memory_space<vmem>>, %arg9: memref<1x1x128xf32, #tpu.memory_space<vmem>>, %arg10: memref<1x1x128xf32, #tpu.memory_space<vmem>>, %arg11: memref<1x128x384xbf16, #tpu.memory_space<vmem>>, %arg12: memref<1x1x384xf32, #tpu.memory_space<vmem>>, %arg13: memref<1x128x128xbf16, #tpu.memory_space<vmem>>, %arg14: memref<1x1x128xf32, #tpu.memory_space<vmem>>, %arg15: memref<1x1x128xf32, #tpu.memory_space<vmem>>, %arg16: memref<1x1x128xf32, #tpu.memory_space<vmem>>, %arg17: memref<1x128x512xbf16, #tpu.memory_space<vmem>>, %arg18: memref<1x1x512xf32, #tpu.memory_space<vmem>>, %arg19: memref<1x512x128xbf16, #tpu.memory_space<vmem>>, %arg20: memref<1x1x128xf32, #tpu.memory_space<vmem>>, %arg21: memref<1x128xf32, #tpu.memory_space<vmem>>, %arg22: memref<1x128xf32, #tpu.memory_space<vmem>>, %arg23: memref<128x512xbf16, #tpu.memory_space<vmem>>, %arg24: memref<512x2xbf16, #tpu.memory_space<vmem>>, %arg25: memref<1x2xf32, #tpu.memory_space<vmem>>, %arg26: memref<2x2xf32, #tpu.memory_space<vmem>>, %arg27: memref<10x128xf32, #tpu.memory_space<vmem>>) attributes {dimension_semantics = [#tpu.dimension_semantics<parallel>, #tpu.dimension_semantics<arbitrary>], iteration_bounds = array<i64: 1, 2>, scalar_prefetch = 0 : i64, scratch_operands = 1 : i64, tpu.core_type = #tpu.core_type<tc>, window_params = [{transform_indices = @transform_0, window_bounds = array<i64: 10, 768>}, {pipeline_mode = #tpu.pipeline_mode<synchronous>, transform_indices = @transform_1, window_bounds = array<i64: 768, 128>}, {transform_indices = @transform_2, window_bounds = array<i64: 10, 128>}, {transform_indices = @transform_3, window_bounds = array<i64: 10, 10>}, {transform_indices = @transform_4, window_bounds = array<i64: 2, 10>}, {pipeline_mode = #tpu.pipeline_mode<synchronous>, transform_indices = @transform_5, window_bounds = array<i64: 1, 128>}, {pipeline_mode = #tpu.pipeline_mode<synchronous>, transform_indices = @transform_6, window_bounds = array<i64: 1, 128>}, {transform_indices = @transform_7, window_bounds = array<i64: 1, 1, 128>}, {transform_indices = @transform_8, window_bounds = array<i64: 1, 1, 128>}, {transform_indices = @transform_9, window_bounds = array<i64: 1, 128, 384>}, {transform_indices = @transform_10, window_bounds = array<i64: 1, 1, 384>}, {transform_indices = @transform_11, window_bounds = array<i64: 1, 128, 128>}, {transform_indices = @transform_12, window_bounds = array<i64: 1, 1, 128>}, {transform_indices = @transform_13, window_bounds = array<i64: 1, 1, 128>}, {transform_indices = @transform_14, window_bounds = array<i64: 1, 1, 128>}, {transform_indices = @transform_15, window_bounds = array<i64: 1, 128, 512>}, {transform_indices = @transform_16, window_bounds = array<i64: 1, 1, 512>}, {transform_indices = @transform_17, window_bounds = array<i64: 1, 512, 128>}, {transform_indices = @transform_18, window_bounds = array<i64: 1, 1, 128>}, {pipeline_mode = #tpu.pipeline_mode<synchronous>, transform_indices = @transform_19, window_bounds = array<i64: 1, 128>}, {pipeline_mode = #tpu.pipeline_mode<synchronous>, transform_indices = @transform_20, window_bounds = array<i64: 1, 128>}, {pipeline_mode = #tpu.pipeline_mode<synchronous>, transform_indices = @transform_21, window_bounds = array<i64: 128, 512>}, {pipeline_mode = #tpu.pipeline_mode<synchronous>, transform_indices = @transform_22, window_bounds = array<i64: 512, 2>}, {pipeline_mode = #tpu.pipeline_mode<synchronous>, transform_indices = @transform_23, window_bounds = array<i64: 1, 2>}, {transform_indices = @transform_24, window_bounds = array<i64: 2, 2>}]} {
    %c0_i32 = arith.constant 0 : i32
    %0 = arith.cmpi eq, %arg1, %c0_i32 : i32
    %1 = arith.extui %0 : i1 to i32
    %c0_i32_0 = arith.constant 0 : i32
    %2 = arith.cmpi ne, %1, %c0_i32_0 : i32
    scf.if %2 {
      %c0_68 = arith.constant 0 : index
      %c0_69 = arith.constant 0 : index
      %148 = vector.load %arg2[%c0_68, %c0_69] : memref<10x768xf32, #tpu.memory_space<vmem>>, vector<10x768xf32>
      %149 = arith.truncf %148 : vector<10x768xf32> to vector<10x768xbf16>
      %c0_70 = arith.constant 0 : index
      %c0_71 = arith.constant 0 : index
      %150 = vector.load %arg3[%c0_70, %c0_71] : memref<768x128xbf16, #tpu.memory_space<vmem>>, vector<768x128xbf16>
      %cst_72 = arith.constant dense<0.000000e+00> : vector<10x128xf32>
      %151 = tpu.matmul %149, %150, %cst_72 {dimension_numbers = #tpu.dot_dimension_numbers<[1], [0], [0], [1], [0, 0, 1, 1], [], []>} : vector<10x768xbf16>, vector<768x128xbf16>, vector<10x128xf32> -> vector<10x128xf32>
      %c0_73 = arith.constant 0 : index
      %c0_74 = arith.constant 0 : index
      %152 = vector.load %arg4[%c0_73, %c0_74] : memref<10x128xf32, #tpu.memory_space<vmem>>, vector<10x128xf32>
      %153 = arith.addf %151, %152 : vector<10x128xf32>
      %c0_75 = arith.constant 0 : index
      %c0_76 = arith.constant 0 : index
      %154 = vector.load %arg7[%c0_75, %c0_76] : memref<1x128xf32, #tpu.memory_space<vmem>>, vector<1x128xf32>
      %c0_77 = arith.constant 0 : index
      %c0_78 = arith.constant 0 : index
      %155 = vector.load %arg8[%c0_77, %c0_78] : memref<1x128xf32, #tpu.memory_space<vmem>>, vector<1x128xf32>
      %cst_79 = arith.constant dense<0.000000e+00> : vector<10xf32>
      %156 = vector.multi_reduction <add>, %153, %cst_79 [1] : vector<10x128xf32> to vector<10xf32>
      %157 = vector.shape_cast %156 : vector<10xf32> to vector<10x1xf32>
      %cst_80 = arith.constant 1.280000e+02 : f32
      %158 = vector.broadcast %cst_80 : f32 to vector<10x1xf32>
      %159 = arith.divf %157, %158 : vector<10x1xf32>
      %160 = arith.mulf %153, %153 : vector<10x128xf32>
      %cst_81 = arith.constant dense<0.000000e+00> : vector<10xf32>
      %161 = vector.multi_reduction <add>, %160, %cst_81 [1] : vector<10x128xf32> to vector<10xf32>
      %162 = vector.shape_cast %161 : vector<10xf32> to vector<10x1xf32>
      %cst_82 = arith.constant 1.280000e+02 : f32
      %163 = vector.broadcast %cst_82 : f32 to vector<10x1xf32>
      %164 = arith.divf %162, %163 : vector<10x1xf32>
      %165 = arith.mulf %159, %159 : vector<10x1xf32>
      %166 = arith.subf %164, %165 : vector<10x1xf32>
      %167 = vector.broadcast %159 : vector<10x1xf32> to vector<10x128xf32>
      %168 = arith.subf %153, %167 : vector<10x128xf32>
      %cst_83 = arith.constant 9.99999974E-6 : f32
      %169 = vector.broadcast %cst_83 : f32 to vector<10x1xf32>
      %170 = arith.addf %166, %169 : vector<10x1xf32>
      %171 = math.rsqrt %170 : vector<10x1xf32>
      %172 = vector.broadcast %171 : vector<10x1xf32> to vector<10x128xf32>
      %173 = arith.mulf %168, %172 : vector<10x128xf32>
      %174 = vector.broadcast %154 : vector<1x128xf32> to vector<10x128xf32>
      %175 = arith.mulf %173, %174 : vector<10x128xf32>
      %176 = vector.broadcast %155 : vector<1x128xf32> to vector<10x128xf32>
      %177 = arith.addf %175, %176 : vector<10x128xf32>
      %c0_84 = arith.constant 0 : index
      %c0_85 = arith.constant 0 : index
      %178 = vector.load %arg27[%c0_84, %c0_85] : memref<10x128xf32, #tpu.memory_space<vmem>>, vector<10x128xf32>
      tpu.vector_store %arg27[%c0_84, %c0_85], %177 {strides = array<i32>} : memref<10x128xf32, #tpu.memory_space<vmem>>, vector<10x128xf32>,
    } else {
    }
    %c0 = arith.constant 0 : index
    %c0_1 = arith.constant 0 : index
    %3 = vector.load %arg27[%c0, %c0_1] : memref<10x128xf32, #tpu.memory_space<vmem>>, vector<10x128xf32>
    %c0_2 = arith.constant 0 : index
    %c0_3 = arith.constant 0 : index
    %c0_4 = arith.constant 0 : index
    %4 = vector.load %arg9[%c0_2, %c0_3, %c0_4] : memref<1x1x128xf32, #tpu.memory_space<vmem>>, vector<1x1x128xf32>
    %5 = vector.shape_cast %4 : vector<1x1x128xf32> to vector<1x128xf32>
    %c0_5 = arith.constant 0 : index
    %c0_6 = arith.constant 0 : index
    %c0_7 = arith.constant 0 : index
    %6 = vector.load %arg10[%c0_5, %c0_6, %c0_7] : memref<1x1x128xf32, #tpu.memory_space<vmem>>, vector<1x1x128xf32>
    %7 = vector.shape_cast %6 : vector<1x1x128xf32> to vector<1x128xf32>
    %cst = arith.constant dense<0.000000e+00> : vector<10xf32>
    %8 = vector.multi_reduction <add>, %3, %cst [1] : vector<10x128xf32> to vector<10xf32>
    %9 = vector.shape_cast %8 : vector<10xf32> to vector<10x1xf32>
    %cst_8 = arith.constant 1.280000e+02 : f32
    %10 = vector.broadcast %cst_8 : f32 to vector<10x1xf32>
    %11 = arith.divf %9, %10 : vector<10x1xf32>
    %12 = arith.mulf %3, %3 : vector<10x128xf32>
    %cst_9 = arith.constant dense<0.000000e+00> : vector<10xf32>
    %13 = vector.multi_reduction <add>, %12, %cst_9 [1] : vector<10x128xf32> to vector<10xf32>
    %14 = vector.shape_cast %13 : vector<10xf32> to vector<10x1xf32>
    %cst_10 = arith.constant 1.280000e+02 : f32
    %15 = vector.broadcast %cst_10 : f32 to vector<10x1xf32>
    %16 = arith.divf %14, %15 : vector<10x1xf32>
    %17 = arith.mulf %11, %11 : vector<10x1xf32>
    %18 = arith.subf %16, %17 : vector<10x1xf32>
    %19 = vector.broadcast %11 : vector<10x1xf32> to vector<10x128xf32>
    %20 = arith.subf %3, %19 : vector<10x128xf32>
    %cst_11 = arith.constant 9.99999974E-6 : f32
    %21 = vector.broadcast %cst_11 : f32 to vector<10x1xf32>
    %22 = arith.addf %18, %21 : vector<10x1xf32>
    %23 = math.rsqrt %22 : vector<10x1xf32>
    %24 = vector.broadcast %23 : vector<10x1xf32> to vector<10x128xf32>
    %25 = arith.mulf %20, %24 : vector<10x128xf32>
    %26 = vector.broadcast %5 : vector<1x128xf32> to vector<10x128xf32>
    %27 = arith.mulf %25, %26 : vector<10x128xf32>
    %28 = vector.broadcast %7 : vector<1x128xf32> to vector<10x128xf32>
    %29 = arith.addf %27, %28 : vector<10x128xf32>
    %30 = arith.truncf %29 : vector<10x128xf32> to vector<10x128xbf16>
    %c0_12 = arith.constant 0 : index
    %c0_13 = arith.constant 0 : index
    %c0_14 = arith.constant 0 : index
    %31 = vector.load %arg11[%c0_12, %c0_13, %c0_14] : memref<1x128x384xbf16, #tpu.memory_space<vmem>>, vector<1x128x384xbf16>
    %32 = vector.shape_cast %31 : vector<1x128x384xbf16> to vector<128x384xbf16>
    %cst_15 = arith.constant dense<0.000000e+00> : vector<10x384xf32>
    %33 = tpu.matmul %30, %32, %cst_15 {dimension_numbers = #tpu.dot_dimension_numbers<[1], [0], [0], [1], [0, 0, 1, 1], [], []>} : vector<10x128xbf16>, vector<128x384xbf16>, vector<10x384xf32> -> vector<10x384xf32>
    %c0_16 = arith.constant 0 : index
    %c0_17 = arith.constant 0 : index
    %c0_18 = arith.constant 0 : index
    %34 = vector.load %arg12[%c0_16, %c0_17, %c0_18] : memref<1x1x384xf32, #tpu.memory_space<vmem>>, vector<1x1x384xf32>
    %35 = vector.shape_cast %34 : vector<1x1x384xf32> to vector<1x384xf32>
    %36 = vector.broadcast %35 : vector<1x384xf32> to vector<10x384xf32>
    %37 = arith.addf %33, %36 : vector<10x384xf32>
    %38 = vector.extract_strided_slice %37 {offsets = [0, 0], sizes = [10, 128], strides = [1, 1]} : vector<10x384xf32> to vector<10x128xf32>
    %cst_19 = arith.constant 1.250000e-01 : f32
    %39 = vector.broadcast %cst_19 : f32 to vector<10x128xf32>
    %40 = arith.mulf %38, %39 : vector<10x128xf32>
    %41 = arith.truncf %40 : vector<10x128xf32> to vector<10x128xbf16>
    %42 = vector.extract_strided_slice %37 {offsets = [0, 128], sizes = [10, 128], strides = [1, 1]} : vector<10x384xf32> to vector<10x128xf32>
    %43 = arith.truncf %42 : vector<10x128xf32> to vector<10x128xbf16>
    %44 = vector.extract_strided_slice %37 {offsets = [0, 256], sizes = [10, 128], strides = [1, 1]} : vector<10x384xf32> to vector<10x128xf32>
    %45 = arith.truncf %44 : vector<10x128xf32> to vector<10x128xbf16>
    %c0_20 = arith.constant 0 : index
    %c0_21 = arith.constant 0 : index
    %46 = vector.load %arg5[%c0_20, %c0_21] : memref<10x10xf32, #tpu.memory_space<vmem>>, vector<10x10xf32>
    %c0_22 = arith.constant 0 : index
    %c0_23 = arith.constant 0 : index
    %c0_24 = arith.constant 0 : index
    %47 = vector.load %arg13[%c0_22, %c0_23, %c0_24] : memref<1x128x128xbf16, #tpu.memory_space<vmem>>, vector<1x128x128xbf16>
    %48 = vector.shape_cast %47 : vector<1x128x128xbf16> to vector<128x128xbf16>
    %49 = vector.extract_strided_slice %41 {offsets = [0, 0], sizes = [10, 64], strides = [1, 1]} : vector<10x128xbf16> to vector<10x64xbf16>
    %50 = vector.extract_strided_slice %43 {offsets = [0, 0], sizes = [10, 64], strides = [1, 1]} : vector<10x128xbf16> to vector<10x64xbf16>
    %51 = vector.extract_strided_slice %45 {offsets = [0, 0], sizes = [10, 64], strides = [1, 1]} : vector<10x128xbf16> to vector<10x64xbf16>
    %cst_25 = arith.constant dense<0.000000e+00> : vector<10x10xf32>
    %52 = tpu.matmul %49, %50, %cst_25 {dimension_numbers = #tpu.dot_dimension_numbers<[1], [1], [0], [0], [0, 0, 1, 0], [], []>} : vector<10x64xbf16>, vector<10x64xbf16>, vector<10x10xf32> -> vector<10x10xf32>
    %53 = arith.addf %52, %46 : vector<10x10xf32>
    %cst_26 = arith.constant dense<0xFF800000> : vector<10xf32>
    %54 = vector.multi_reduction <maximumf>, %53, %cst_26 [1] : vector<10x10xf32> to vector<10xf32>
    %55 = vector.shape_cast %54 : vector<10xf32> to vector<10x1xf32>
    %56 = vector.broadcast %55 : vector<10x1xf32> to vector<10x10xf32>
    %57 = arith.subf %53, %56 : vector<10x10xf32>
    %58 = math.exp %57 : vector<10x10xf32>
    %cst_27 = arith.constant dense<0.000000e+00> : vector<10xf32>
    %59 = vector.multi_reduction <add>, %58, %cst_27 [1] : vector<10x10xf32> to vector<10xf32>
    %60 = vector.shape_cast %59 : vector<10xf32> to vector<10x1xf32>
    %61 = vector.broadcast %60 : vector<10x1xf32> to vector<10x10xf32>
    %62 = arith.divf %58, %61 : vector<10x10xf32>
    %63 = arith.truncf %62 : vector<10x10xf32> to vector<10x10xbf16>
    %cst_28 = arith.constant dense<0.000000e+00> : vector<10x64xf32>
    %64 = tpu.matmul %63, %51, %cst_28 {dimension_numbers = #tpu.dot_dimension_numbers<[1], [0], [0], [1], [0, 0, 1, 1], [], []>} : vector<10x10xbf16>, vector<10x64xbf16>, vector<10x64xf32> -> vector<10x64xf32>
    %65 = arith.truncf %64 : vector<10x64xf32> to vector<10x64xbf16>
    %66 = vector.extract_strided_slice %48 {offsets = [0, 0], sizes = [64, 128], strides = [1, 1]} : vector<128x128xbf16> to vector<64x128xbf16>
    %cst_29 = arith.constant dense<0.000000e+00> : vector<10x128xf32>
    %67 = tpu.matmul %65, %66, %cst_29 {dimension_numbers = #tpu.dot_dimension_numbers<[1], [0], [0], [1], [0, 0, 1, 1], [], []>} : vector<10x64xbf16>, vector<64x128xbf16>, vector<10x128xf32> -> vector<10x128xf32>
    %68 = vector.extract_strided_slice %41 {offsets = [0, 64], sizes = [10, 64], strides = [1, 1]} : vector<10x128xbf16> to vector<10x64xbf16>
    %69 = vector.extract_strided_slice %43 {offsets = [0, 64], sizes = [10, 64], strides = [1, 1]} : vector<10x128xbf16> to vector<10x64xbf16>
    %70 = vector.extract_strided_slice %45 {offsets = [0, 64], sizes = [10, 64], strides = [1, 1]} : vector<10x128xbf16> to vector<10x64xbf16>
    %cst_30 = arith.constant dense<0.000000e+00> : vector<10x10xf32>
    %71 = tpu.matmul %68, %69, %cst_30 {dimension_numbers = #tpu.dot_dimension_numbers<[1], [1], [0], [0], [0, 0, 1, 0], [], []>} : vector<10x64xbf16>, vector<10x64xbf16>, vector<10x10xf32> -> vector<10x10xf32>
    %72 = arith.addf %71, %46 : vector<10x10xf32>
    %cst_31 = arith.constant dense<0xFF800000> : vector<10xf32>
    %73 = vector.multi_reduction <maximumf>, %72, %cst_31 [1] : vector<10x10xf32> to vector<10xf32>
    %74 = vector.shape_cast %73 : vector<10xf32> to vector<10x1xf32>
    %75 = vector.broadcast %74 : vector<10x1xf32> to vector<10x10xf32>
    %76 = arith.subf %72, %75 : vector<10x10xf32>
    %77 = math.exp %76 : vector<10x10xf32>
    %cst_32 = arith.constant dense<0.000000e+00> : vector<10xf32>
    %78 = vector.multi_reduction <add>, %77, %cst_32 [1] : vector<10x10xf32> to vector<10xf32>
    %79 = vector.shape_cast %78 : vector<10xf32> to vector<10x1xf32>
    %80 = vector.broadcast %79 : vector<10x1xf32> to vector<10x10xf32>
    %81 = arith.divf %77, %80 : vector<10x10xf32>
    %82 = arith.truncf %81 : vector<10x10xf32> to vector<10x10xbf16>
    %cst_33 = arith.constant dense<0.000000e+00> : vector<10x64xf32>
    %83 = tpu.matmul %82, %70, %cst_33 {dimension_numbers = #tpu.dot_dimension_numbers<[1], [0], [0], [1], [0, 0, 1, 1], [], []>} : vector<10x10xbf16>, vector<10x64xbf16>, vector<10x64xf32> -> vector<10x64xf32>
    %84 = arith.truncf %83 : vector<10x64xf32> to vector<10x64xbf16>
    %85 = vector.extract_strided_slice %48 {offsets = [64, 0], sizes = [64, 128], strides = [1, 1]} : vector<128x128xbf16> to vector<64x128xbf16>
    %cst_34 = arith.constant dense<0.000000e+00> : vector<10x128xf32>
    %86 = tpu.matmul %84, %85, %cst_34 {dimension_numbers = #tpu.dot_dimension_numbers<[1], [0], [0], [1], [0, 0, 1, 1], [], []>} : vector<10x64xbf16>, vector<64x128xbf16>, vector<10x128xf32> -> vector<10x128xf32>
    %87 = arith.addf %67, %86 : vector<10x128xf32>
    %88 = arith.addf %3, %87 : vector<10x128xf32>
    %c0_35 = arith.constant 0 : index
    %c0_36 = arith.constant 0 : index
    %c0_37 = arith.constant 0 : index
    %89 = vector.load %arg14[%c0_35, %c0_36, %c0_37] : memref<1x1x128xf32, #tpu.memory_space<vmem>>, vector<1x1x128xf32>
    %90 = vector.shape_cast %89 : vector<1x1x128xf32> to vector<1x128xf32>
    %91 = vector.broadcast %90 : vector<1x128xf32> to vector<10x128xf32>
    %92 = arith.addf %88, %91 : vector<10x128xf32>
    %c0_38 = arith.constant 0 : index
    %c0_39 = arith.constant 0 : index
    %c0_40 = arith.constant 0 : index
    %93 = vector.load %arg15[%c0_38, %c0_39, %c0_40] : memref<1x1x128xf32, #tpu.memory_space<vmem>>, vector<1x1x128xf32>
    %94 = vector.shape_cast %93 : vector<1x1x128xf32> to vector<1x128xf32>
    %c0_41 = arith.constant 0 : index
    %c0_42 = arith.constant 0 : index
    %c0_43 = arith.constant 0 : index
    %95 = vector.load %arg16[%c0_41, %c0_42, %c0_43] : memref<1x1x128xf32, #tpu.memory_space<vmem>>, vector<1x1x128xf32>
    %96 = vector.shape_cast %95 : vector<1x1x128xf32> to vector<1x128xf32>
    %cst_44 = arith.constant dense<0.000000e+00> : vector<10xf32>
    %97 = vector.multi_reduction <add>, %92, %cst_44 [1] : vector<10x128xf32> to vector<10xf32>
    %98 = vector.shape_cast %97 : vector<10xf32> to vector<10x1xf32>
    %cst_45 = arith.constant 1.280000e+02 : f32
    %99 = vector.broadcast %cst_45 : f32 to vector<10x1xf32>
    %100 = arith.divf %98, %99 : vector<10x1xf32>
    %101 = arith.mulf %92, %92 : vector<10x128xf32>
    %cst_46 = arith.constant dense<0.000000e+00> : vector<10xf32>
    %102 = vector.multi_reduction <add>, %101, %cst_46 [1] : vector<10x128xf32> to vector<10xf32>
    %103 = vector.shape_cast %102 : vector<10xf32> to vector<10x1xf32>
    %cst_47 = arith.constant 1.280000e+02 : f32
    %104 = vector.broadcast %cst_47 : f32 to vector<10x1xf32>
    %105 = arith.divf %103, %104 : vector<10x1xf32>
    %106 = arith.mulf %100, %100 : vector<10x1xf32>
    %107 = arith.subf %105, %106 : vector<10x1xf32>
    %108 = vector.broadcast %100 : vector<10x1xf32> to vector<10x128xf32>
    %109 = arith.subf %92, %108 : vector<10x128xf32>
    %cst_48 = arith.constant 9.99999974E-6 : f32
    %110 = vector.broadcast %cst_48 : f32 to vector<10x1xf32>
    %111 = arith.addf %107, %110 : vector<10x1xf32>
    %112 = math.rsqrt %111 : vector<10x1xf32>
    %113 = vector.broadcast %112 : vector<10x1xf32> to vector<10x128xf32>
    %114 = arith.mulf %109, %113 : vector<10x128xf32>
    %115 = vector.broadcast %94 : vector<1x128xf32> to vector<10x128xf32>
    %116 = arith.mulf %114, %115 : vector<10x128xf32>
    %117 = vector.broadcast %96 : vector<1x128xf32> to vector<10x128xf32>
    %118 = arith.addf %116, %117 : vector<10x128xf32>
    %119 = arith.truncf %118 : vector<10x128xf32> to vector<10x128xbf16>
    %c0_49 = arith.constant 0 : index
    %c0_50 = arith.constant 0 : index
    %c0_51 = arith.constant 0 : index
    %120 = vector.load %arg17[%c0_49, %c0_50, %c0_51] : memref<1x128x512xbf16, #tpu.memory_space<vmem>>, vector<1x128x512xbf16>
    %121 = vector.shape_cast %120 : vector<1x128x512xbf16> to vector<128x512xbf16>
    %cst_52 = arith.constant dense<0.000000e+00> : vector<10x512xf32>
    %122 = tpu.matmul %119, %121, %cst_52 {dimension_numbers = #tpu.dot_dimension_numbers<[1], [0], [0], [1], [0, 0, 1, 1], [], []>} : vector<10x128xbf16>, vector<128x512xbf16>, vector<10x512xf32> -> vector<10x512xf32>
    %c0_53 = arith.constant 0 : index
    %c0_54 = arith.constant 0 : index
    %c0_55 = arith.constant 0 : index
    %123 = vector.load %arg18[%c0_53, %c0_54, %c0_55] : memref<1x1x512xf32, #tpu.memory_space<vmem>>, vector<1x1x512xf32>
    %124 = vector.shape_cast %123 : vector<1x1x512xf32> to vector<1x512xf32>
    %125 = vector.broadcast %124 : vector<1x512xf32> to vector<10x512xf32>
    %126 = arith.addf %122, %125 : vector<10x512xf32>
    %cst_56 = arith.constant 1.702000e+00 : f32
    %127 = vector.broadcast %cst_56 : f32 to vector<10x512xf32>
    %128 = arith.mulf %127, %126 : vector<10x512xf32>
    %129 = arith.negf %128 : vector<10x512xf32>
    %130 = math.exp %129 : vector<10x512xf32>
    %cst_57 = arith.constant 1.000000e+00 : f32
    %131 = vector.broadcast %cst_57 : f32 to vector<10x512xf32>
    %132 = arith.addf %131, %130 : vector<10x512xf32>
    %133 = arith.divf %131, %132 : vector<10x512xf32>
    %134 = arith.mulf %126, %133 : vector<10x512xf32>
    %135 = arith.truncf %134 : vector<10x512xf32> to vector<10x512xbf16>
    %c0_58 = arith.constant 0 : index
    %c0_59 = arith.constant 0 : index
    %c0_60 = arith.constant 0 : index
    %136 = vector.load %arg19[%c0_58, %c0_59, %c0_60] : memref<1x512x128xbf16, #tpu.memory_space<vmem>>, vector<1x512x128xbf16>
    %137 = vector.shape_cast %136 : vector<1x512x128xbf16> to vector<512x128xbf16>
    %cst_61 = arith.constant dense<0.000000e+00> : vector<10x128xf32>
    %138 = tpu.matmul %135, %137, %cst_61 {dimension_numbers = #tpu.dot_dimension_numbers<[1], [0], [0], [1], [0, 0, 1, 1], [], []>} : vector<10x512xbf16>, vector<512x128xbf16>, vector<10x128xf32> -> vector<10x128xf32>
    %c0_62 = arith.constant 0 : index
    %c0_63 = arith.constant 0 : index
    %c0_64 = arith.constant 0 : index
    %139 = vector.load %arg20[%c0_62, %c0_63, %c0_64] : memref<1x1x128xf32, #tpu.memory_space<vmem>>, vector<1x1x128xf32>
    %140 = vector.shape_cast %139 : vector<1x1x128xf32> to vector<1x128xf32>
    %141 = vector.broadcast %140 : vector<1x128xf32> to vector<10x128xf32>
    %142 = arith.addf %138, %141 : vector<10x128xf32>
    %143 = arith.addf %92, %142 : vector<10x128xf32>
    %c0_65 = arith.constant 0 : index
    %c0_66 = arith.constant 0 : index
    %144 = vector.load %arg27[%c0_65, %c0_66] : memref<10x128xf32, #tpu.memory_space<vmem>>, vector<10x128xf32>
    tpu.vector_store %arg27[%c0_65, %c0_66], %143 {strides = array<i32>} : memref<10x128xf32, #tpu.memory_space<vmem>>, vector<10x128xf32>,
    %c1_i32 = arith.constant 1 : i32
    %145 = arith.cmpi eq, %arg1, %c1_i32 : i32
    %146 = arith.extui %145 : i1 to i32
    %c0_i32_67 = arith.constant 0 : i32
    %147 = arith.cmpi ne, %146, %c0_i32_67 : i32
    scf.if %147 {
      %c0_68 = arith.constant 0 : index
      %c0_69 = arith.constant 0 : index
      %148 = vector.load %arg6[%c0_68, %c0_69] : memref<2x10xf32, #tpu.memory_space<vmem>>, vector<2x10xf32>
      %cst_70 = arith.constant dense<0.000000e+00> : vector<2x128xf32>
      %149 = tpu.matmul %148, %143, %cst_70 {dimension_numbers = #tpu.dot_dimension_numbers<[1], [0], [0], [1], [0, 0, 1, 1], [], []>} : vector<2x10xf32>, vector<10x128xf32>, vector<2x128xf32> -> vector<2x128xf32>
      %c0_71 = arith.constant 0 : index
      %c0_72 = arith.constant 0 : index
      %150 = vector.load %arg21[%c0_71, %c0_72] : memref<1x128xf32, #tpu.memory_space<vmem>>, vector<1x128xf32>
      %c0_73 = arith.constant 0 : index
      %c0_74 = arith.constant 0 : index
      %151 = vector.load %arg22[%c0_73, %c0_74] : memref<1x128xf32, #tpu.memory_space<vmem>>, vector<1x128xf32>
      %cst_75 = arith.constant dense<0.000000e+00> : vector<2xf32>
      %152 = vector.multi_reduction <add>, %149, %cst_75 [1] : vector<2x128xf32> to vector<2xf32>
      %153 = vector.shape_cast %152 : vector<2xf32> to vector<2x1xf32>
      %cst_76 = arith.constant 1.280000e+02 : f32
      %154 = vector.broadcast %cst_76 : f32 to vector<2x1xf32>
      %155 = arith.divf %153, %154 : vector<2x1xf32>
      %156 = arith.mulf %149, %149 : vector<2x128xf32>
      %cst_77 = arith.constant dense<0.000000e+00> : vector<2xf32>
      %157 = vector.multi_reduction <add>, %156, %cst_77 [1] : vector<2x128xf32> to vector<2xf32>
      %158 = vector.shape_cast %157 : vector<2xf32> to vector<2x1xf32>
      %cst_78 = arith.constant 1.280000e+02 : f32
      %159 = vector.broadcast %cst_78 : f32 to vector<2x1xf32>
      %160 = arith.divf %158, %159 : vector<2x1xf32>
      %161 = arith.mulf %155, %155 : vector<2x1xf32>
      %162 = arith.subf %160, %161 : vector<2x1xf32>
      %163 = vector.broadcast %155 : vector<2x1xf32> to vector<2x128xf32>
      %164 = arith.subf %149, %163 : vector<2x128xf32>
      %cst_79 = arith.constant 9.99999974E-6 : f32
      %165 = vector.broadcast %cst_79 : f32 to vector<2x1xf32>
      %166 = arith.addf %162, %165 : vector<2x1xf32>
      %167 = math.rsqrt %166 : vector<2x1xf32>
      %168 = vector.broadcast %167 : vector<2x1xf32> to vector<2x128xf32>
      %169 = arith.mulf %164, %168 : vector<2x128xf32>
      %170 = vector.broadcast %150 : vector<1x128xf32> to vector<2x128xf32>
      %171 = arith.mulf %169, %170 : vector<2x128xf32>
      %172 = vector.broadcast %151 : vector<1x128xf32> to vector<2x128xf32>
      %173 = arith.addf %171, %172 : vector<2x128xf32>
      %174 = arith.truncf %173 : vector<2x128xf32> to vector<2x128xbf16>
      %c0_80 = arith.constant 0 : index
      %c0_81 = arith.constant 0 : index
      %175 = vector.load %arg23[%c0_80, %c0_81] : memref<128x512xbf16, #tpu.memory_space<vmem>>, vector<128x512xbf16>
      %cst_82 = arith.constant dense<0.000000e+00> : vector<2x512xf32>
      %176 = tpu.matmul %174, %175, %cst_82 {dimension_numbers = #tpu.dot_dimension_numbers<[1], [0], [0], [1], [0, 0, 1, 1], [], []>} : vector<2x128xbf16>, vector<128x512xbf16>, vector<2x512xf32> -> vector<2x512xf32>
      %177 = arith.truncf %176 : vector<2x512xf32> to vector<2x512xbf16>
      %c0_83 = arith.constant 0 : index
      %c0_84 = arith.constant 0 : index
      %178 = vector.load %arg24[%c0_83, %c0_84] : memref<512x2xbf16, #tpu.memory_space<vmem>>, vector<512x2xbf16>
      %cst_85 = arith.constant dense<0.000000e+00> : vector<2x2xf32>
      %179 = tpu.matmul %177, %178, %cst_85 {dimension_numbers = #tpu.dot_dimension_numbers<[1], [0], [0], [1], [0, 0, 1, 1], [], []>} : vector<2x512xbf16>, vector<512x2xbf16>, vector<2x2xf32> -> vector<2x2xf32>
      %c0_86 = arith.constant 0 : index
      %c0_87 = arith.constant 0 : index
      %180 = vector.load %arg25[%c0_86, %c0_87] : memref<1x2xf32, #tpu.memory_space<vmem>>, vector<1x2xf32>
      %181 = vector.broadcast %180 : vector<1x2xf32> to vector<2x2xf32>
      %182 = arith.addf %179, %181 : vector<2x2xf32>
      %c0_88 = arith.constant 0 : index
      %c0_89 = arith.constant 0 : index
      %183 = vector.load %arg26[%c0_88, %c0_89] : memref<2x2xf32, #tpu.memory_space<vmem>>, vector<2x2xf32>
      tpu.vector_store %arg26[%c0_88, %c0_89], %182 {strides = array<i32>} : memref<2x2xf32, #tpu.memory_space<vmem>>, vector<2x2xf32>,
    } else {
    }
    return
  }
  func.func @transform_0(%arg0: i32, %arg1: i32) -> (i32, i32) {
    %c0_i32 = arith.constant 0 : i32
    %c0_i32_0 = arith.constant 0 : i32
    return %arg0, %c0_i32 : i32, i32
  }
  func.func @transform_1(%arg0: i32, %arg1: i32) -> (i32, i32) {
    %c0_i32 = arith.constant 0 : i32
    %c0_i32_0 = arith.constant 0 : i32
    %c0_i32_1 = arith.constant 0 : i32
    return %c0_i32, %c0_i32_0 : i32, i32
  }
  func.func @transform_2(%arg0: i32, %arg1: i32) -> (i32, i32) {
    %c0_i32 = arith.constant 0 : i32
    %c0_i32_0 = arith.constant 0 : i32
    return %arg0, %c0_i32 : i32, i32
  }
  func.func @transform_3(%arg0: i32, %arg1: i32) -> (i32, i32) {
    %c0_i32 = arith.constant 0 : i32
    return %arg0, %arg0 : i32, i32
  }
  func.func @transform_4(%arg0: i32, %arg1: i32) -> (i32, i32) {
    %c0_i32 = arith.constant 0 : i32
    return %arg0, %arg0 : i32, i32
  }
  func.func @transform_5(%arg0: i32, %arg1: i32) -> (i32, i32) {
    %c0_i32 = arith.constant 0 : i32
    %c0_i32_0 = arith.constant 0 : i32
    %c0_i32_1 = arith.constant 0 : i32
    return %c0_i32, %c0_i32_0 : i32, i32
  }
  func.func @transform_6(%arg0: i32, %arg1: i32) -> (i32, i32) {
    %c0_i32 = arith.constant 0 : i32
    %c0_i32_0 = arith.constant 0 : i32
    %c0_i32_1 = arith.constant 0 : i32
    return %c0_i32, %c0_i32_0 : i32, i32
  }
  func.func @transform_7(%arg0: i32, %arg1: i32) -> (i32, i32, i32) {
    %c0_i32 = arith.constant 0 : i32
    %c0_i32_0 = arith.constant 0 : i32
    %c0_i32_1 = arith.constant 0 : i32
    return %arg1, %c0_i32, %c0_i32_0 : i32, i32, i32
  }
  func.func @transform_8(%arg0: i32, %arg1: i32) -> (i32, i32, i32) {
    %c0_i32 = arith.constant 0 : i32
    %c0_i32_0 = arith.constant 0 : i32
    %c0_i32_1 = arith.constant 0 : i32
    return %arg1, %c0_i32, %c0_i32_0 : i32, i32, i32
  }
  func.func @transform_9(%arg0: i32, %arg1: i32) -> (i32, i32, i32) {
    %c0_i32 = arith.constant 0 : i32
    %c0_i32_0 = arith.constant 0 : i32
    %c0_i32_1 = arith.constant 0 : i32
    return %arg1, %c0_i32, %c0_i32_0 : i32, i32, i32
  }
  func.func @transform_10(%arg0: i32, %arg1: i32) -> (i32, i32, i32) {
    %c0_i32 = arith.constant 0 : i32
    %c0_i32_0 = arith.constant 0 : i32
    %c0_i32_1 = arith.constant 0 : i32
    return %arg1, %c0_i32, %c0_i32_0 : i32, i32, i32
  }
  func.func @transform_11(%arg0: i32, %arg1: i32) -> (i32, i32, i32) {
    %c0_i32 = arith.constant 0 : i32
    %c0_i32_0 = arith.constant 0 : i32
    %c0_i32_1 = arith.constant 0 : i32
    return %arg1, %c0_i32, %c0_i32_0 : i32, i32, i32
  }
  func.func @transform_12(%arg0: i32, %arg1: i32) -> (i32, i32, i32) {
    %c0_i32 = arith.constant 0 : i32
    %c0_i32_0 = arith.constant 0 : i32
    %c0_i32_1 = arith.constant 0 : i32
    return %arg1, %c0_i32, %c0_i32_0 : i32, i32, i32
  }
  func.func @transform_13(%arg0: i32, %arg1: i32) -> (i32, i32, i32) {
    %c0_i32 = arith.constant 0 : i32
    %c0_i32_0 = arith.constant 0 : i32
    %c0_i32_1 = arith.constant 0 : i32
    return %arg1, %c0_i32, %c0_i32_0 : i32, i32, i32
  }
  func.func @transform_14(%arg0: i32, %arg1: i32) -> (i32, i32, i32) {
    %c0_i32 = arith.constant 0 : i32
    %c0_i32_0 = arith.constant 0 : i32
    %c0_i32_1 = arith.constant 0 : i32
    return %arg1, %c0_i32, %c0_i32_0 : i32, i32, i32
  }
  func.func @transform_15(%arg0: i32, %arg1: i32) -> (i32, i32, i32) {
    %c0_i32 = arith.constant 0 : i32
    %c0_i32_0 = arith.constant 0 : i32
    %c0_i32_1 = arith.constant 0 : i32
    return %arg1, %c0_i32, %c0_i32_0 : i32, i32, i32
  }
  func.func @transform_16(%arg0: i32, %arg1: i32) -> (i32, i32, i32) {
    %c0_i32 = arith.constant 0 : i32
    %c0_i32_0 = arith.constant 0 : i32
    %c0_i32_1 = arith.constant 0 : i32
    return %arg1, %c0_i32, %c0_i32_0 : i32, i32, i32
  }
  func.func @transform_17(%arg0: i32, %arg1: i32) -> (i32, i32, i32) {
    %c0_i32 = arith.constant 0 : i32
    %c0_i32_0 = arith.constant 0 : i32
    %c0_i32_1 = arith.constant 0 : i32
    return %arg1, %c0_i32, %c0_i32_0 : i32, i32, i32
  }
  func.func @transform_18(%arg0: i32, %arg1: i32) -> (i32, i32, i32) {
    %c0_i32 = arith.constant 0 : i32
    %c0_i32_0 = arith.constant 0 : i32
    %c0_i32_1 = arith.constant 0 : i32
    return %arg1, %c0_i32, %c0_i32_0 : i32, i32, i32
  }
  func.func @transform_19(%arg0: i32, %arg1: i32) -> (i32, i32) {
    %c0_i32 = arith.constant 0 : i32
    %c0_i32_0 = arith.constant 0 : i32
    %c0_i32_1 = arith.constant 0 : i32
    return %c0_i32, %c0_i32_0 : i32, i32
  }
  func.func @transform_20(%arg0: i32, %arg1: i32) -> (i32, i32) {
    %c0_i32 = arith.constant 0 : i32
    %c0_i32_0 = arith.constant 0 : i32
    %c0_i32_1 = arith.constant 0 : i32
    return %c0_i32, %c0_i32_0 : i32, i32
  }
  func.func @transform_21(%arg0: i32, %arg1: i32) -> (i32, i32) {
    %c0_i32 = arith.constant 0 : i32
    %c0_i32_0 = arith.constant 0 : i32
    %c0_i32_1 = arith.constant 0 : i32
    return %c0_i32, %c0_i32_0 : i32, i32
  }
  func.func @transform_22(%arg0: i32, %arg1: i32) -> (i32, i32) {
    %c0_i32 = arith.constant 0 : i32
    %c0_i32_0 = arith.constant 0 : i32
    %c0_i32_1 = arith.constant 0 : i32
    return %c0_i32, %c0_i32_0 : i32, i32
  }
  func.func @transform_23(%arg0: i32, %arg1: i32) -> (i32, i32) {
    %c0_i32 = arith.constant 0 : i32
    %c0_i32_0 = arith.constant 0 : i32
    %c0_i32_1 = arith.constant 0 : i32
    return %c0_i32, %c0_i32_0 : i32, i32
  }
  func.func @transform_24(%arg0: i32, %arg1: i32) -> (i32, i32) {
    %c0_i32 = arith.constant 0 : i32
    %c0_i32_0 = arith.constant 0 : i32
    return %arg0, %c0_i32 : i32, i32
  }
}

</mosaic_0001>

<llo_original>
// kernel: eq.8
$region0: #{eq.8}
  %s0 = inlined_call_operand.vmem [shape: s32[2,5], index: 0, kind: input, shape index: {}]
  %s1 = inlined_call_operand.vmem [shape: s32[10], index: 1, kind: output, shape index: {}]
  $region1: #{eq.8} parent=0
    #allocation0 [shape = 'u8[4096]{0}', space=vmem, size = 0x1000, scoped, tag = 'scoped mem for output reshape']
    #allocation1 [shape = 'u8[4096]{0}', space=vmem, size = 0x1000, scoped, tag = 'scoped mem for input reshape']
    %s3 = sshllo.u32 0, 2
    %v4 = vld [vmem:[%s0] sm:%s3]
    %5 = vst [vmem:[#allocation1] sm:%s3] %v4
    %v6 = vld [vmem:[#allocation1] sm:$0x1]
    %vm7 = vcmask 39936
    %8 = vst.msk [vmem:[#allocation0] sm:$0x1] %vm7, %v6
    %s9 = scalar_lea.vmem [#allocation1], 1
    %v10 = vld [vmem:[%s9] sm:$0x1]
    %11 = vrot.lane.b32.xlu0 %v10, 5
    %v12 = vpop.permute.xlu0 %11
    %vm13 = vcmask 80936
    %14 = vst.msk [vmem:[#allocation0] sm:$0x1] %vm13, %v12
    %s16 = sshllo.u32 0, 1
    %v18 = vld [vmem:[#allocation0] sm:%s16]
    %s19 = sshllo.u32 0, 1
    %20 = vst [vmem:[%s1] sm:%s19] %v18

// kernel: tile.7
$region0: #{tile.7}
  %s0 = inlined_call_operand.vmem [shape: f32[2,5,128], index: 0, kind: input, shape index: {}]
  %s1 = inlined_call_operand.vmem [shape: f32[10,128], index: 1, kind: output, shape index: {}]
  %v2 = vld [vmem:[%s0] sm:$0x1f]
  %3 = vst [vmem:[%s1] sm:$0x1f] %v2
  %s4 = scalar_lea.vmem %s0, 8
  %v5 = vld [vmem:[%s4] sm:$0x1f]
  %s6 = scalar_lea.vmem %s1, 5
  %7 = vst [vmem:[%s6] sm:$0x1f] %v5

// kernel: _lambda_.1
$region0: #{_lambda_.1}
  #allocation0 [shape = 'u32[]', space=smem, size = 0x4, offset = 0x4, fixed_abs, tag = 'smem constant byte address 0x4 - core index']
  #allocation1 [shape = 'u32[144,128]{1,0:T(1,128)}', space=vmem, size = 0x12000, scoped, tag = 'internal scratch']
  #allocation2 [shape = 'f32[10,128]{1,0:T(8,128)}', space=vmem, size = 0x2000, scoped, tag = 'scratch operand']
  %s0 = inlined_call_operand.vmem [shape: f32[10,768], index: 0, kind: input, shape index: {}]
  %s1 = inlined_call_operand.vmem [shape: bf16[768,128], index: 1, kind: input, shape index: {}]
  %s2 = inlined_call_operand.vmem [shape: f32[10,128], index: 2, kind: input, shape index: {}]
  %s3 = inlined_call_operand.vmem [shape: f32[10,10], index: 3, kind: input, shape index: {}]
  %s4 = inlined_call_operand.vmem [shape: f32[2,10], index: 4, kind: input, shape index: {}]
  %s5 = inlined_call_operand.vmem [shape: f32[1,128], index: 5, kind: input, shape index: {}, may-alias: {5,19}]
  %s6 = inlined_call_operand.vmem [shape: f32[1,128], index: 6, kind: input, shape index: {}, may-alias: {6,20}]
  %s7 = inlined_call_operand.vmem [shape: f32[2,1,128], index: 7, kind: input, shape index: {}, may-alias: {7,13}]
  %s8 = inlined_call_operand.vmem [shape: f32[2,1,128], index: 8, kind: input, shape index: {}, may-alias: {8,12,14,18}]
  %s9 = inlined_call_operand.vmem [shape: bf16[2,128,384], index: 9, kind: input, shape index: {}]
  %s10 = inlined_call_operand.vmem [shape: f32[2,1,384], index: 10, kind: input, shape index: {}]
  %s11 = inlined_call_operand.vmem [shape: bf16[2,128,128], index: 11, kind: input, shape index: {}]
  %s12 = inlined_call_operand.vmem [shape: f32[2,1,128], index: 12, kind: input, shape index: {}, may-alias: {8,12,14,18}]
  %s13 = inlined_call_operand.vmem [shape: f32[2,1,128], index: 13, kind: input, shape index: {}, may-alias: {7,13}]
  %s14 = inlined_call_operand.vmem [shape: f32[2,1,128], index: 14, kind: input, shape index: {}, may-alias: {8,12,14,18}]
  %s15 = inlined_call_operand.vmem [shape: bf16[2,128,512], index: 15, kind: input, shape index: {}]
  %s16 = inlined_call_operand.vmem [shape: f32[2,1,512], index: 16, kind: input, shape index: {}]
  %s17 = inlined_call_operand.vmem [shape: bf16[2,512,128], index: 17, kind: input, shape index: {}]
  %s18 = inlined_call_operand.vmem [shape: f32[2,1,128], index: 18, kind: input, shape index: {}, may-alias: {8,12,14,18}]
  %s19 = inlined_call_operand.vmem [shape: f32[1,128], index: 19, kind: input, shape index: {}, may-alias: {5,19}]
  %s20 = inlined_call_operand.vmem [shape: f32[1,128], index: 20, kind: input, shape index: {}, may-alias: {6,20}]
  %s21 = inlined_call_operand.vmem [shape: bf16[128,512], index: 21, kind: input, shape index: {}]
  %s22 = inlined_call_operand.vmem [shape: bf16[512,2], index: 22, kind: input, shape index: {}]
  %s23 = inlined_call_operand.vmem [shape: f32[1,2], index: 23, kind: input, shape index: {}]
  %s24 = inlined_call_operand.hbm [shape: f32[2,2], index: 24, kind: output, shape index: {}]
  %s25 = sld [smem:[#allocation0]]
  $region137: #{_lambda_.1} parent=0
    _
  %s27 = ssub.s32 1, %s25
  %s28 = scalar_select 0, %s27, %s25
  $region1: #{_lambda_.1} parent=0
    #allocation3 [shape = 'u8[1024]{0}', space=vmem, size = 0x400, scoped, tag = 'output window, operand 0, single buffered']
    #allocation4 [shape = 's32[2]{0}', space=sflag, size = 0x8, scoped, tag = 'scoped memory for _lambda_.1']
    %29 = vsyncpa [#allocation4], 0
    loop: start=0, step=1, limit=4
    $region2: #{_lambda_.1} parent=1 // loop_pre_header
      _
    $region3: #{_lambda_.1} parent=1 // loop_header
      %s31 = sphi 0, %s35
      %p32 = scmp.ge.s32.totalorder %s31, 4
      %s38 = sphi 0, %s50
      %s39 = sphi 0, %s46
      %s40 = sphi 0, %s38
      %s41 = sphi 0, %s39
      %s42 = sphi 0, %s40
      %s43 = sphi 0, %s41
      %s53 = sphi 0, %s55
      %s56 = sphi 0, %s53
      %s57 = sphi 0, %s56
      %s73 = sphi 0, %s57
      %s77 = sphi 0, %s77
      %s79 = sphi 0, %s77
      %s80 = sphi 0, %s79
      %s94 = sphi 0, %s80
      %s100 = sphi 0, %s102
      %s103 = sphi 0, %s100
      %s104 = sphi 0, %s103
      %s120 = sphi 0, %s104
      %s128 = sphi 0, %s130
      %s131 = sphi 0, %s128
      %s132 = sphi 0, %s131
      %s148 = sphi 0, %s132
      %s156 = sphi 0, %s158
      %s159 = sphi 0, %s156
      %s160 = sphi 0, %s159
      %s176 = sphi 0, %s160
      %s180 = sphi 0, %s180
      %s182 = sphi 0, %s180
      %s183 = sphi 0, %s182
      %s197 = sphi 0, %s183
      %s201 = sphi 0, %s201
      %s203 = sphi 0, %s201
      %s204 = sphi 0, %s203
      %s218 = sphi 0, %s204
      %s224 = sphi 0, %s226
      %s227 = sphi 0, %s224
      %s228 = sphi 0, %s227
      %s244 = sphi 0, %s228
      %s250 = sphi 0, %s252
      %s253 = sphi 0, %s250
      %s254 = sphi 0, %s253
      %s270 = sphi 0, %s254
      %s276 = sphi 0, %s278
      %s279 = sphi 0, %s276
      %s280 = sphi 0, %s279
      %s296 = sphi 0, %s280
      %s302 = sphi 0, %s304
      %s305 = sphi 0, %s302
      %s306 = sphi 0, %s305
      %s322 = sphi 0, %s306
      %s328 = sphi 0, %s330
      %s331 = sphi 0, %s328
      %s332 = sphi 0, %s331
      %s348 = sphi 0, %s332
      %s354 = sphi 0, %s356
      %s357 = sphi 0, %s354
      %s358 = sphi 0, %s357
      %s374 = sphi 0, %s358
      %s380 = sphi 0, %s382
      %s383 = sphi 0, %s380
      %s384 = sphi 0, %s383
      %s400 = sphi 0, %s384
      %s406 = sphi 0, %s408
      %s409 = sphi 0, %s406
      %s410 = sphi 0, %s409
      %s426 = sphi 0, %s410
      %s432 = sphi 0, %s434
      %s435 = sphi 0, %s432
      %s436 = sphi 0, %s435
      %s452 = sphi 0, %s436
      %s458 = sphi 0, %s460
      %s461 = sphi 0, %s458
      %s462 = sphi 0, %s461
      %s478 = sphi 0, %s462
      %s484 = sphi 0, %s486
      %s487 = sphi 0, %s484
      %s488 = sphi 0, %s487
      %s504 = sphi 0, %s488
      %s510 = sphi 0, %s512
      %s513 = sphi 0, %s510
      %s514 = sphi 0, %s513
      %s530 = sphi 0, %s514
      %s534 = sphi 0, %s534
      %s536 = sphi 0, %s534
      %s537 = sphi 0, %s536
      %s551 = sphi 0, %s537
      %s555 = sphi 0, %s555
      %s557 = sphi 0, %s555
      %s558 = sphi 0, %s557
      %s572 = sphi 0, %s558
      %s576 = sphi 0, %s576
      %s578 = sphi 0, %s576
      %s579 = sphi 0, %s578
      %s593 = sphi 0, %s579
      %s597 = sphi 0, %s597
      %s599 = sphi 0, %s597
      %s600 = sphi 0, %s599
      %s614 = sphi 0, %s600
      %s618 = sphi 0, %s618
      %s620 = sphi 0, %s618
      %s621 = sphi 0, %s620
      %s635 = sphi 0, %s621
      %s641 = sphi 0, %s643
      %s644 = sphi 0, %s641
      %s645 = sphi 0, %s644
      %s661 = sphi 0, %s645
    $region4: #{_lambda_.1} parent=1 // loop_header_branch
      %34 = sbr.rel (%p32) target = $region8
    $region5: #{_lambda_.1} parent=1 // loop_body
      %s36 = ssub.s32 %s31, 1
      %s37 = ssub.s32 %s31, 2
      %s44 = sadd.s32 1, %s39
      %p45 = scmp.ge.s32.totalorder %s44, 2
      %s46 = scalar_select %p45, 0, %s44
      %s47 = sadd.s32 1, %s38
      %s48 = scalar_select %p45, %s47, %s38
      %p49 = scmp.ge.s32.totalorder %s48, 1
      %s50 = scalar_select %p49, 0, %s48
      %s51 = ssub.s32 %s38, %s50
      %p52 = scmp.eq.s32.totalorder %s51, 0
      %s54 = sadd.s32 %s53, 1
      %s55 = scalar_select %p52, %s53, %s54
      %p58 = pneg %p52
      %p59 = scmp.eq.s32.totalorder %s31, 1
      %p60 = por %p58, %p59
      %p61 = scmp.ne.s32.totalorder %s53, %s56
      %p62 = scmp.eq.s32.totalorder %s31, 0
      %p63 = por %p61, %p62
      %p64 = scmp.ne.s32.totalorder %s53, %s56
      %p65 = scmp.eq.s32.totalorder %s36, 1
      %p66 = por %p64, %p65
      %p67 = scmp.ne.s32.totalorder %s56, %s57
      %p68 = scmp.eq.s32.totalorder %s36, 0
      %p69 = por %p67, %p68
      %p70 = scmp.ne.s32.totalorder %s56, %s57
      %p71 = scmp.eq.s32.totalorder %s37, 1
      %p72 = por %p70, %p71
      %p74 = scmp.ne.s32.totalorder %s57, %s73
      %p75 = scmp.eq.s32.totalorder %s37, 0
      %p76 = por %p74, %p75
      %s78 = sadd.s32 %s77, 1
      %p81 = scmp.eq.s32.totalorder %s31, 1
      %p82 = scmp.ne.s32.totalorder %s77, %s79
      %p83 = scmp.eq.s32.totalorder %s31, 0
      %p84 = por %p82, %p83
      %p85 = scmp.ne.s32.totalorder %s77, %s79
      %p86 = scmp.eq.s32.totalorder %s36, 1
      %p87 = por %p85, %p86
      %p88 = scmp.ne.s32.totalorder %s79, %s80
      %p89 = scmp.eq.s32.totalorder %s36, 0
      %p90 = por %p88, %p89
      %p91 = scmp.ne.s32.totalorder %s79, %s80
      %p92 = scmp.eq.s32.totalorder %s37, 1
      %p93 = por %p91, %p92
      %p95 = scmp.ne.s32.totalorder %s80, %s94
      %p96 = scmp.eq.s32.totalorder %s37, 0
      %p97 = por %p95, %p96
      %s98 = ssub.s32 %s38, %s50
      %p99 = scmp.eq.s32.totalorder %s98, 0
      %s101 = sadd.s32 %s100, 1
      %s102 = scalar_select %p99, %s100, %s101
      %p105 = pneg %p99
      %p106 = scmp.eq.s32.totalorder %s31, 1
      %p107 = por %p105, %p106
      %p108 = scmp.ne.s32.totalorder %s100, %s103
      %p109 = scmp.eq.s32.totalorder %s31, 0
      %p110 = por %p108, %p109
      %p111 = scmp.ne.s32.totalorder %s100, %s103
      %p112 = scmp.eq.s32.totalorder %s36, 1
      %p113 = por %p111, %p112
      %p114 = scmp.ne.s32.totalorder %s103, %s104
      %p115 = scmp.eq.s32.totalorder %s36, 0
      %p116 = por %p114, %p115
      %p117 = scmp.ne.s32.totalorder %s103, %s104
      %p118 = scmp.eq.s32.totalorder %s37, 1
      %p119 = por %p117, %p118
      %p121 = scmp.ne.s32.totalorder %s104, %s120
      %p122 = scmp.eq.s32.totalorder %s37, 0
      %p123 = por %p121, %p122
      %s124 = ssub.s32 %s38, %s50
      %s125 = ssub.s32 %s38, %s50
      %s126 = sor.u32 %s124, %s125
      %p127 = scmp.eq.s32.totalorder %s126, 0
      %s129 = sadd.s32 %s128, 1
      %s130 = scalar_select %p127, %s128, %s129
      %p133 = pneg %p127
      %p134 = scmp.eq.s32.totalorder %s31, 1
      %p135 = por %p133, %p134
      %p136 = scmp.ne.s32.totalorder %s128, %s131
      %p137 = scmp.eq.s32.totalorder %s31, 0
      %p138 = por %p136, %p137
      %p139 = scmp.ne.s32.totalorder %s128, %s131
      %p140 = scmp.eq.s32.totalorder %s36, 1
      %p141 = por %p139, %p140
      %p142 = scmp.ne.s32.totalorder %s131, %s132
      %p143 = scmp.eq.s32.totalorder %s36, 0
      %p144 = por %p142, %p143
      %p145 = scmp.ne.s32.totalorder %s131, %s132
      %p146 = scmp.eq.s32.totalorder %s37, 1
      %p147 = por %p145, %p146
      %p149 = scmp.ne.s32.totalorder %s132, %s148
      %p150 = scmp.eq.s32.totalorder %s37, 0
      %p151 = por %p149, %p150
      %s152 = ssub.s32 %s38, %s50
      %s153 = ssub.s32 %s38, %s50
      %s154 = sor.u32 %s152, %s153
      %p155 = scmp.eq.s32.totalorder %s154, 0
      %s157 = sadd.s32 %s156, 1
      %s158 = scalar_select %p155, %s156, %s157
      %p161 = pneg %p155
      %p162 = scmp.eq.s32.totalorder %s31, 1
      %p163 = por %p161, %p162
      %p164 = scmp.ne.s32.totalorder %s156, %s159
      %p165 = scmp.eq.s32.totalorder %s31, 0
      %p166 = por %p164, %p165
      %p167 = scmp.ne.s32.totalorder %s156, %s159
      %p168 = scmp.eq.s32.totalorder %s36, 1
      %p169 = por %p167, %p168
      %p170 = scmp.ne.s32.totalorder %s159, %s160
      %p171 = scmp.eq.s32.totalorder %s36, 0
      %p172 = por %p170, %p171
      %p173 = scmp.ne.s32.totalorder %s159, %s160
      %p174 = scmp.eq.s32.totalorder %s37, 1
      %p175 = por %p173, %p174
      %p177 = scmp.ne.s32.totalorder %s160, %s176
      %p178 = scmp.eq.s32.totalorder %s37, 0
      %p179 = por %p177, %p178
      %s181 = sadd.s32 %s180, 1
      %p184 = scmp.eq.s32.totalorder %s31, 1
      %p185 = scmp.ne.s32.totalorder %s180, %s182
      %p186 = scmp.eq.s32.totalorder %s31, 0
      %p187 = por %p185, %p186
      %p188 = scmp.ne.s32.totalorder %s180, %s182
      %p189 = scmp.eq.s32.totalorder %s36, 1
      %p190 = por %p188, %p189
      %p191 = scmp.ne.s32.totalorder %s182, %s183
      %p192 = scmp.eq.s32.totalorder %s36, 0
      %p193 = por %p191, %p192
      %p194 = scmp.ne.s32.totalorder %s182, %s183
      %p195 = scmp.eq.s32.totalorder %s37, 1
      %p196 = por %p194, %p195
      %p198 = scmp.ne.s32.totalorder %s183, %s197
      %p199 = scmp.eq.s32.totalorder %s37, 0
      %p200 = por %p198, %p199
      %s202 = sadd.s32 %s201, 1
      %p205 = scmp.eq.s32.totalorder %s31, 1
      %p206 = scmp.ne.s32.totalorder %s201, %s203
      %p207 = scmp.eq.s32.totalorder %s31, 0
      %p208 = por %p206, %p207
      %p209 = scmp.ne.s32.totalorder %s201, %s203
      %p210 = scmp.eq.s32.totalorder %s36, 1
      %p211 = por %p209, %p210
      %p212 = scmp.ne.s32.totalorder %s203, %s204
      %p213 = scmp.eq.s32.totalorder %s36, 0
      %p214 = por %p212, %p213
      %p215 = scmp.ne.s32.totalorder %s203, %s204
      %p216 = scmp.eq.s32.totalorder %s37, 1
      %p217 = por %p215, %p216
      %p219 = scmp.ne.s32.totalorder %s204, %s218
      %p220 = scmp.eq.s32.totalorder %s37, 0
      %p221 = por %p219, %p220
      %s222 = ssub.s32 %s39, %s46
      %p223 = scmp.eq.s32.totalorder %s222, 0
      %s225 = sadd.s32 %s224, 1
      %s226 = scalar_select %p223, %s224, %s225
      %p229 = pneg %p223
      %p230 = scmp.eq.s32.totalorder %s31, 1
      %p231 = por %p229, %p230
      %p232 = scmp.ne.s32.totalorder %s224, %s227
      %p233 = scmp.eq.s32.totalorder %s31, 0
      %p234 = por %p232, %p233
      %p235 = scmp.ne.s32.totalorder %s224, %s227
      %p236 = scmp.eq.s32.totalorder %s36, 1
      %p237 = por %p235, %p236
      %p238 = scmp.ne.s32.totalorder %s227, %s228
      %p239 = scmp.eq.s32.totalorder %s36, 0
      %p240 = por %p238, %p239
      %p241 = scmp.ne.s32.totalorder %s227, %s228
      %p242 = scmp.eq.s32.totalorder %s37, 1
      %p243 = por %p241, %p242
      %p245 = scmp.ne.s32.totalorder %s228, %s244
      %p246 = scmp.eq.s32.totalorder %s37, 0
      %p247 = por %p245, %p246
      %s248 = ssub.s32 %s39, %s46
      %p249 = scmp.eq.s32.totalorder %s248, 0
      %s251 = sadd.s32 %s250, 1
      %s252 = scalar_select %p249, %s250, %s251
      %p255 = pneg %p249
      %p256 = scmp.eq.s32.totalorder %s31, 1
      %p257 = por %p255, %p256
      %p258 = scmp.ne.s32.totalorder %s250, %s253
      %p259 = scmp.eq.s32.totalorder %s31, 0
      %p260 = por %p258, %p259
      %p261 = scmp.ne.s32.totalorder %s250, %s253
      %p262 = scmp.eq.s32.totalorder %s36, 1
      %p263 = por %p261, %p262
      %p264 = scmp.ne.s32.totalorder %s253, %s254
      %p265 = scmp.eq.s32.totalorder %s36, 0
      %p266 = por %p264, %p265
      %p267 = scmp.ne.s32.totalorder %s253, %s254
      %p268 = scmp.eq.s32.totalorder %s37, 1
      %p269 = por %p267, %p268
      %p271 = scmp.ne.s32.totalorder %s254, %s270
      %p272 = scmp.eq.s32.totalorder %s37, 0
      %p273 = por %p271, %p272
      %s274 = ssub.s32 %s39, %s46
      %p275 = scmp.eq.s32.totalorder %s274, 0
      %s277 = sadd.s32 %s276, 1
      %s278 = scalar_select %p275, %s276, %s277
      %p281 = pneg %p275
      %p282 = scmp.eq.s32.totalorder %s31, 1
      %p283 = por %p281, %p282
      %p284 = scmp.ne.s32.totalorder %s276, %s279
      %p285 = scmp.eq.s32.totalorder %s31, 0
      %p286 = por %p284, %p285
      %p287 = scmp.ne.s32.totalorder %s276, %s279
      %p288 = scmp.eq.s32.totalorder %s36, 1
      %p289 = por %p287, %p288
      %p290 = scmp.ne.s32.totalorder %s279, %s280
      %p291 = scmp.eq.s32.totalorder %s36, 0
      %p292 = por %p290, %p291
      %p293 = scmp.ne.s32.totalorder %s279, %s280
      %p294 = scmp.eq.s32.totalorder %s37, 1
      %p295 = por %p293, %p294
      %p297 = scmp.ne.s32.totalorder %s280, %s296
      %p298 = scmp.eq.s32.totalorder %s37, 0
      %p299 = por %p297, %p298
      %s300 = ssub.s32 %s39, %s46
      %p301 = scmp.eq.s32.totalorder %s300, 0
      %s303 = sadd.s32 %s302, 1
      %s304 = scalar_select %p301, %s302, %s303
      %p307 = pneg %p301
      %p308 = scmp.eq.s32.totalorder %s31, 1
      %p309 = por %p307, %p308
      %p310 = scmp.ne.s32.totalorder %s302, %s305
      %p311 = scmp.eq.s32.totalorder %s31, 0
      %p312 = por %p310, %p311
      %p313 = scmp.ne.s32.totalorder %s302, %s305
      %p314 = scmp.eq.s32.totalorder %s36, 1
      %p315 = por %p313, %p314
      %p316 = scmp.ne.s32.totalorder %s305, %s306
      %p317 = scmp.eq.s32.totalorder %s36, 0
      %p318 = por %p316, %p317
      %p319 = scmp.ne.s32.totalorder %s305, %s306
      %p320 = scmp.eq.s32.totalorder %s37, 1
      %p321 = por %p319, %p320
      %p323 = scmp.ne.s32.totalorder %s306, %s322
      %p324 = scmp.eq.s32.totalorder %s37, 0
      %p325 = por %p323, %p324
      %s326 = ssub.s32 %s39, %s46
      %p327 = scmp.eq.s32.totalorder %s326, 0
      %s329 = sadd.s32 %s328, 1
      %s330 = scalar_select %p327, %s328, %s329
      %p333 = pneg %p327
      %p334 = scmp.eq.s32.totalorder %s31, 1
      %p335 = por %p333, %p334
      %p336 = scmp.ne.s32.totalorder %s328, %s331
      %p337 = scmp.eq.s32.totalorder %s31, 0
      %p338 = por %p336, %p337
      %p339 = scmp.ne.s32.totalorder %s328, %s331
      %p340 = scmp.eq.s32.totalorder %s36, 1
      %p341 = por %p339, %p340
      %p342 = scmp.ne.s32.totalorder %s331, %s332
      %p343 = scmp.eq.s32.totalorder %s36, 0
      %p344 = por %p342, %p343
      %p345 = scmp.ne.s32.totalorder %s331, %s332
      %p346 = scmp.eq.s32.totalorder %s37, 1
      %p347 = por %p345, %p346
      %p349 = scmp.ne.s32.totalorder %s332, %s348
      %p350 = scmp.eq.s32.totalorder %s37, 0
      %p351 = por %p349, %p350
      %s352 = ssub.s32 %s39, %s46
      %p353 = scmp.eq.s32.totalorder %s352, 0
      %s355 = sadd.s32 %s354, 1
      %s356 = scalar_select %p353, %s354, %s355
      %p359 = pneg %p353
      %p360 = scmp.eq.s32.totalorder %s31, 1
      %p361 = por %p359, %p360
      %p362 = scmp.ne.s32.totalorder %s354, %s357
      %p363 = scmp.eq.s32.totalorder %s31, 0
      %p364 = por %p362, %p363
      %p365 = scmp.ne.s32.totalorder %s354, %s357
      %p366 = scmp.eq.s32.totalorder %s36, 1
      %p367 = por %p365, %p366
      %p368 = scmp.ne.s32.totalorder %s357, %s358
      %p369 = scmp.eq.s32.totalorder %s36, 0
      %p370 = por %p368, %p369
      %p371 = scmp.ne.s32.totalorder %s357, %s358
      %p372 = scmp.eq.s32.totalorder %s37, 1
      %p373 = por %p371, %p372
      %p375 = scmp.ne.s32.totalorder %s358, %s374
      %p376 = scmp.eq.s32.totalorder %s37, 0
      %p377 = por %p375, %p376
      %s378 = ssub.s32 %s39, %s46
      %p379 = scmp.eq.s32.totalorder %s378, 0
      %s381 = sadd.s32 %s380, 1
      %s382 = scalar_select %p379, %s380, %s381
      %p385 = pneg %p379
      %p386 = scmp.eq.s32.totalorder %s31, 1
      %p387 = por %p385, %p386
      %p388 = scmp.ne.s32.totalorder %s380, %s383
      %p389 = scmp.eq.s32.totalorder %s31, 0
      %p390 = por %p388, %p389
      %p391 = scmp.ne.s32.totalorder %s380, %s383
      %p392 = scmp.eq.s32.totalorder %s36, 1
      %p393 = por %p391, %p392
      %p394 = scmp.ne.s32.totalorder %s383, %s384
      %p395 = scmp.eq.s32.totalorder %s36, 0
      %p396 = por %p394, %p395
      %p397 = scmp.ne.s32.totalorder %s383, %s384
      %p398 = scmp.eq.s32.totalorder %s37, 1
      %p399 = por %p397, %p398
      %p401 = scmp.ne.s32.totalorder %s384, %s400
      %p402 = scmp.eq.s32.totalorder %s37, 0
      %p403 = por %p401, %p402
      %s404 = ssub.s32 %s39, %s46
      %p405 = scmp.eq.s32.totalorder %s404, 0
      %s407 = sadd.s32 %s406, 1
      %s408 = scalar_select %p405, %s406, %s407
      %p411 = pneg %p405
      %p412 = scmp.eq.s32.totalorder %s31, 1
      %p413 = por %p411, %p412
      %p414 = scmp.ne.s32.totalorder %s406, %s409
      %p415 = scmp.eq.s32.totalorder %s31, 0
      %p416 = por %p414, %p415
      %p417 = scmp.ne.s32.totalorder %s406, %s409
      %p418 = scmp.eq.s32.totalorder %s36, 1
      %p419 = por %p417, %p418
      %p420 = scmp.ne.s32.totalorder %s409, %s410
      %p421 = scmp.eq.s32.totalorder %s36, 0
      %p422 = por %p420, %p421
      %p423 = scmp.ne.s32.totalorder %s409, %s410
      %p424 = scmp.eq.s32.totalorder %s37, 1
      %p425 = por %p423, %p424
      %p427 = scmp.ne.s32.totalorder %s410, %s426
      %p428 = scmp.eq.s32.totalorder %s37, 0
      %p429 = por %p427, %p428
      %s430 = ssub.s32 %s39, %s46
      %p431 = scmp.eq.s32.totalorder %s430, 0
      %s433 = sadd.s32 %s432, 1
      %s434 = scalar_select %p431, %s432, %s433
      %p437 = pneg %p431
      %p438 = scmp.eq.s32.totalorder %s31, 1
      %p439 = por %p437, %p438
      %p440 = scmp.ne.s32.totalorder %s432, %s435
      %p441 = scmp.eq.s32.totalorder %s31, 0
      %p442 = por %p440, %p441
      %p443 = scmp.ne.s32.totalorder %s432, %s435
      %p444 = scmp.eq.s32.totalorder %s36, 1
      %p445 = por %p443, %p444
      %p446 = scmp.ne.s32.totalorder %s435, %s436
      %p447 = scmp.eq.s32.totalorder %s36, 0
      %p448 = por %p446, %p447
      %p449 = scmp.ne.s32.totalorder %s435, %s436
      %p450 = scmp.eq.s32.totalorder %s37, 1
      %p451 = por %p449, %p450
      %p453 = scmp.ne.s32.totalorder %s436, %s452
      %p454 = scmp.eq.s32.totalorder %s37, 0
      %p455 = por %p453, %p454
      %s456 = ssub.s32 %s39, %s46
      %p457 = scmp.eq.s32.totalorder %s456, 0
      %s459 = sadd.s32 %s458, 1
      %s460 = scalar_select %p457, %s458, %s459
      %p463 = pneg %p457
      %p464 = scmp.eq.s32.totalorder %s31, 1
      %p465 = por %p463, %p464
      %p466 = scmp.ne.s32.totalorder %s458, %s461
      %p467 = scmp.eq.s32.totalorder %s31, 0
      %p468 = por %p466, %p467
      %p469 = scmp.ne.s32.totalorder %s458, %s461
      %p470 = scmp.eq.s32.totalorder %s36, 1
      %p471 = por %p469, %p470
      %p472 = scmp.ne.s32.totalorder %s461, %s462
      %p473 = scmp.eq.s32.totalorder %s36, 0
      %p474 = por %p472, %p473
      %p475 = scmp.ne.s32.totalorder %s461, %s462
      %p476 = scmp.eq.s32.totalorder %s37, 1
      %p477 = por %p475, %p476
      %p479 = scmp.ne.s32.totalorder %s462, %s478
      %p480 = scmp.eq.s32.totalorder %s37, 0
      %p481 = por %p479, %p480
      %s482 = ssub.s32 %s39, %s46
      %p483 = scmp.eq.s32.totalorder %s482, 0
      %s485 = sadd.s32 %s484, 1
      %s486 = scalar_select %p483, %s484, %s485
      %p489 = pneg %p483
      %p490 = scmp.eq.s32.totalorder %s31, 1
      %p491 = por %p489, %p490
      %p492 = scmp.ne.s32.totalorder %s484, %s487
      %p493 = scmp.eq.s32.totalorder %s31, 0
      %p494 = por %p492, %p493
      %p495 = scmp.ne.s32.totalorder %s484, %s487
      %p496 = scmp.eq.s32.totalorder %s36, 1
      %p497 = por %p495, %p496
      %p498 = scmp.ne.s32.totalorder %s487, %s488
      %p499 = scmp.eq.s32.totalorder %s36, 0
      %p500 = por %p498, %p499
      %p501 = scmp.ne.s32.totalorder %s487, %s488
      %p502 = scmp.eq.s32.totalorder %s37, 1
      %p503 = por %p501, %p502
      %p505 = scmp.ne.s32.totalorder %s488, %s504
      %p506 = scmp.eq.s32.totalorder %s37, 0
      %p507 = por %p505, %p506
      %s508 = ssub.s32 %s39, %s46
      %p509 = scmp.eq.s32.totalorder %s508, 0
      %s511 = sadd.s32 %s510, 1
      %s512 = scalar_select %p509, %s510, %s511
      %p515 = pneg %p509
      %p516 = scmp.eq.s32.totalorder %s31, 1
      %p517 = por %p515, %p516
      %p518 = scmp.ne.s32.totalorder %s510, %s513
      %p519 = scmp.eq.s32.totalorder %s31, 0
      %p520 = por %p518, %p519
      %p521 = scmp.ne.s32.totalorder %s510, %s513
      %p522 = scmp.eq.s32.totalorder %s36, 1
      %p523 = por %p521, %p522
      %p524 = scmp.ne.s32.totalorder %s513, %s514
      %p525 = scmp.eq.s32.totalorder %s36, 0
      %p526 = por %p524, %p525
      %p527 = scmp.ne.s32.totalorder %s513, %s514
      %p528 = scmp.eq.s32.totalorder %s37, 1
      %p529 = por %p527, %p528
      %p531 = scmp.ne.s32.totalorder %s514, %s530
      %p532 = scmp.eq.s32.totalorder %s37, 0
      %p533 = por %p531, %p532
      %s535 = sadd.s32 %s534, 1
      %p538 = scmp.eq.s32.totalorder %s31, 1
      %p539 = scmp.ne.s32.totalorder %s534, %s536
      %p540 = scmp.eq.s32.totalorder %s31, 0
      %p541 = por %p539, %p540
      %p542 = scmp.ne.s32.totalorder %s534, %s536
      %p543 = scmp.eq.s32.totalorder %s36, 1
      %p544 = por %p542, %p543
      %p545 = scmp.ne.s32.totalorder %s536, %s537
      %p546 = scmp.eq.s32.totalorder %s36, 0
      %p547 = por %p545, %p546
      %p548 = scmp.ne.s32.totalorder %s536, %s537
      %p549 = scmp.eq.s32.totalorder %s37, 1
      %p550 = por %p548, %p549
      %p552 = scmp.ne.s32.totalorder %s537, %s551
      %p553 = scmp.eq.s32.totalorder %s37, 0
      %p554 = por %p552, %p553
      %s556 = sadd.s32 %s555, 1
      %p559 = scmp.eq.s32.totalorder %s31, 1
      %p560 = scmp.ne.s32.totalorder %s555, %s557
      %p561 = scmp.eq.s32.totalorder %s31, 0
      %p562 = por %p560, %p561
      %p563 = scmp.ne.s32.totalorder %s555, %s557
      %p564 = scmp.eq.s32.totalorder %s36, 1
      %p565 = por %p563, %p564
      %p566 = scmp.ne.s32.totalorder %s557, %s558
      %p567 = scmp.eq.s32.totalorder %s36, 0
      %p568 = por %p566, %p567
      %p569 = scmp.ne.s32.totalorder %s557, %s558
      %p570 = scmp.eq.s32.totalorder %s37, 1
      %p571 = por %p569, %p570
      %p573 = scmp.ne.s32.totalorder %s558, %s572
      %p574 = scmp.eq.s32.totalorder %s37, 0
      %p575 = por %p573, %p574
      %s577 = sadd.s32 %s576, 1
      %p580 = scmp.eq.s32.totalorder %s31, 1
      %p581 = scmp.ne.s32.totalorder %s576, %s578
      %p582 = scmp.eq.s32.totalorder %s31, 0
      %p583 = por %p581, %p582
      %p584 = scmp.ne.s32.totalorder %s576, %s578
      %p585 = scmp.eq.s32.totalorder %s36, 1
      %p586 = por %p584, %p585
      %p587 = scmp.ne.s32.totalorder %s578, %s579
      %p588 = scmp.eq.s32.totalorder %s36, 0
      %p589 = por %p587, %p588
      %p590 = scmp.ne.s32.totalorder %s578, %s579
      %p591 = scmp.eq.s32.totalorder %s37, 1
      %p592 = por %p590, %p591
      %p594 = scmp.ne.s32.totalorder %s579, %s593
      %p595 = scmp.eq.s32.totalorder %s37, 0
      %p596 = por %p594, %p595
      %s598 = sadd.s32 %s597, 1
      %p601 = scmp.eq.s32.totalorder %s31, 1
      %p602 = scmp.ne.s32.totalorder %s597, %s599
      %p603 = scmp.eq.s32.totalorder %s31, 0
      %p604 = por %p602, %p603
      %p605 = scmp.ne.s32.totalorder %s597, %s599
      %p606 = scmp.eq.s32.totalorder %s36, 1
      %p607 = por %p605, %p606
      %p608 = scmp.ne.s32.totalorder %s599, %s600
      %p609 = scmp.eq.s32.totalorder %s36, 0
      %p610 = por %p608, %p609
      %p611 = scmp.ne.s32.totalorder %s599, %s600
      %p612 = scmp.eq.s32.totalorder %s37, 1
      %p613 = por %p611, %p612
      %p615 = scmp.ne.s32.totalorder %s600, %s614
      %p616 = scmp.eq.s32.totalorder %s37, 0
      %p617 = por %p615, %p616
      %s619 = sadd.s32 %s618, 1
      %p622 = scmp.eq.s32.totalorder %s31, 1
      %p623 = scmp.ne.s32.totalorder %s618, %s620
      %p624 = scmp.eq.s32.totalorder %s31, 0
      %p625 = por %p623, %p624
      %p626 = scmp.ne.s32.totalorder %s618, %s620
      %p627 = scmp.eq.s32.totalorder %s36, 1
      %p628 = por %p626, %p627
      %p629 = scmp.ne.s32.totalorder %s620, %s621
      %p630 = scmp.eq.s32.totalorder %s36, 0
      %p631 = por %p629, %p630
      %p632 = scmp.ne.s32.totalorder %s620, %s621
      %p633 = scmp.eq.s32.totalorder %s37, 1
      %p634 = por %p632, %p633
      %p636 = scmp.ne.s32.totalorder %s621, %s635
      %p637 = scmp.eq.s32.totalorder %s37, 0
      %p638 = por %p636, %p637
      %s639 = ssub.s32 %s38, %s50
      %p640 = scmp.eq.s32.totalorder %s639, 0
      %s642 = sadd.s32 %s641, 1
      %s643 = scalar_select %p640, %s641, %s642
      %p646 = pneg %p640
      %p647 = scmp.eq.s32.totalorder %s31, 1
      %p648 = por %p646, %p647
      %p649 = scmp.ne.s32.totalorder %s641, %s644
      %p650 = scmp.eq.s32.totalorder %s31, 0
      %p651 = por %p649, %p650
      %p652 = scmp.ne.s32.totalorder %s641, %s644
      %p653 = scmp.eq.s32.totalorder %s36, 1
      %p654 = por %p652, %p653
      %p655 = scmp.ne.s32.totalorder %s644, %s645
      %p656 = scmp.eq.s32.totalorder %s36, 0
      %p657 = por %p655, %p656
      %p658 = scmp.ne.s32.totalorder %s644, %s645
      %p659 = scmp.eq.s32.totalorder %s37, 1
      %p660 = por %p658, %p659
      %p662 = scmp.ne.s32.totalorder %s645, %s661
      %p663 = scmp.eq.s32.totalorder %s37, 0
      %p664 = por %p662, %p663
      %p665 = scmp.le.s32.totalorder 1, %s31
      %p666 = scmp.lt.s32.totalorder %s31, 3
      %p667 = pnand %p665, %p666
      %p668 = pneg %p667
      // Predicated region
      $region9: #{_lambda_.1} parent=5 // pred_check
        _
      $region10: #{_lambda_.1} parent=5 // pred_check_branch
        %670 = sbr.rel (%p667) target = $region12
      $region11: #{_lambda_.1} parent=5 // pred_region
        %s671 = ssub.s32 %s31, 1
        // Predicated region
        $region13: #{_lambda_.1} parent=11 // pred_check
          %p672 = pneg %p69
        $region14: #{_lambda_.1} parent=11 // pred_check_branch
          %674 = sbr.rel (%p672) target = $region16
        $region15: #{_lambda_.1} parent=11 // pred_region
          %s675 = smul.u32 2, %s40
          %p676 = scmp.lt.s32.totalorder %s675, 1
          %s677 = scalar_select %p676, %s675, 1
          %s678 = smul.addr %s677, 6
          %s679 = smul.addr %s678, 8
          %s680 = scalar_lea.vmem %s0, %s679
          %s681 = smul.u32 2, %s40
        $region16: #{_lambda_.1} parent=11 // pred_fallthru
          _
        // Predicated region
        $region17: #{_lambda_.1} parent=11 // pred_check
          %p682 = pneg %p90
        $region18: #{_lambda_.1} parent=11 // pred_check_branch
          %684 = sbr.rel (%p682) target = $region20
        $region19: #{_lambda_.1} parent=11 // pred_region
          _
        $region20: #{_lambda_.1} parent=11 // pred_fallthru
          _
        // Predicated region
        $region21: #{_lambda_.1} parent=11 // pred_check
          %p685 = pneg %p116
        $region22: #{_lambda_.1} parent=11 // pred_check_branch
          %687 = sbr.rel (%p685) target = $region24
        $region23: #{_lambda_.1} parent=11 // pred_region
          %s688 = smul.u32 2, %s40
          %p689 = scmp.lt.s32.totalorder %s688, 1
          %s690 = scalar_select %p689, %s688, 1
          %s691 = smul.addr %s690, 8
          %s692 = scalar_lea.vmem %s2, %s691
          %s693 = smul.u32 2, %s40
        $region24: #{_lambda_.1} parent=11 // pred_fallthru
          _
        // Predicated region
        $region25: #{_lambda_.1} parent=11 // pred_check
          %p694 = pneg %p144
        $region26: #{_lambda_.1} parent=11 // pred_check_branch
          %696 = sbr.rel (%p694) target = $region28
        $region27: #{_lambda_.1} parent=11 // pred_region
          %s697 = smul.u32 2, %s40
          %p698 = scmp.lt.s32.totalorder %s697, 1
          %s699 = scalar_select %p698, %s697, 1
          %p700 = scmp.lt.s32.totalorder %s40, 0
          %s701 = scalar_select %p700, %s40, 0
          %s702 = sadd.s32 %s701, %s699
          %s703 = smul.addr %s702, 8
          %s704 = scalar_lea.vmem %s3, %s703
          %s705 = smul.u32 2, %s40
        $region28: #{_lambda_.1} parent=11 // pred_fallthru
          _
        // Predicated region
        $region29: #{_lambda_.1} parent=11 // pred_check
          %p706 = pneg %p172
        $region30: #{_lambda_.1} parent=11 // pred_check_branch
          %708 = sbr.rel (%p706) target = $region32
        $region31: #{_lambda_.1} parent=11 // pred_region
          %p709 = scmp.lt.s32.totalorder %s40, 0
          %s710 = scalar_select %p709, %s40, 0
          %p711 = scmp.lt.s32.totalorder %s40, 0
          %s712 = scalar_select %p711, %s40, 0
          %s713 = sadd.s32 %s712, %s710
          %s714 = smul.addr %s713, 2
          %s715 = scalar_lea.vmem %s4, %s714
        $region32: #{_lambda_.1} parent=11 // pred_fallthru
          _
        // Predicated region
        $region33: #{_lambda_.1} parent=11 // pred_check
          %p716 = pneg %p193
        $region34: #{_lambda_.1} parent=11 // pred_check_branch
          %718 = sbr.rel (%p716) target = $region36
        $region35: #{_lambda_.1} parent=11 // pred_region
          _
        $region36: #{_lambda_.1} parent=11 // pred_fallthru
          _
        // Predicated region
        $region37: #{_lambda_.1} parent=11 // pred_check
          %p719 = pneg %p214
        $region38: #{_lambda_.1} parent=11 // pred_check_branch
          %721 = sbr.rel (%p719) target = $region40
        $region39: #{_lambda_.1} parent=11 // pred_region
          _
        $region40: #{_lambda_.1} parent=11 // pred_fallthru
          _
        // Predicated region
        $region41: #{_lambda_.1} parent=11 // pred_check
          %p722 = pneg %p547
        $region42: #{_lambda_.1} parent=11 // pred_check_branch
          %724 = sbr.rel (%p722) target = $region44
        $region43: #{_lambda_.1} parent=11 // pred_region
          _
        $region44: #{_lambda_.1} parent=11 // pred_fallthru
          _
        // Predicated region
        $region45: #{_lambda_.1} parent=11 // pred_check
          %p725 = pneg %p568
        $region46: #{_lambda_.1} parent=11 // pred_check_branch
          %727 = sbr.rel (%p725) target = $region48
        $region47: #{_lambda_.1} parent=11 // pred_region
          _
        $region48: #{_lambda_.1} parent=11 // pred_fallthru
          _
        // Predicated region
        $region49: #{_lambda_.1} parent=11 // pred_check
          %p728 = pneg %p589
        $region50: #{_lambda_.1} parent=11 // pred_check_branch
          %730 = sbr.rel (%p728) target = $region52
        $region51: #{_lambda_.1} parent=11 // pred_region
          _
        $region52: #{_lambda_.1} parent=11 // pred_fallthru
          _
        // Predicated region
        $region53: #{_lambda_.1} parent=11 // pred_check
          %p731 = pneg %p610
        $region54: #{_lambda_.1} parent=11 // pred_check_branch
          %733 = sbr.rel (%p731) target = $region56
        $region55: #{_lambda_.1} parent=11 // pred_region
          _
        $region56: #{_lambda_.1} parent=11 // pred_fallthru
          _
        // Predicated region
        $region57: #{_lambda_.1} parent=11 // pred_check
          %p734 = pneg %p631
        $region58: #{_lambda_.1} parent=11 // pred_check_branch
          %736 = sbr.rel (%p734) target = $region60
        $region59: #{_lambda_.1} parent=11 // pred_region
          _
        $region60: #{_lambda_.1} parent=11 // pred_fallthru
          _
      $region12: #{_lambda_.1} parent=5 // pred_fallthru
        _
      %p737 = scmp.lt.s32.totalorder %s31, 2
      // Predicated region
      $region61: #{_lambda_.1} parent=5 // pred_check
        %p738 = pneg %p737
      $region62: #{_lambda_.1} parent=5 // pred_check_branch
        %740 = sbr.rel (%p738) target = $region64
      $region63: #{_lambda_.1} parent=5 // pred_region
        // Predicated region
        $region65: #{_lambda_.1} parent=63 // pred_check
          %p741 = pneg %p234
        $region66: #{_lambda_.1} parent=63 // pred_check_branch
          %743 = sbr.rel (%p741) target = $region68
        $region67: #{_lambda_.1} parent=63 // pred_region
          %p744 = scmp.lt.s32.totalorder %s39, 1
          %s745 = scalar_select %p744, %s39, 1
          %s746 = scalar_lea.vmem %s7, %s745
        $region68: #{_lambda_.1} parent=63 // pred_fallthru
          _
        // Predicated region
        $region69: #{_lambda_.1} parent=63 // pred_check
          %p747 = pneg %p260
        $region70: #{_lambda_.1} parent=63 // pred_check_branch
          %749 = sbr.rel (%p747) target = $region72
        $region71: #{_lambda_.1} parent=63 // pred_region
          %p750 = scmp.lt.s32.totalorder %s39, 1
          %s751 = scalar_select %p750, %s39, 1
          %s752 = scalar_lea.vmem %s8, %s751
        $region72: #{_lambda_.1} parent=63 // pred_fallthru
          _
        // Predicated region
        $region73: #{_lambda_.1} parent=63 // pred_check
          %p753 = pneg %p286
        $region74: #{_lambda_.1} parent=63 // pred_check_branch
          %755 = sbr.rel (%p753) target = $region76
        $region75: #{_lambda_.1} parent=63 // pred_region
          %p756 = scmp.lt.s32.totalorder %s39, 1
          %s757 = scalar_select %p756, %s39, 1
          %s758 = smul.addr %s757, 48
          %s759 = smul.addr %s758, 4
          %s760 = scalar_lea.vmem %s9, %s759
        $region76: #{_lambda_.1} parent=63 // pred_fallthru
          _
        // Predicated region
        $region77: #{_lambda_.1} parent=63 // pred_check
          %p761 = pneg %p312
        $region78: #{_lambda_.1} parent=63 // pred_check_branch
          %763 = sbr.rel (%p761) target = $region80
        $region79: #{_lambda_.1} parent=63 // pred_region
          %p764 = scmp.lt.s32.totalorder %s39, 1
          %s765 = scalar_select %p764, %s39, 1
          %s766 = smul.addr %s765, 3
          %s767 = scalar_lea.vmem %s10, %s766
        $region80: #{_lambda_.1} parent=63 // pred_fallthru
          _
        // Predicated region
        $region81: #{_lambda_.1} parent=63 // pred_check
          %p768 = pneg %p338
        $region82: #{_lambda_.1} parent=63 // pred_check_branch
          %770 = sbr.rel (%p768) target = $region84
        $region83: #{_lambda_.1} parent=63 // pred_region
          %p771 = scmp.lt.s32.totalorder %s39, 1
          %s772 = scalar_select %p771, %s39, 1
          %s773 = smul.addr %s772, 16
          %s774 = smul.addr %s773, 4
          %s775 = scalar_lea.vmem %s11, %s774
        $region84: #{_lambda_.1} parent=63 // pred_fallthru
          _
        // Predicated region
        $region85: #{_lambda_.1} parent=63 // pred_check
          %p776 = pneg %p364
        $region86: #{_lambda_.1} parent=63 // pred_check_branch
          %778 = sbr.rel (%p776) target = $region88
        $region87: #{_lambda_.1} parent=63 // pred_region
          %p779 = scmp.lt.s32.totalorder %s39, 1
          %s780 = scalar_select %p779, %s39, 1
          %s781 = scalar_lea.vmem %s12, %s780
        $region88: #{_lambda_.1} parent=63 // pred_fallthru
          _
        // Predicated region
        $region89: #{_lambda_.1} parent=63 // pred_check
          %p782 = pneg %p390
        $region90: #{_lambda_.1} parent=63 // pred_check_branch
          %784 = sbr.rel (%p782) target = $region92
        $region91: #{_lambda_.1} parent=63 // pred_region
          %p785 = scmp.lt.s32.totalorder %s39, 1
          %s786 = scalar_select %p785, %s39, 1
          %s787 = scalar_lea.vmem %s13, %s786
        $region92: #{_lambda_.1} parent=63 // pred_fallthru
          _
        // Predicated region
        $region93: #{_lambda_.1} parent=63 // pred_check
          %p788 = pneg %p416
        $region94: #{_lambda_.1} parent=63 // pred_check_branch
          %790 = sbr.rel (%p788) target = $region96
        $region95: #{_lambda_.1} parent=63 // pred_region
          %p791 = scmp.lt.s32.totalorder %s39, 1
          %s792 = scalar_select %p791, %s39, 1
          %s793 = scalar_lea.vmem %s14, %s792
        $region96: #{_lambda_.1} parent=63 // pred_fallthru
          _
        // Predicated region
        $region97: #{_lambda_.1} parent=63 // pred_check
          %p794 = pneg %p442
        $region98: #{_lambda_.1} parent=63 // pred_check_branch
          %796 = sbr.rel (%p794) target = $region100
        $region99: #{_lambda_.1} parent=63 // pred_region
          %p797 = scmp.lt.s32.totalorder %s39, 1
          %s798 = scalar_select %p797, %s39, 1
          %s799 = smul.addr %s798, 64
          %s800 = smul.addr %s799, 4
          %s801 = scalar_lea.vmem %s15, %s800
        $region100: #{_lambda_.1} parent=63 // pred_fallthru
          _
        // Predicated region
        $region101: #{_lambda_.1} parent=63 // pred_check
          %p802 = pneg %p468
        $region102: #{_lambda_.1} parent=63 // pred_check_branch
          %804 = sbr.rel (%p802) target = $region104
        $region103: #{_lambda_.1} parent=63 // pred_region
          %p805 = scmp.lt.s32.totalorder %s39, 1
          %s806 = scalar_select %p805, %s39, 1
          %s807 = smul.addr %s806, 4
          %s808 = scalar_lea.vmem %s16, %s807
        $region104: #{_lambda_.1} parent=63 // pred_fallthru
          _
        // Predicated region
        $region105: #{_lambda_.1} parent=63 // pred_check
          %p809 = pneg %p494
        $region106: #{_lambda_.1} parent=63 // pred_check_branch
          %811 = sbr.rel (%p809) target = $region108
        $region107: #{_lambda_.1} parent=63 // pred_region
          %p812 = scmp.lt.s32.totalorder %s39, 1
          %s813 = scalar_select %p812, %s39, 1
          %s814 = smul.addr %s813, 64
          %s815 = smul.addr %s814, 4
          %s816 = scalar_lea.vmem %s17, %s815
        $region108: #{_lambda_.1} parent=63 // pred_fallthru
          _
        // Predicated region
        $region109: #{_lambda_.1} parent=63 // pred_check
          %p817 = pneg %p520
        $region110: #{_lambda_.1} parent=63 // pred_check_branch
          %819 = sbr.rel (%p817) target = $region112
        $region111: #{_lambda_.1} parent=63 // pred_region
          %p820 = scmp.lt.s32.totalorder %s39, 1
          %s821 = scalar_select %p820, %s39, 1
          %s822 = scalar_lea.vmem %s18, %s821
        $region112: #{_lambda_.1} parent=63 // pred_fallthru
          _
      $region64: #{_lambda_.1} parent=5 // pred_fallthru
        _
      %p823 = scmp.le.s32.totalorder 1, %s31
      %p824 = scmp.lt.s32.totalorder %s31, 3
      %p825 = pnand %p823, %p824
      %p826 = pneg %p825
      // Predicated region
      $region113: #{_lambda_.1} parent=5 // pred_check
        _
      $region114: #{_lambda_.1} parent=5 // pred_check_branch
        %828 = sbr.rel (%p825) target = $region116
      $region115: #{_lambda_.1} parent=5 // pred_region
        %s829 = ssub.s32 %s31, 1
        %s830 = smul.u32 2, %s40
        %p831 = scmp.lt.s32.totalorder %s830, 1
        %s832 = scalar_select %p831, %s830, 1
        %s833 = smul.addr %s832, 6
        %s834 = smul.addr %s833, 8
        %s835 = scalar_lea.vmem %s0, %s834
        %p836 = pneg %p69
        %p837 = pneg %p66
        %p838 = pneg %p90
        %p839 = pneg %p87
        %s840 = smul.u32 2, %s40
        %p841 = scmp.lt.s32.totalorder %s840, 1
        %s842 = scalar_select %p841, %s840, 1
        %s843 = smul.addr %s842, 8
        %s844 = scalar_lea.vmem %s2, %s843
        %p845 = pneg %p116
        %p846 = pneg %p113
        %s847 = smul.u32 2, %s40
        %p848 = scmp.lt.s32.totalorder %s847, 1
        %s849 = scalar_select %p848, %s847, 1
        %p850 = scmp.lt.s32.totalorder %s40, 0
        %s851 = scalar_select %p850, %s40, 0
        %s852 = sadd.s32 %s851, %s849
        %s853 = smul.addr %s852, 8
        %s854 = scalar_lea.vmem %s3, %s853
        %p855 = pneg %p144
        %p856 = pneg %p141
        %p857 = scmp.lt.s32.totalorder %s40, 0
        %s858 = scalar_select %p857, %s40, 0
        %p859 = scmp.lt.s32.totalorder %s40, 0
        %s860 = scalar_select %p859, %s40, 0
        %s861 = sadd.s32 %s860, %s858
        %s862 = smul.addr %s861, 2
        %s863 = scalar_lea.vmem %s4, %s862
        %p864 = pneg %p172
        %p865 = pneg %p169
        %p866 = pneg %p193
        %p867 = pneg %p190
        %p868 = pneg %p214
        %p869 = pneg %p211
        %p870 = scmp.lt.s32.totalorder %s41, 1
        %s871 = scalar_select %p870, %s41, 1
        %s872 = scalar_lea.vmem %s7, %s871
        %p873 = pneg %p240
        %p874 = pneg %p237
        %p875 = scmp.lt.s32.totalorder %s41, 1
        %s876 = scalar_select %p875, %s41, 1
        %s877 = scalar_lea.vmem %s8, %s876
        %p878 = pneg %p266
        %p879 = pneg %p263
        %p880 = scmp.lt.s32.totalorder %s41, 1
        %s881 = scalar_select %p880, %s41, 1
        %s882 = smul.addr %s881, 48
        %s883 = smul.addr %s882, 4
        %s884 = scalar_lea.vmem %s9, %s883
        %p885 = pneg %p292
        %p886 = pneg %p289
        %p887 = scmp.lt.s32.totalorder %s41, 1
        %s888 = scalar_select %p887, %s41, 1
        %s889 = smul.addr %s888, 3
        %s890 = scalar_lea.vmem %s10, %s889
        %p891 = pneg %p318
        %p892 = pneg %p315
        %p893 = scmp.lt.s32.totalorder %s41, 1
        %s894 = scalar_select %p893, %s41, 1
        %s895 = smul.addr %s894, 16
        %s896 = smul.addr %s895, 4
        %s897 = scalar_lea.vmem %s11, %s896
        %p898 = pneg %p344
        %p899 = pneg %p341
        %p900 = scmp.lt.s32.totalorder %s41, 1
        %s901 = scalar_select %p900, %s41, 1
        %s902 = scalar_lea.vmem %s12, %s901
        %p903 = pneg %p370
        %p904 = pneg %p367
        %p905 = scmp.lt.s32.totalorder %s41, 1
        %s906 = scalar_select %p905, %s41, 1
        %s907 = scalar_lea.vmem %s13, %s906
        %p908 = pneg %p396
        %p909 = pneg %p393
        %p910 = scmp.lt.s32.totalorder %s41, 1
        %s911 = scalar_select %p910, %s41, 1
        %s912 = scalar_lea.vmem %s14, %s911
        %p913 = pneg %p422
        %p914 = pneg %p419
        %p915 = scmp.lt.s32.totalorder %s41, 1
        %s916 = scalar_select %p915, %s41, 1
        %s917 = smul.addr %s916, 64
        %s918 = smul.addr %s917, 4
        %s919 = scalar_lea.vmem %s15, %s918
        %p920 = pneg %p448
        %p921 = pneg %p445
        %p922 = scmp.lt.s32.totalorder %s41, 1
        %s923 = scalar_select %p922, %s41, 1
        %s924 = smul.addr %s923, 4
        %s925 = scalar_lea.vmem %s16, %s924
        %p926 = pneg %p474
        %p927 = pneg %p471
        %p928 = scmp.lt.s32.totalorder %s41, 1
        %s929 = scalar_select %p928, %s41, 1
        %s930 = smul.addr %s929, 64
        %s931 = smul.addr %s930, 4
        %s932 = scalar_lea.vmem %s17, %s931
        %p933 = pneg %p500
        %p934 = pneg %p497
        %p935 = scmp.lt.s32.totalorder %s41, 1
        %s936 = scalar_select %p935, %s41, 1
        %s937 = scalar_lea.vmem %s18, %s936
        %p938 = pneg %p526
        %p939 = pneg %p523
        %p940 = pneg %p547
        %p941 = pneg %p544
        %p942 = pneg %p568
        %p943 = pneg %p565
        %p944 = pneg %p589
        %p945 = pneg %p586
        %p946 = pneg %p610
        %p947 = pneg %p607
        %p948 = pneg %p631
        %p949 = pneg %p628
        %p950 = pneg %p657
        %p951 = pneg %p654
        %s952 = smul.u32 2, %s40
        %p953 = scmp.lt.s32.totalorder %s952, 1
        %s954 = scalar_select %p953, %s952, 1
        %s955 = smul.addr %s954, 6
        %s956 = smul.addr %s955, 8
        %s957 = scalar_lea.vmem %s0, %s956
        %s958 = smul.u32 2, %s40
        %s959 = smul.u32 2, %s40
        %p960 = scmp.lt.s32.totalorder %s959, 1
        %s961 = scalar_select %p960, %s959, 1
        %s962 = smul.addr %s961, 8
        %s963 = scalar_lea.vmem %s2, %s962
        %s964 = smul.u32 2, %s40
        %s965 = smul.u32 2, %s40
        %p966 = scmp.lt.s32.totalorder %s965, 1
        %s967 = scalar_select %p966, %s965, 1
        %p968 = scmp.lt.s32.totalorder %s40, 0
        %s969 = scalar_select %p968, %s40, 0
        %s970 = sadd.s32 %s969, %s967
        %s971 = smul.addr %s970, 8
        %s972 = scalar_lea.vmem %s3, %s971
        %s973 = smul.u32 2, %s40
        %p974 = scmp.lt.s32.totalorder %s40, 0
        %s975 = scalar_select %p974, %s40, 0
        %p976 = scmp.lt.s32.totalorder %s40, 0
        %s977 = scalar_select %p976, %s40, 0
        %s978 = sadd.s32 %s977, %s975
        %s979 = smul.addr %s978, 2
        %s980 = scalar_lea.vmem %s4, %s979
        %p981 = scmp.lt.s32.totalorder %s41, 1
        %s982 = scalar_select %p981, %s41, 1
        %s983 = scalar_lea.vmem %s7, %s982
        %p984 = scmp.lt.s32.totalorder %s41, 1
        %s985 = scalar_select %p984, %s41, 1
        %s986 = scalar_lea.vmem %s8, %s985
        %p987 = scmp.lt.s32.totalorder %s41, 1
        %s988 = scalar_select %p987, %s41, 1
        %s989 = smul.addr %s988, 48
        %s990 = smul.addr %s989, 4
        %s991 = scalar_lea.vmem %s9, %s990
        %p992 = scmp.lt.s32.totalorder %s41, 1
        %s993 = scalar_select %p992, %s41, 1
        %s994 = smul.addr %s993, 3
        %s995 = scalar_lea.vmem %s10, %s994
        %p996 = scmp.lt.s32.totalorder %s41, 1
        %s997 = scalar_select %p996, %s41, 1
        %s998 = smul.addr %s997, 16
        %s999 = smul.addr %s998, 4
        %s1000 = scalar_lea.vmem %s11, %s999
        %p1001 = scmp.lt.s32.totalorder %s41, 1
        %s1002 = scalar_select %p1001, %s41, 1
        %s1003 = scalar_lea.vmem %s12, %s1002
        %p1004 = scmp.lt.s32.totalorder %s41, 1
        %s1005 = scalar_select %p1004, %s41, 1
        %s1006 = scalar_lea.vmem %s13, %s1005
        %p1007 = scmp.lt.s32.totalorder %s41, 1
        %s1008 = scalar_select %p1007, %s41, 1
        %s1009 = scalar_lea.vmem %s14, %s1008
        %p1010 = scmp.lt.s32.totalorder %s41, 1
        %s1011 = scalar_select %p1010, %s41, 1
        %s1012 = smul.addr %s1011, 64
        %s1013 = smul.addr %s1012, 4
        %s1014 = scalar_lea.vmem %s15, %s1013
        %p1015 = scmp.lt.s32.totalorder %s41, 1
        %s1016 = scalar_select %p1015, %s41, 1
        %s1017 = smul.addr %s1016, 4
        %s1018 = scalar_lea.vmem %s16, %s1017
        %p1019 = scmp.lt.s32.totalorder %s41, 1
        %s1020 = scalar_select %p1019, %s41, 1
        %s1021 = smul.addr %s1020, 64
        %s1022 = smul.addr %s1021, 4
        %s1023 = scalar_lea.vmem %s17, %s1022
        %p1024 = scmp.lt.s32.totalorder %s41, 1
        %s1025 = scalar_select %p1024, %s41, 1
        %s1026 = scalar_lea.vmem %s18, %s1025
        %p1028 = scmp.eq.s32.totalorder %s41, 0
        // Predicated region
        $region117: #{_lambda_.1} parent=115 // pred_check
          %p1029 = pneg %p1028
        $region118: #{_lambda_.1} parent=115 // pred_check_branch
          %1031 = sbr.rel (%p1029) target = $region120
        $region119: #{_lambda_.1} parent=115 // pred_region
          %v1032 = vld [vmem:[%s957] sm:$0xff]
          %v1033 = vld [vmem:[%s957 + $0x8] sm:$0xff]
          %v1034 = vld [vmem:[%s957 + $0x10] sm:$0xff]
          %v1035 = vld [vmem:[%s957 + $0x18] sm:$0xff]
          %v1036 = vld [vmem:[%s957 + $0x20] sm:$0xff]
          %v1037 = vld [vmem:[%s957 + $0x28] sm:$0xff]
          %v1038 = vld [vmem:[%s957 + $0x30] sm:$0x3]
          %v1039 = vld [vmem:[%s957 + $0x38] sm:$0x3]
          %v1040 = vld [vmem:[%s957 + $0x40] sm:$0x3]
          %v1041 = vld [vmem:[%s957 + $0x48] sm:$0x3]
          %v1042 = vld [vmem:[%s957 + $0x50] sm:$0x3]
          %v1043 = vld [vmem:[%s957 + $0x58] sm:$0x3]
          %v1044 = vpack.c.bf16 %v1038, %v1032
          %v1045 = vpack.c.bf16 %v1039, %v1033
          %v1046 = vpack.c.bf16 %v1040, %v1034
          %v1047 = vpack.c.bf16 %v1041, %v1035
          %v1048 = vpack.c.bf16 %v1042, %v1036
          %v1049 = vpack.c.bf16 %v1043, %v1037
          %v1050 = vld [vmem:[%s1] sm:$0xf]
          %v1051 = vld [vmem:[%s1 + $0x4] sm:$0xf]
          %v1052 = vld [vmem:[%s1 + $0x8] sm:$0xf]
          %v1053 = vld [vmem:[%s1 + $0xc] sm:$0xf]
          %v1054 = vld [vmem:[%s1 + $0x10] sm:$0xf]
          %v1055 = vld [vmem:[%s1 + $0x14] sm:$0xf]
          %v1056 = vld [vmem:[%s1 + $0x18] sm:$0xf]
          %v1057 = vld [vmem:[%s1 + $0x1c] sm:$0xf]
          %v1058 = vld [vmem:[%s1 + $0x20] sm:$0xf]
          %v1059 = vld [vmem:[%s1 + $0x24] sm:$0xf]
          %v1060 = vld [vmem:[%s1 + $0x28] sm:$0xf]
          %v1061 = vld [vmem:[%s1 + $0x2c] sm:$0xf]
          %v1062 = vld [vmem:[%s1 + $0x30] sm:$0xf]
          %v1063 = vld [vmem:[%s1 + $0x34] sm:$0xf]
          %v1064 = vld [vmem:[%s1 + $0x38] sm:$0xf]
          %v1065 = vld [vmem:[%s1 + $0x3c] sm:$0xf]
          %v1066 = vld [vmem:[%s1 + $0x40] sm:$0xf]
          %v1067 = vld [vmem:[%s1 + $0x44] sm:$0xf]
          %v1068 = vld [vmem:[%s1 + $0x48] sm:$0xf]
          %v1069 = vld [vmem:[%s1 + $0x4c] sm:$0xf]
          %v1070 = vld [vmem:[%s1 + $0x50] sm:$0xf]
          %v1071 = vld [vmem:[%s1 + $0x54] sm:$0xf]
          %v1072 = vld [vmem:[%s1 + $0x58] sm:$0xf]
          %v1073 = vld [vmem:[%s1 + $0x5c] sm:$0xf]
          %v1074 = vld [vmem:[%s1 + $0x60] sm:$0xf]
          %v1075 = vld [vmem:[%s1 + $0x64] sm:$0xf]
          %v1076 = vld [vmem:[%s1 + $0x68] sm:$0xf]
          %v1077 = vld [vmem:[%s1 + $0x6c] sm:$0xf]
          %v1078 = vld [vmem:[%s1 + $0x70] sm:$0xf]
          %v1079 = vld [vmem:[%s1 + $0x74] sm:$0xf]
          %v1080 = vld [vmem:[%s1 + $0x78] sm:$0xf]
          %v1081 = vld [vmem:[%s1 + $0x7c] sm:$0xf]
          %v1082 = vld [vmem:[%s1 + $0x80] sm:$0xf]
          %v1083 = vld [vmem:[%s1 + $0x84] sm:$0xf]
          %v1084 = vld [vmem:[%s1 + $0x88] sm:$0xf]
          %v1085 = vld [vmem:[%s1 + $0x8c] sm:$0xf]
          %v1086 = vld [vmem:[%s1 + $0x90] sm:$0xf]
          %v1087 = vld [vmem:[%s1 + $0x94] sm:$0xf]
          %v1088 = vld [vmem:[%s1 + $0x98] sm:$0xf]
          %v1089 = vld [vmem:[%s1 + $0x9c] sm:$0xf]
          %v1090 = vld [vmem:[%s1 + $0xa0] sm:$0xf]
          %v1091 = vld [vmem:[%s1 + $0xa4] sm:$0xf]
          %v1092 = vld [vmem:[%s1 + $0xa8] sm:$0xf]
          %v1093 = vld [vmem:[%s1 + $0xac] sm:$0xf]
          %v1094 = vld [vmem:[%s1 + $0xb0] sm:$0xf]
          %v1095 = vld [vmem:[%s1 + $0xb4] sm:$0xf]
          %v1096 = vld [vmem:[%s1 + $0xb8] sm:$0xf]
          %v1097 = vld [vmem:[%s1 + $0xbc] sm:$0xf]
          %v1098 = vld [vmem:[%s1 + $0xc0] sm:$0xf]
          %v1099 = vld [vmem:[%s1 + $0xc4] sm:$0xf]
          %v1100 = vld [vmem:[%s1 + $0xc8] sm:$0xf]
          %v1101 = vld [vmem:[%s1 + $0xcc] sm:$0xf]
          %v1102 = vld [vmem:[%s1 + $0xd0] sm:$0xf]
          %v1103 = vld [vmem:[%s1 + $0xd4] sm:$0xf]
          %v1104 = vld [vmem:[%s1 + $0xd8] sm:$0xf]
          %v1105 = vld [vmem:[%s1 + $0xdc] sm:$0xf]
          %v1106 = vld [vmem:[%s1 + $0xe0] sm:$0xf]
          %v1107 = vld [vmem:[%s1 + $0xe4] sm:$0xf]
          %v1108 = vld [vmem:[%s1 + $0xe8] sm:$0xf]
          %v1109 = vld [vmem:[%s1 + $0xec] sm:$0xf]
          %v1110 = vld [vmem:[%s1 + $0xf0] sm:$0xf]
          %v1111 = vld [vmem:[%s1 + $0xf4] sm:$0xf]
          %v1112 = vld [vmem:[%s1 + $0xf8] sm:$0xf]
          %v1113 = vld [vmem:[%s1 + $0xfc] sm:$0xf]
          %v1114 = vld [vmem:[%s1 + $0x100] sm:$0xf]
          %v1115 = vld [vmem:[%s1 + $0x104] sm:$0xf]
          %v1116 = vld [vmem:[%s1 + $0x108] sm:$0xf]
          %v1117 = vld [vmem:[%s1 + $0x10c] sm:$0xf]
          %v1118 = vld [vmem:[%s1 + $0x110] sm:$0xf]
          %v1119 = vld [vmem:[%s1 + $0x114] sm:$0xf]
          %v1120 = vld [vmem:[%s1 + $0x118] sm:$0xf]
          %v1121 = vld [vmem:[%s1 + $0x11c] sm:$0xf]
          %v1122 = vld [vmem:[%s1 + $0x120] sm:$0xf]
          %v1123 = vld [vmem:[%s1 + $0x124] sm:$0xf]
          %v1124 = vld [vmem:[%s1 + $0x128] sm:$0xf]
          %v1125 = vld [vmem:[%s1 + $0x12c] sm:$0xf]
          %v1126 = vld [vmem:[%s1 + $0x130] sm:$0xf]
          %v1127 = vld [vmem:[%s1 + $0x134] sm:$0xf]
          %v1128 = vld [vmem:[%s1 + $0x138] sm:$0xf]
          %v1129 = vld [vmem:[%s1 + $0x13c] sm:$0xf]
          %v1130 = vld [vmem:[%s1 + $0x140] sm:$0xf]
          %v1131 = vld [vmem:[%s1 + $0x144] sm:$0xf]
          %v1132 = vld [vmem:[%s1 + $0x148] sm:$0xf]
          %v1133 = vld [vmem:[%s1 + $0x14c] sm:$0xf]
          %v1134 = vld [vmem:[%s1 + $0x150] sm:$0xf]
          %v1135 = vld [vmem:[%s1 + $0x154] sm:$0xf]
          %v1136 = vld [vmem:[%s1 + $0x158] sm:$0xf]
          %v1137 = vld [vmem:[%s1 + $0x15c] sm:$0xf]
          %v1138 = vld [vmem:[%s1 + $0x160] sm:$0xf]
          %v1139 = vld [vmem:[%s1 + $0x164] sm:$0xf]
          %v1140 = vld [vmem:[%s1 + $0x168] sm:$0xf]
          %v1141 = vld [vmem:[%s1 + $0x16c] sm:$0xf]
          %v1142 = vld [vmem:[%s1 + $0x170] sm:$0xf]
          %v1143 = vld [vmem:[%s1 + $0x174] sm:$0xf]
          %v1144 = vld [vmem:[%s1 + $0x178] sm:$0xf]
          %v1145 = vld [vmem:[%s1 + $0x17c] sm:$0xf]
          %v1146 = vld [vmem:[%s963] sm:$0xff]
          %v1147 = vld [vmem:[%s963 + $0x8] sm:$0x3]
          %v1244 = vunpack.c.l.b16 %v1050
          %v1245 = vunpack.c.l.b16 %v1051
          %v1246 = vunpack.c.l.b16 %v1052
          %v1247 = vunpack.c.l.b16 %v1053
          %v1248 = vunpack.c.l.b16 %v1054
          %v1249 = vunpack.c.l.b16 %v1055
          %v1250 = vunpack.c.l.b16 %v1056
          %v1251 = vunpack.c.l.b16 %v1057
          %v1252 = vunpack.c.l.b16 %v1058
          %v1253 = vunpack.c.l.b16 %v1059
          %v1254 = vunpack.c.l.b16 %v1060
          %v1255 = vunpack.c.l.b16 %v1061
          %v1256 = vunpack.c.l.b16 %v1062
          %v1257 = vunpack.c.l.b16 %v1063
          %v1258 = vunpack.c.l.b16 %v1064
          %v1259 = vunpack.c.l.b16 %v1065
          %v1260 = vunpack.c.l.b16 %v1066
          %v1261 = vunpack.c.l.b16 %v1067
          %v1262 = vunpack.c.l.b16 %v1068
          %v1263 = vunpack.c.l.b16 %v1069
          %v1264 = vunpack.c.l.b16 %v1070
          %v1265 = vunpack.c.l.b16 %v1071
          %v1266 = vunpack.c.l.b16 %v1072
          %v1267 = vunpack.c.l.b16 %v1073
          %v1268 = vunpack.c.l.b16 %v1074
          %v1269 = vunpack.c.l.b16 %v1075
          %v1270 = vunpack.c.l.b16 %v1076
          %v1271 = vunpack.c.l.b16 %v1077
          %v1272 = vunpack.c.l.b16 %v1078
          %v1273 = vunpack.c.l.b16 %v1079
          %v1274 = vunpack.c.l.b16 %v1080
          %v1275 = vunpack.c.l.b16 %v1081
          %v1276 = vunpack.c.l.b16 %v1082
          %v1277 = vunpack.c.l.b16 %v1083
          %v1278 = vunpack.c.l.b16 %v1084
          %v1279 = vunpack.c.l.b16 %v1085
          %v1280 = vunpack.c.l.b16 %v1086
          %v1281 = vunpack.c.l.b16 %v1087
          %v1282 = vunpack.c.l.b16 %v1088
          %v1283 = vunpack.c.l.b16 %v1089
          %v1284 = vunpack.c.l.b16 %v1090
          %v1285 = vunpack.c.l.b16 %v1091
          %v1286 = vunpack.c.l.b16 %v1092
          %v1287 = vunpack.c.l.b16 %v1093
          %v1288 = vunpack.c.l.b16 %v1094
          %v1289 = vunpack.c.l.b16 %v1095
          %v1290 = vunpack.c.l.b16 %v1096
          %v1291 = vunpack.c.l.b16 %v1097
          %v1292 = vunpack.c.l.b16 %v1098
          %v1293 = vunpack.c.l.b16 %v1099
          %v1294 = vunpack.c.l.b16 %v1100
          %v1295 = vunpack.c.l.b16 %v1101
          %v1296 = vunpack.c.l.b16 %v1102
          %v1297 = vunpack.c.l.b16 %v1103
          %v1298 = vunpack.c.l.b16 %v1104
          %v1299 = vunpack.c.l.b16 %v1105
          %v1300 = vunpack.c.l.b16 %v1106
          %v1301 = vunpack.c.l.b16 %v1107
          %v1302 = vunpack.c.l.b16 %v1108
          %v1303 = vunpack.c.l.b16 %v1109
          %v1304 = vunpack.c.l.b16 %v1110
          %v1305 = vunpack.c.l.b16 %v1111
          %v1306 = vunpack.c.l.b16 %v1112
          %v1307 = vunpack.c.l.b16 %v1113
          %v1308 = vunpack.c.l.b16 %v1114
          %v1309 = vunpack.c.l.b16 %v1115
          %v1310 = vunpack.c.l.b16 %v1116
          %v1311 = vunpack.c.l.b16 %v1117
          %v1312 = vunpack.c.l.b16 %v1118
          %v1313 = vunpack.c.l.b16 %v1119
          %v1314 = vunpack.c.l.b16 %v1120
          %v1315 = vunpack.c.l.b16 %v1121
          %v1316 = vunpack.c.l.b16 %v1122
          %v1317 = vunpack.c.l.b16 %v1123
          %v1318 = vunpack.c.l.b16 %v1124
          %v1319 = vunpack.c.l.b16 %v1125
          %v1320 = vunpack.c.l.b16 %v1126
          %v1321 = vunpack.c.l.b16 %v1127
          %v1322 = vunpack.c.l.b16 %v1128
          %v1323 = vunpack.c.l.b16 %v1129
          %v1324 = vunpack.c.l.b16 %v1130
          %v1325 = vunpack.c.l.b16 %v1131
          %v1326 = vunpack.c.l.b16 %v1132
          %v1327 = vunpack.c.l.b16 %v1133
          %v1328 = vunpack.c.l.b16 %v1134
          %v1329 = vunpack.c.l.b16 %v1135
          %v1330 = vunpack.c.l.b16 %v1136
          %v1331 = vunpack.c.l.b16 %v1137
          %v1332 = vunpack.c.l.b16 %v1138
          %v1333 = vunpack.c.l.b16 %v1139
          %v1334 = vunpack.c.l.b16 %v1140
          %v1335 = vunpack.c.l.b16 %v1141
          %v1336 = vunpack.c.l.b16 %v1142
          %v1337 = vunpack.c.l.b16 %v1143
          %v1338 = vunpack.c.l.b16 %v1144
          %v1339 = vunpack.c.l.b16 %v1145
          %v1340 = vpack.c.b16 %v1245, %v1244
          %v1341 = vpack.c.b16 %v1247, %v1246
          %v1342 = vpack.c.b16 %v1249, %v1248
          %v1343 = vpack.c.b16 %v1251, %v1250
          %v1344 = vpack.c.b16 %v1253, %v1252
          %v1345 = vpack.c.b16 %v1255, %v1254
          %v1346 = vpack.c.b16 %v1257, %v1256
          %v1347 = vpack.c.b16 %v1259, %v1258
          %v1348 = vpack.c.b16 %v1261, %v1260
          %v1349 = vpack.c.b16 %v1263, %v1262
          %v1350 = vpack.c.b16 %v1265, %v1264
          %v1351 = vpack.c.b16 %v1267, %v1266
          %v1352 = vpack.c.b16 %v1269, %v1268
          %v1353 = vpack.c.b16 %v1271, %v1270
          %v1354 = vpack.c.b16 %v1273, %v1272
          %v1355 = vpack.c.b16 %v1275, %v1274
          %v1356 = vpack.c.b16 %v1277, %v1276
          %v1357 = vpack.c.b16 %v1279, %v1278
          %v1358 = vpack.c.b16 %v1281, %v1280
          %v1359 = vpack.c.b16 %v1283, %v1282
          %v1360 = vpack.c.b16 %v1285, %v1284
          %v1361 = vpack.c.b16 %v1287, %v1286
          %v1362 = vpack.c.b16 %v1289, %v1288
          %v1363 = vpack.c.b16 %v1291, %v1290
          %v1364 = vpack.c.b16 %v1293, %v1292
          %v1365 = vpack.c.b16 %v1295, %v1294
          %v1366 = vpack.c.b16 %v1297, %v1296
          %v1367 = vpack.c.b16 %v1299, %v1298
          %v1368 = vpack.c.b16 %v1301, %v1300
          %v1369 = vpack.c.b16 %v1303, %v1302
          %v1370 = vpack.c.b16 %v1305, %v1304
          %v1371 = vpack.c.b16 %v1307, %v1306
          %v1372 = vpack.c.b16 %v1309, %v1308
          %v1373 = vpack.c.b16 %v1311, %v1310
          %v1374 = vpack.c.b16 %v1313, %v1312
          %v1375 = vpack.c.b16 %v1315, %v1314
          %v1376 = vpack.c.b16 %v1317, %v1316
          %v1377 = vpack.c.b16 %v1319, %v1318
          %v1378 = vpack.c.b16 %v1321, %v1320
          %v1379 = vpack.c.b16 %v1323, %v1322
          %v1380 = vpack.c.b16 %v1325, %v1324
          %v1381 = vpack.c.b16 %v1327, %v1326
          %v1382 = vpack.c.b16 %v1329, %v1328
          %v1383 = vpack.c.b16 %v1331, %v1330
          %v1384 = vpack.c.b16 %v1333, %v1332
          %v1385 = vpack.c.b16 %v1335, %v1334
          %v1386 = vpack.c.b16 %v1337, %v1336
          %v1387 = vpack.c.b16 %v1339, %v1338
          %1436 = vmatprep.subr.bf16.mxu0 0
          %1437 = vmatpush1.bf16.msra.mxu0 %v1340
          %1438 = vmatprep.subr.bf16.mxu0 0
          %1439 = vmatpush1.bf16.msra.mxu0 %v1341
          %1440 = vmatprep.subr.bf16.mxu0 0
          %1441 = vmatpush1.bf16.msra.mxu0 %v1342
          %1442 = vmatprep.subr.bf16.mxu0 0
          %1443 = vmatpush1.bf16.msra.mxu0 %v1343
          %1444 = vmatprep.subr.bf16.mxu0 0
          %1445 = vmatpush1.bf16.msra.mxu0 %v1344
          %1446 = vmatprep.subr.bf16.mxu0 0
          %1447 = vmatpush1.bf16.msra.mxu0 %v1345
          %1448 = vmatprep.subr.bf16.mxu0 0
          %1449 = vmatpush1.bf16.msra.mxu0 %v1346
          %1450 = vmatprep.subr.bf16.mxu0 0
          %1451 = vmatpush1.bf16.msra.mxu0 %v1347
          %1452 = vmatprep.subr.bf16.mxu0 0
          %1453 = vmatpush1.bf16.msra.mxu0 %v1348
          %1454 = vmatprep.subr.bf16.mxu0 0
          %1455 = vmatpush1.bf16.msra.mxu0 %v1349
          %1456 = vmatprep.subr.bf16.mxu0 0
          %1457 = vmatpush1.bf16.msra.mxu0 %v1350
          %1458 = vmatprep.subr.bf16.mxu0 0
          %1459 = vmatpush1.bf16.msra.mxu0 %v1351
          %1460 = vmatprep.subr.bf16.mxu0 0
          %1461 = vmatpush1.bf16.msra.mxu0 %v1352
          %1462 = vmatprep.subr.bf16.mxu0 0
          %1463 = vmatpush1.bf16.msra.mxu0 %v1353
          %1464 = vmatprep.subr.bf16.mxu0 0
          %1465 = vmatpush1.bf16.msra.mxu0 %v1354
          %1466 = vmatprep.subr.bf16.mxu0 0
          %1467 = vmatpush1.bf16.msra.mxu0 %v1355
          %1468 = vmatprep.mubr.bf16.mxu0 %v1045
          %1469 = vmatmul.mubr.bf16.gmra.mrb[0].mxu0 %v1044
          %v1470 = vpop.f32.mrb[0].mxu0
          %v1471 = vadd.f32 %v1146, %v1470
          %v1472 = vpop.f32.mrb[0].mxu0
          %v1473 = vpop.f32.mrb[0].mxu0
          %v1474 = vadd.f32 %v1147, %v1473
          %v1475 = vpop.f32.mrb[0].mxu0
          %1476 = vdwg.mxu0
          %1477 = vmatprep.subr.bf16.mxu0 0
          %1478 = vmatpush1.bf16.msra.mxu0 %v1356
          %1479 = vmatprep.subr.bf16.mxu0 0
          %1480 = vmatpush1.bf16.msra.mxu0 %v1357
          %1481 = vmatprep.subr.bf16.mxu0 0
          %1482 = vmatpush1.bf16.msra.mxu0 %v1358
          %1483 = vmatprep.subr.bf16.mxu0 0
          %1484 = vmatpush1.bf16.msra.mxu0 %v1359
          %1485 = vmatprep.subr.bf16.mxu0 0
          %1486 = vmatpush1.bf16.msra.mxu0 %v1360
          %1487 = vmatprep.subr.bf16.mxu0 0
          %1488 = vmatpush1.bf16.msra.mxu0 %v1361
          %1489 = vmatprep.subr.bf16.mxu0 0
          %1490 = vmatpush1.bf16.msra.mxu0 %v1362
          %1491 = vmatprep.subr.bf16.mxu0 0
          %1492 = vmatpush1.bf16.msra.mxu0 %v1363
          %1493 = vmatprep.subr.bf16.mxu0 0
          %1494 = vmatpush1.bf16.msra.mxu0 %v1364
          %1495 = vmatprep.subr.bf16.mxu0 0
          %1496 = vmatpush1.bf16.msra.mxu0 %v1365
          %1497 = vmatprep.subr.bf16.mxu0 0
          %1498 = vmatpush1.bf16.msra.mxu0 %v1366
          %1499 = vmatprep.subr.bf16.mxu0 0
          %1500 = vmatpush1.bf16.msra.mxu0 %v1367
          %1501 = vmatprep.subr.bf16.mxu0 0
          %1502 = vmatpush1.bf16.msra.mxu0 %v1368
          %1503 = vmatprep.subr.bf16.mxu0 0
          %1504 = vmatpush1.bf16.msra.mxu0 %v1369
          %1505 = vmatprep.subr.bf16.mxu0 0
          %1506 = vmatpush1.bf16.msra.mxu0 %v1370
          %1507 = vmatprep.subr.bf16.mxu0 0
          %1508 = vmatpush1.bf16.msra.mxu0 %v1371
          %1509 = vmatprep.mubr.bf16.mxu0 %v1047
          %1510 = vmatmul.mubr.bf16.gmra.mrb[0].mxu0 %v1046
          %v1511 = vpop.f32.mrb[0].mxu0
          %v1512 = vadd.f32 %v1471, %v1511
          %v1513 = vpop.f32.mrb[0].mxu0
          %v1514 = vpop.f32.mrb[0].mxu0
          %v1515 = vadd.f32 %v1474, %v1514
          %v1516 = vpop.f32.mrb[0].mxu0
          %1517 = vdwg.mxu0
          %1518 = vmatprep.subr.bf16.mxu0 0
          %1519 = vmatpush1.bf16.msra.mxu0 %v1372
          %1520 = vmatprep.subr.bf16.mxu0 0
          %1521 = vmatpush1.bf16.msra.mxu0 %v1373
          %1522 = vmatprep.subr.bf16.mxu0 0
          %1523 = vmatpush1.bf16.msra.mxu0 %v1374
          %1524 = vmatprep.subr.bf16.mxu0 0
          %1525 = vmatpush1.bf16.msra.mxu0 %v1375
          %1526 = vmatprep.subr.bf16.mxu0 0
          %1527 = vmatpush1.bf16.msra.mxu0 %v1376
          %1528 = vmatprep.subr.bf16.mxu0 0
          %1529 = vmatpush1.bf16.msra.mxu0 %v1377
          %1530 = vmatprep.subr.bf16.mxu0 0
          %1531 = vmatpush1.bf16.msra.mxu0 %v1378
          %1532 = vmatprep.subr.bf16.mxu0 0
          %1533 = vmatpush1.bf16.msra.mxu0 %v1379
          %1534 = vmatprep.subr.bf16.mxu0 0
          %1535 = vmatpush1.bf16.msra.mxu0 %v1380
          %1536 = vmatprep.subr.bf16.mxu0 0
          %1537 = vmatpush1.bf16.msra.mxu0 %v1381
          %1538 = vmatprep.subr.bf16.mxu0 0
          %1539 = vmatpush1.bf16.msra.mxu0 %v1382
          %1540 = vmatprep.subr.bf16.mxu0 0
          %1541 = vmatpush1.bf16.msra.mxu0 %v1383
          %1542 = vmatprep.subr.bf16.mxu0 0
          %1543 = vmatpush1.bf16.msra.mxu0 %v1384
          %1544 = vmatprep.subr.bf16.mxu0 0
          %1545 = vmatpush1.bf16.msra.mxu0 %v1385
          %1546 = vmatprep.subr.bf16.mxu0 0
          %1547 = vmatpush1.bf16.msra.mxu0 %v1386
          %1548 = vmatprep.subr.bf16.mxu0 0
          %1549 = vmatpush1.bf16.msra.mxu0 %v1387
          %1550 = vmatprep.mubr.bf16.mxu0 %v1049
          %1551 = vmatmul.mubr.bf16.gmra.mrb[0].mxu0 %v1048
          %v1552 = vpop.f32.mrb[0].mxu0
          %v1553 = vadd.f32 %v1512, %v1552
          %v1554 = vpop.f32.mrb[0].mxu0
          %v1555 = vpop.f32.mrb[0].mxu0
          %v1556 = vadd.f32 %v1515, %v1555
          %v1557 = vpop.f32.mrb[0].mxu0
          %1558 = vdwg.mxu0
          %v1559 = vld [vmem:[%s5] sm:$0x1]
          %v1560 = vld [vmem:[%s6] sm:$0x1]
          %1561 = vadd.xlane.f32.xlu0 %v1553
          %v1562 = vpop.xlane.xlu0 %1561
          %vm1563 = vcmask 1041408
          %v1564 = vsel %vm1563, %v1556, 0.0
          %1565 = vadd.xlane.f32.xlu0 %v1564
          %v1566 = vpop.xlane.xlu0 %1565
          %v1567 = vrcp.pop 128.0
          %v1568 = vmul.f32 %v1562, %v1567
          %v1569 = vmul.f32 %v1566, %v1567
          %v1570 = vmul.f32 %v1553, %v1553
          %v1571 = vmul.f32 %v1556, %v1556
          %1572 = vadd.xlane.f32.xlu0 %v1570
          %v1573 = vpop.xlane.xlu0 %1572
          %v1574 = vsel %vm1563, %v1571, 0.0
          %1575 = vadd.xlane.f32.xlu0 %v1574
          %v1576 = vpop.xlane.xlu0 %1575
          %v1577 = vmul.f32 %v1573, %v1567
          %v1578 = vmul.f32 %v1576, %v1567
          %v1579 = vmul.f32 %v1568, %v1568
          %v1580 = vmul.f32 %v1569, %v1569
          %v1581 = vsub.f32 %v1577, %v1579
          %v1582 = vsub.f32 %v1578, %v1580
          %v1583 = vsub.f32 %v1553, %v1568
          %v1584 = vsub.f32 %v1556, %v1569
          %v1585 = vadd.f32 %v1581, 1e-05
          %v1586 = vadd.f32 %v1582, 1e-05
          %v1587 = vrsqrt.pop %v1585
          %v1588 = vrsqrt.pop %v1586
          %v1589 = vmul.f32 %v1583, %v1587
          %v1590 = vmul.f32 %v1584, %v1588
          %v1592 = vlaneseq
          %v1593 = vshrl.u32 %v1592, 7
          %v1594 = vsub.s32 0, %v1593
          %v1595 = vrot.slane %v1559, %v1594
          %v1597 = vmul.f32 %v1589, %v1595
          %v1598 = vmul.f32 %v1590, %v1595
          %v1600 = vlaneseq
          %v1601 = vshrl.u32 %v1600, 7
          %v1602 = vsub.s32 0, %v1601
          %v1603 = vrot.slane %v1560, %v1602
          %v1605 = vadd.f32 %v1597, %v1603
          %v1606 = vadd.f32 %v1598, %v1603
          %1607 = vst [vmem:[#allocation2] sm:$0xff] %v1605
          %1608 = vst [vmem:[#allocation2 + $0x8] sm:$0x3] %v1606
        $region120: #{_lambda_.1} parent=115 // pred_fallthru
          _
        %v1609 = vld [vmem:[#allocation2] sm:$0xff]
        %v1610 = vld [vmem:[#allocation2 + $0x8] sm:$0x3]
        %v1611 = vld [vmem:[%s983] sm:$0x1]
        %v1612 = vld [vmem:[%s986] sm:$0x1]
        %1613 = vadd.xlane.f32.xlu0 %v1609
        %v1614 = vpop.xlane.xlu0 %1613
        %vm1615 = vcmask 1041408
        %v1616 = vsel %vm1615, %v1610, 0.0
        %1617 = vadd.xlane.f32.xlu0 %v1616
        %v1618 = vpop.xlane.xlu0 %1617
        %v1619 = vrcp.pop 128.0
        %v1620 = vmul.f32 %v1614, %v1619
        %v1621 = vmul.f32 %v1618, %v1619
        %v1622 = vmul.f32 %v1609, %v1609
        %v1623 = vmul.f32 %v1610, %v1610
        %1624 = vadd.xlane.f32.xlu0 %v1622
        %v1625 = vpop.xlane.xlu0 %1624
        %v1626 = vsel %vm1615, %v1623, 0.0
        %1627 = vadd.xlane.f32.xlu0 %v1626
        %v1628 = vpop.xlane.xlu0 %1627
        %v1629 = vmul.f32 %v1625, %v1619
        %v1630 = vmul.f32 %v1628, %v1619
        %v1631 = vmul.f32 %v1620, %v1620
        %v1632 = vmul.f32 %v1621, %v1621
        %v1633 = vsub.f32 %v1629, %v1631
        %v1634 = vsub.f32 %v1630, %v1632
        %v1635 = vsub.f32 %v1609, %v1620
        %v1636 = vsub.f32 %v1610, %v1621
        %v1637 = vadd.f32 %v1633, 1e-05
        %v1638 = vadd.f32 %v1634, 1e-05
        %v1639 = vrsqrt.pop %v1637
        %v1640 = vrsqrt.pop %v1638
        %v1641 = vmul.f32 %v1635, %v1639
        %v1642 = vmul.f32 %v1636, %v1640
        %v1644 = vlaneseq
        %v1645 = vshrl.u32 %v1644, 7
        %v1646 = vsub.s32 0, %v1645
        %v1647 = vrot.slane %v1611, %v1646
        %v1649 = vmul.f32 %v1641, %v1647
        %v1650 = vmul.f32 %v1642, %v1647
        %v1652 = vlaneseq
        %v1653 = vshrl.u32 %v1652, 7
        %v1654 = vsub.s32 0, %v1653
        %v1655 = vrot.slane %v1612, %v1654
        %v1657 = vadd.f32 %v1649, %v1655
        %v1658 = vadd.f32 %v1650, %v1655
        %v1659 = vpack.c.bf16 %v1658, %v1657
        %v1660 = vld [vmem:[%s991] sm:$0xff]
        %v1661 = vld [vmem:[%s991 + $0x8] sm:$0xf]
        %v1662 = vld [vmem:[%s991 + $0xc] sm:$0xff]
        %v1663 = vld [vmem:[%s991 + $0x14] sm:$0xf]
        %v1664 = vld [vmem:[%s991 + $0x18] sm:$0xff]
        %v1665 = vld [vmem:[%s991 + $0x20] sm:$0xf]
        %v1666 = vld [vmem:[%s991 + $0x24] sm:$0xff]
        %v1667 = vld [vmem:[%s991 + $0x2c] sm:$0xf]
        %v1668 = vld [vmem:[%s991 + $0x30] sm:$0xff]
        %v1669 = vld [vmem:[%s991 + $0x38] sm:$0xf]
        %v1670 = vld [vmem:[%s991 + $0x3c] sm:$0xff]
        %v1671 = vld [vmem:[%s991 + $0x44] sm:$0xf]
        %v1672 = vld [vmem:[%s991 + $0x48] sm:$0xff]
        %v1673 = vld [vmem:[%s991 + $0x50] sm:$0xf]
        %v1674 = vld [vmem:[%s991 + $0x54] sm:$0xff]
        %v1675 = vld [vmem:[%s991 + $0x5c] sm:$0xf]
        %v1676 = vld [vmem:[%s991 + $0x60] sm:$0xff]
        %v1677 = vld [vmem:[%s991 + $0x68] sm:$0xf]
        %v1678 = vld [vmem:[%s991 + $0x6c] sm:$0xff]
        %v1679 = vld [vmem:[%s991 + $0x74] sm:$0xf]
        %v1680 = vld [vmem:[%s991 + $0x78] sm:$0xff]
        %v1681 = vld [vmem:[%s991 + $0x80] sm:$0xf]
        %v1682 = vld [vmem:[%s991 + $0x84] sm:$0xff]
        %v1683 = vld [vmem:[%s991 + $0x8c] sm:$0xf]
        %v1684 = vld [vmem:[%s991 + $0x90] sm:$0xff]
        %v1685 = vld [vmem:[%s991 + $0x98] sm:$0xf]
        %v1686 = vld [vmem:[%s991 + $0x9c] sm:$0xff]
        %v1687 = vld [vmem:[%s991 + $0xa4] sm:$0xf]
        %v1688 = vld [vmem:[%s991 + $0xa8] sm:$0xff]
        %v1689 = vld [vmem:[%s991 + $0xb0] sm:$0xf]
        %v1690 = vld [vmem:[%s991 + $0xb4] sm:$0xff]
        %v1691 = vld [vmem:[%s991 + $0xbc] sm:$0xf]
        %v1692 = vld [vmem:[%s995] sm:$0x7]
        %v1694 = vlaneseq
        %v1695 = vshrl.u32 %v1694, 7
        %v1696 = vsub.s32 0, %v1695
        %v1697 = vrot.slane %v1692, %v1696
        %v1698 = vlaneseq
        %v1699 = vshrl.u32 %v1698, 7
        %v1700 = vsub.s32 1, %v1699
        %v1701 = vrot.slane %v1692, %v1700
        %v1702 = vlaneseq
        %v1703 = vshrl.u32 %v1702, 7
        %v1704 = vsub.s32 2, %v1703
        %v1705 = vrot.slane %v1692, %v1704
        %v1741 = vunpack.c.l.b16 %v1660
        %v1742 = vunpack.c.h.b16 %v1660
        %v1743 = vunpack.c.l.b16 %v1661
        %v1744 = vunpack.c.l.b16 %v1662
        %v1745 = vunpack.c.h.b16 %v1662
        %v1746 = vunpack.c.l.b16 %v1663
        %v1747 = vunpack.c.l.b16 %v1664
        %v1748 = vunpack.c.h.b16 %v1664
        %v1749 = vunpack.c.l.b16 %v1665
        %v1750 = vunpack.c.l.b16 %v1666
        %v1751 = vunpack.c.h.b16 %v1666
        %v1752 = vunpack.c.l.b16 %v1667
        %v1753 = vunpack.c.l.b16 %v1668
        %v1754 = vunpack.c.h.b16 %v1668
        %v1755 = vunpack.c.l.b16 %v1669
        %v1756 = vunpack.c.l.b16 %v1670
        %v1757 = vunpack.c.h.b16 %v1670
        %v1758 = vunpack.c.l.b16 %v1671
        %v1759 = vunpack.c.l.b16 %v1672
        %v1760 = vunpack.c.h.b16 %v1672
        %v1761 = vunpack.c.l.b16 %v1673
        %v1762 = vunpack.c.l.b16 %v1674
        %v1763 = vunpack.c.h.b16 %v1674
        %v1764 = vunpack.c.l.b16 %v1675
        %v1765 = vunpack.c.l.b16 %v1676
        %v1766 = vunpack.c.h.b16 %v1676
        %v1767 = vunpack.c.l.b16 %v1677
        %v1768 = vunpack.c.l.b16 %v1678
        %v1769 = vunpack.c.h.b16 %v1678
        %v1770 = vunpack.c.l.b16 %v1679
        %v1771 = vunpack.c.l.b16 %v1680
        %v1772 = vunpack.c.h.b16 %v1680
        %v1773 = vunpack.c.l.b16 %v1681
        %v1774 = vunpack.c.l.b16 %v1682
        %v1775 = vunpack.c.h.b16 %v1682
        %v1776 = vunpack.c.l.b16 %v1683
        %v1777 = vunpack.c.l.b16 %v1684
        %v1778 = vunpack.c.h.b16 %v1684
        %v1779 = vunpack.c.l.b16 %v1685
        %v1780 = vunpack.c.l.b16 %v1686
        %v1781 = vunpack.c.h.b16 %v1686
        %v1782 = vunpack.c.l.b16 %v1687
        %v1783 = vunpack.c.l.b16 %v1688
        %v1784 = vunpack.c.h.b16 %v1688
        %v1785 = vunpack.c.l.b16 %v1689
        %v1786 = vunpack.c.l.b16 %v1690
        %v1787 = vunpack.c.h.b16 %v1690
        %v1788 = vunpack.c.l.b16 %v1691
        %v1789 = vpack.c.b16 %v1744, %v1741
        %v1790 = vpack.c.b16 %v1745, %v1742
        %v1791 = vpack.c.b16 %v1746, %v1743
        %v1792 = vpack.c.b16 %v1750, %v1747
        %v1793 = vpack.c.b16 %v1751, %v1748
        %v1794 = vpack.c.b16 %v1752, %v1749
        %v1795 = vpack.c.b16 %v1756, %v1753
        %v1796 = vpack.c.b16 %v1757, %v1754
        %v1797 = vpack.c.b16 %v1758, %v1755
        %v1798 = vpack.c.b16 %v1762, %v1759
        %v1799 = vpack.c.b16 %v1763, %v1760
        %v1800 = vpack.c.b16 %v1764, %v1761
        %v1801 = vpack.c.b16 %v1768, %v1765
        %v1802 = vpack.c.b16 %v1769, %v1766
        %v1803 = vpack.c.b16 %v1770, %v1767
        %v1804 = vpack.c.b16 %v1774, %v1771
        %v1805 = vpack.c.b16 %v1775, %v1772
        %v1806 = vpack.c.b16 %v1776, %v1773
        %v1807 = vpack.c.b16 %v1780, %v1777
        %v1808 = vpack.c.b16 %v1781, %v1778
        %v1809 = vpack.c.b16 %v1782, %v1779
        %v1810 = vpack.c.b16 %v1786, %v1783
        %v1811 = vpack.c.b16 %v1787, %v1784
        %v1812 = vpack.c.b16 %v1788, %v1785
        %1837 = vmatprep.subr.bf16.mxu0 %v1790
        %1838 = vmatpush1.bf16.msra.mxu0 %v1789
        %1839 = vmatprep.subr.bf16.mxu0 %v1793
        %1840 = vmatpush1.bf16.msra.mxu0 %v1792
        %1841 = vmatprep.subr.bf16.mxu0 %v1796
        %1842 = vmatpush1.bf16.msra.mxu0 %v1795
        %1843 = vmatprep.subr.bf16.mxu0 %v1799
        %1844 = vmatpush1.bf16.msra.mxu0 %v1798
        %1845 = vmatprep.subr.bf16.mxu0 %v1802
        %1846 = vmatpush1.bf16.msra.mxu0 %v1801
        %1847 = vmatprep.subr.bf16.mxu0 %v1805
        %1848 = vmatpush1.bf16.msra.mxu0 %v1804
        %1849 = vmatprep.subr.bf16.mxu0 %v1808
        %1850 = vmatpush1.bf16.msra.mxu0 %v1807
        %1851 = vmatprep.subr.bf16.mxu0 %v1811
        %1852 = vmatpush1.bf16.msra.mxu0 %v1810
        %1853 = vmatprep.subr.bf16.mxu0 0
        %1854 = vmatpush1.bf16.msra.mxu0 0
        %1855 = vmatprep.subr.bf16.mxu0 0
        %1856 = vmatpush1.bf16.msra.mxu0 0
        %1857 = vmatprep.subr.bf16.mxu0 0
        %1858 = vmatpush1.bf16.msra.mxu0 0
        %1859 = vmatprep.subr.bf16.mxu0 0
        %1860 = vmatpush1.bf16.msra.mxu0 0
        %1861 = vmatprep.subr.bf16.mxu0 0
        %1862 = vmatpush1.bf16.msra.mxu0 0
        %1863 = vmatprep.subr.bf16.mxu0 0
        %1864 = vmatpush1.bf16.msra.mxu0 0
        %1865 = vmatprep.subr.bf16.mxu0 0
        %1866 = vmatpush1.bf16.msra.mxu0 0
        %1867 = vmatprep.subr.bf16.mxu0 0
        %1868 = vmatpush1.bf16.msra.mxu0 0
        %1869 = vmatprep.mubr.bf16.mxu0 0
        %1870 = vmatmul.mubr.bf16.gmra.mrb[0].mxu0 %v1659
        %v1871 = vpop.f32.mrb[0].mxu0
        %v1872 = vadd.f32 %v1697, %v1871
        %v1873 = vpop.f32.mrb[0].mxu0
        %v1874 = vadd.f32 %v1701, %v1873
        %v1875 = vpop.f32.mrb[0].mxu0
        %v1876 = vadd.f32 %v1697, %v1875
        %v1877 = vpop.f32.mrb[0].mxu0
        %v1878 = vadd.f32 %v1701, %v1877
        %1879 = vdwg.mxu0
        %1880 = vmatprep.subr.bf16.mxu0 0
        %1881 = vmatpush1.bf16.msra.mxu0 %v1791
        %1882 = vmatprep.subr.bf16.mxu0 0
        %1883 = vmatpush1.bf16.msra.mxu0 %v1794
        %1884 = vmatprep.subr.bf16.mxu0 0
        %1885 = vmatpush1.bf16.msra.mxu0 %v1797
        %1886 = vmatprep.subr.bf16.mxu0 0
        %1887 = vmatpush1.bf16.msra.mxu0 %v1800
        %1888 = vmatprep.subr.bf16.mxu0 0
        %1889 = vmatpush1.bf16.msra.mxu0 %v1803
        %1890 = vmatprep.subr.bf16.mxu0 0
        %1891 = vmatpush1.bf16.msra.mxu0 %v1806
        %1892 = vmatprep.subr.bf16.mxu0 0
        %1893 = vmatpush1.bf16.msra.mxu0 %v1809
        %1894 = vmatprep.subr.bf16.mxu0 0
        %1895 = vmatpush1.bf16.msra.mxu0 %v1812
        %1896 = vmatprep.subr.bf16.mxu0 0
        %1897 = vmatpush1.bf16.msra.mxu0 0
        %1898 = vmatprep.subr.bf16.mxu0 0
        %1899 = vmatpush1.bf16.msra.mxu0 0
        %1900 = vmatprep.subr.bf16.mxu0 0
        %1901 = vmatpush1.bf16.msra.mxu0 0
        %1902 = vmatprep.subr.bf16.mxu0 0
        %1903 = vmatpush1.bf16.msra.mxu0 0
        %1904 = vmatprep.subr.bf16.mxu0 0
        %1905 = vmatpush1.bf16.msra.mxu0 0
        %1906 = vmatprep.subr.bf16.mxu0 0
        %1907 = vmatpush1.bf16.msra.mxu0 0
        %1908 = vmatprep.subr.bf16.mxu0 0
        %1909 = vmatpush1.bf16.msra.mxu0 0
        %1910 = vmatprep.subr.bf16.mxu0 0
        %1911 = vmatpush1.bf16.msra.mxu0 0
        %1912 = vmatprep.mubr.bf16.mxu0 0
        %1913 = vmatmul.mubr.bf16.gmra.mrb[0].mxu0 %v1659
        %v1914 = vpop.f32.mrb[0].mxu0
        %v1915 = vadd.f32 %v1705, %v1914
        %v1916 = vpop.f32.mrb[0].mxu0
        %v1917 = vpop.f32.mrb[0].mxu0
        %v1918 = vadd.f32 %v1705, %v1917
        %v1919 = vpop.f32.mrb[0].mxu0
        %1920 = vdwg.mxu0
        %v1921 = vmul.f32 %v1872, 0.125
        %v1922 = vmul.f32 %v1876, 0.125
        %v1923 = vpack.c.bf16 %v1922, %v1921
        %v1924 = vpack.c.bf16 %v1878, %v1874
        %v1925 = vpack.c.bf16 %v1918, %v1915
        %v1926 = vld [vmem:[%s972] sm:$0xff]
        %v1927 = vld [vmem:[%s972 + $0x8] sm:$0x3]
        %v1928 = vld [vmem:[%s1000] sm:$0xf]
        %v1929 = vld [vmem:[%s1000 + $0x4] sm:$0xf]
        %v1930 = vld [vmem:[%s1000 + $0x8] sm:$0xf]
        %v1931 = vld [vmem:[%s1000 + $0xc] sm:$0xf]
        %v1932 = vld [vmem:[%s1000 + $0x10] sm:$0xf]
        %v1933 = vld [vmem:[%s1000 + $0x14] sm:$0xf]
        %v1934 = vld [vmem:[%s1000 + $0x18] sm:$0xf]
        %v1935 = vld [vmem:[%s1000 + $0x1c] sm:$0xf]
        %v1936 = vld [vmem:[%s1000 + $0x20] sm:$0xf]
        %v1937 = vld [vmem:[%s1000 + $0x24] sm:$0xf]
        %v1938 = vld [vmem:[%s1000 + $0x28] sm:$0xf]
        %v1939 = vld [vmem:[%s1000 + $0x2c] sm:$0xf]
        %v1940 = vld [vmem:[%s1000 + $0x30] sm:$0xf]
        %v1941 = vld [vmem:[%s1000 + $0x34] sm:$0xf]
        %v1942 = vld [vmem:[%s1000 + $0x38] sm:$0xf]
        %v1943 = vld [vmem:[%s1000 + $0x3c] sm:$0xf]
        %vm1944 = vcmask 523264
        %v1946 = vsel %vm1944, %v1923, 0
        %v1949 = vsel %vm1944, %v1924, 0
        %1951 = vmatprep.subr.bf16.mxu0 0
        %1952 = vmatpush1.bf16.xpose.msra.mxu0 %v1949
        %1953 = vmatprep.subr.bf16.mxu0 0
        %1954 = vmatpush1.bf16.xpose.msra.mxu0 0
        %1955 = vmatprep.subr.bf16.mxu0 0
        %1956 = vmatpush1.bf16.xpose.msra.mxu0 0
        %1957 = vmatprep.subr.bf16.mxu0 0
        %1958 = vmatpush1.bf16.xpose.msra.mxu0 0
        %1959 = vmatprep.subr.bf16.mxu0 0
        %1960 = vmatpush1.bf16.xpose.msra.mxu0 0
        %1961 = vmatprep.subr.bf16.mxu0 0
        %1962 = vmatpush1.bf16.xpose.msra.mxu0 0
        %1963 = vmatprep.subr.bf16.mxu0 0
        %1964 = vmatpush1.bf16.xpose.msra.mxu0 0
        %1965 = vmatprep.subr.bf16.mxu0 0
        %1966 = vmatpush1.bf16.xpose.msra.mxu0 0
        %1967 = vmatprep.subr.bf16.mxu0 0
        %1968 = vmatpush1.bf16.xpose.msra.mxu0 0
        %1969 = vmatprep.subr.bf16.mxu0 0
        %1970 = vmatpush1.bf16.xpose.msra.mxu0 0
        %1971 = vmatprep.subr.bf16.mxu0 0
        %1972 = vmatpush1.bf16.xpose.msra.mxu0 0
        %1973 = vmatprep.subr.bf16.mxu0 0
        %1974 = vmatpush1.bf16.xpose.msra.mxu0 0
        %1975 = vmatprep.subr.bf16.mxu0 0
        %1976 = vmatpush1.bf16.xpose.msra.mxu0 0
        %1977 = vmatprep.subr.bf16.mxu0 0
        %1978 = vmatpush1.bf16.xpose.msra.mxu0 0
        %1979 = vmatprep.subr.bf16.mxu0 0
        %1980 = vmatpush1.bf16.xpose.msra.mxu0 0
        %1981 = vmatprep.subr.bf16.mxu0 0
        %1982 = vmatpush1.bf16.xpose.msra.mxu0 0
        %1983 = vmatprep.mubr.bf16.mxu0 0
        %1984 = vmatmul.mubr.bf16.gmra.mrb[0].mxu0 %v1946
        %v1985 = vpop.f32.mrb[0].mxu0
        %v1986 = vadd.f32 %v1926, %v1985
        %v1987 = vpop.f32.mrb[0].mxu0
        %v1988 = vpop.f32.mrb[0].mxu0
        %v1989 = vadd.f32 %v1927, %v1988
        %v1990 = vpop.f32.mrb[0].mxu0
        %1991 = vdwg.mxu0
        %vm1992 = vcmask 80896
        %v1993 = vsel %vm1992, %v1986, -inf
        %1994 = vmax.xlane.f32.xlu0 %v1993
        %v1995 = vpop.xlane.xlu0 %1994
        %vm1996 = vcmask 74752
        %v1997 = vsel %vm1996, %v1989, -inf
        %1998 = vmax.xlane.f32.xlu0 %v1997
        %v1999 = vpop.xlane.xlu0 %1998
        %v2000 = vsub.f32 %v1986, %v1995
        %v2001 = vsub.f32 %v1989, %v1999
        %v2002 = vmul.f32 %v2000, 1.442695
        %v2003 = vpow.pop %v2002
        %v2004 = vmul.f32 %v2001, 1.442695
        %v2005 = vpow.pop %v2004
        %v2006 = vsel %vm1992, %v2003, 0.0
        %2007 = vadd.xlane.f32.xlu0 %v2006
        %v2008 = vpop.xlane.xlu0 %2007
        %v2009 = vsel %vm1996, %v2005, 0.0
        %2010 = vadd.xlane.f32.xlu0 %v2009
        %v2011 = vpop.xlane.xlu0 %2010
        %v2012 = vrcp.pop %v2008
        %v2013 = vmul.f32 %v2003, %v2012
        %v2014 = vrcp.pop %v2011
        %v2015 = vmul.f32 %v2005, %v2014
        %v2016 = vpack.c.bf16 %v2015, %v2013
        %v2018 = vsel %vm1992, %v2016, 0
        %vm2020 = vcmask 1044480
        %v2022 = vsel %vm2020, %v1925, 0
        %2024 = vmatprep.subr.bf16.mxu0 0
        %2025 = vmatpush1.bf16.msra.mxu0 %v2022
        %2026 = vmatprep.subr.bf16.mxu0 0
        %2027 = vmatpush1.bf16.msra.mxu0 0
        %2028 = vmatprep.subr.bf16.mxu0 0
        %2029 = vmatpush1.bf16.msra.mxu0 0
        %2030 = vmatprep.subr.bf16.mxu0 0
        %2031 = vmatpush1.bf16.msra.mxu0 0
        %2032 = vmatprep.subr.bf16.mxu0 0
        %2033 = vmatpush1.bf16.msra.mxu0 0
        %2034 = vmatprep.subr.bf16.mxu0 0
        %2035 = vmatpush1.bf16.msra.mxu0 0
        %2036 = vmatprep.subr.bf16.mxu0 0
        %2037 = vmatpush1.bf16.msra.mxu0 0
        %2038 = vmatprep.subr.bf16.mxu0 0
        %2039 = vmatpush1.bf16.msra.mxu0 0
        %2040 = vmatprep.subr.bf16.mxu0 0
        %2041 = vmatpush1.bf16.msra.mxu0 0
        %2042 = vmatprep.subr.bf16.mxu0 0
        %2043 = vmatpush1.bf16.msra.mxu0 0
        %2044 = vmatprep.subr.bf16.mxu0 0
        %2045 = vmatpush1.bf16.msra.mxu0 0
        %2046 = vmatprep.subr.bf16.mxu0 0
        %2047 = vmatpush1.bf16.msra.mxu0 0
        %2048 = vmatprep.subr.bf16.mxu0 0
        %2049 = vmatpush1.bf16.msra.mxu0 0
        %2050 = vmatprep.subr.bf16.mxu0 0
        %2051 = vmatpush1.bf16.msra.mxu0 0
        %2052 = vmatprep.subr.bf16.mxu0 0
        %2053 = vmatpush1.bf16.msra.mxu0 0
        %2054 = vmatprep.subr.bf16.mxu0 0
        %2055 = vmatpush1.bf16.msra.mxu0 0
        %2056 = vmatprep.mubr.bf16.mxu0 0
        %2057 = vmatmul.mubr.bf16.gmra.mrb[0].mxu0 %v2018
        %v2058 = vpop.f32.mrb[0].mxu0
        %v2059 = vadd.f32 0.0, %v2058
        %v2060 = vpop.f32.mrb[0].mxu0
        %v2061 = vpop.f32.mrb[0].mxu0
        %v2062 = vadd.f32 0.0, %v2061
        %v2063 = vpop.f32.mrb[0].mxu0
        %2064 = vdwg.mxu0
        %v2065 = vpack.c.bf16 %v2062, %v2059
        %2067 = vrot.lane.b32.xlu0 %v1923, 64
        %v2068 = vpop.permute.xlu0 %2067
        %2070 = vrot.lane.b32.xlu0 %v1924, 64
        %v2071 = vpop.permute.xlu0 %2070
        %v2073 = vsel %vm1944, %v2068, 0
        %v2076 = vsel %vm1944, %v2071, 0
        %2078 = vmatprep.subr.bf16.mxu0 0
        %2079 = vmatpush1.bf16.xpose.msra.mxu0 %v2076
        %2080 = vmatprep.subr.bf16.mxu0 0
        %2081 = vmatpush1.bf16.xpose.msra.mxu0 0
        %2082 = vmatprep.subr.bf16.mxu0 0
        %2083 = vmatpush1.bf16.xpose.msra.mxu0 0
        %2084 = vmatprep.subr.bf16.mxu0 0
        %2085 = vmatpush1.bf16.xpose.msra.mxu0 0
        %2086 = vmatprep.subr.bf16.mxu0 0
        %2087 = vmatpush1.bf16.xpose.msra.mxu0 0
        %2088 = vmatprep.subr.bf16.mxu0 0
        %2089 = vmatpush1.bf16.xpose.msra.mxu0 0
        %2090 = vmatprep.subr.bf16.mxu0 0
        %2091 = vmatpush1.bf16.xpose.msra.mxu0 0
        %2092 = vmatprep.subr.bf16.mxu0 0
        %2093 = vmatpush1.bf16.xpose.msra.mxu0 0
        %2094 = vmatprep.subr.bf16.mxu0 0
        %2095 = vmatpush1.bf16.xpose.msra.mxu0 0
        %2096 = vmatprep.subr.bf16.mxu0 0
        %2097 = vmatpush1.bf16.xpose.msra.mxu0 0
        %2098 = vmatprep.subr.bf16.mxu0 0
        %2099 = vmatpush1.bf16.xpose.msra.mxu0 0
        %2100 = vmatprep.subr.bf16.mxu0 0
        %2101 = vmatpush1.bf16.xpose.msra.mxu0 0
        %2102 = vmatprep.subr.bf16.mxu0 0
        %2103 = vmatpush1.bf16.xpose.msra.mxu0 0
        %2104 = vmatprep.subr.bf16.mxu0 0
        %2105 = vmatpush1.bf16.xpose.msra.mxu0 0
        %2106 = vmatprep.subr.bf16.mxu0 0
        %2107 = vmatpush1.bf16.xpose.msra.mxu0 0
        %2108 = vmatprep.subr.bf16.mxu0 0
        %2109 = vmatpush1.bf16.xpose.msra.mxu0 0
        %2110 = vmatprep.mubr.bf16.mxu0 0
        %2111 = vmatmul.mubr.bf16.gmra.mrb[0].mxu0 %v2073
        %v2112 = vpop.f32.mrb[0].mxu0
        %v2113 = vadd.f32 %v1926, %v2112
        %v2114 = vpop.f32.mrb[0].mxu0
        %v2115 = vpop.f32.mrb[0].mxu0
        %v2116 = vadd.f32 %v1927, %v2115
        %v2117 = vpop.f32.mrb[0].mxu0
        %2118 = vdwg.mxu0
        %v2119 = vsel %vm1992, %v2113, -inf
        %2120 = vmax.xlane.f32.xlu0 %v2119
        %v2121 = vpop.xlane.xlu0 %2120
        %v2122 = vsel %vm1996, %v2116, -inf
        %2123 = vmax.xlane.f32.xlu0 %v2122
        %v2124 = vpop.xlane.xlu0 %2123
        %v2125 = vsub.f32 %v2113, %v2121
        %v2126 = vsub.f32 %v2116, %v2124
        %v2127 = vmul.f32 %v2125, 1.442695
        %v2128 = vpow.pop %v2127
        %v2129 = vmul.f32 %v2126, 1.442695
        %v2130 = vpow.pop %v2129
        %v2131 = vsel %vm1992, %v2128, 0.0
        %2132 = vadd.xlane.f32.xlu0 %v2131
        %v2133 = vpop.xlane.xlu0 %2132
        %v2134 = vsel %vm1996, %v2130, 0.0
        %2135 = vadd.xlane.f32.xlu0 %v2134
        %v2136 = vpop.xlane.xlu0 %2135
        %v2137 = vrcp.pop %v2133
        %v2138 = vmul.f32 %v2128, %v2137
        %v2139 = vrcp.pop %v2136
        %v2140 = vmul.f32 %v2130, %v2139
        %v2141 = vpack.c.bf16 %v2140, %v2138
        %2143 = vrot.lane.b32.xlu0 %v1925, 64
        %v2144 = vpop.permute.xlu0 %2143
        %v2146 = vsel %vm1992, %v2141, 0
        %v2149 = vsel %vm2020, %v2144, 0
        %2151 = vmatprep.subr.bf16.mxu0 0
        %2152 = vmatpush1.bf16.msra.mxu0 %v2149
        %2153 = vmatprep.subr.bf16.mxu0 0
        %2154 = vmatpush1.bf16.msra.mxu0 0
        %2155 = vmatprep.subr.bf16.mxu0 0
        %2156 = vmatpush1.bf16.msra.mxu0 0
        %2157 = vmatprep.subr.bf16.mxu0 0
        %2158 = vmatpush1.bf16.msra.mxu0 0
        %2159 = vmatprep.subr.bf16.mxu0 0
        %2160 = vmatpush1.bf16.msra.mxu0 0
        %2161 = vmatprep.subr.bf16.mxu0 0
        %2162 = vmatpush1.bf16.msra.mxu0 0
        %2163 = vmatprep.subr.bf16.mxu0 0
        %2164 = vmatpush1.bf16.msra.mxu0 0
        %2165 = vmatprep.subr.bf16.mxu0 0
        %2166 = vmatpush1.bf16.msra.mxu0 0
        %2167 = vmatprep.subr.bf16.mxu0 0
        %2168 = vmatpush1.bf16.msra.mxu0 0
        %2169 = vmatprep.subr.bf16.mxu0 0
        %2170 = vmatpush1.bf16.msra.mxu0 0
        %2171 = vmatprep.subr.bf16.mxu0 0
        %2172 = vmatpush1.bf16.msra.mxu0 0
        %2173 = vmatprep.subr.bf16.mxu0 0
        %2174 = vmatpush1.bf16.msra.mxu0 0
        %2175 = vmatprep.subr.bf16.mxu0 0
        %2176 = vmatpush1.bf16.msra.mxu0 0
        %2177 = vmatprep.subr.bf16.mxu0 0
        %2178 = vmatpush1.bf16.msra.mxu0 0
        %2179 = vmatprep.subr.bf16.mxu0 0
        %2180 = vmatpush1.bf16.msra.mxu0 0
        %2181 = vmatprep.subr.bf16.mxu0 0
        %2182 = vmatpush1.bf16.msra.mxu0 0
        %2183 = vmatprep.mubr.bf16.mxu0 0
        %2184 = vmatmul.mubr.bf16.gmra.mrb[0].mxu0 %v2146
        %v2185 = vpop.f32.mrb[0].mxu0
        %v2186 = vadd.f32 0.0, %v2185
        %v2187 = vpop.f32.mrb[0].mxu0
        %v2188 = vpop.f32.mrb[0].mxu0
        %v2189 = vadd.f32 0.0, %v2188
        %v2190 = vpop.f32.mrb[0].mxu0
        %2191 = vdwg.mxu0
        %v2192 = vpack.c.bf16 %v2189, %v2186
        %v2201 = vunpack.c.l.b16 %v1936
        %v2202 = vunpack.c.l.b16 %v1937
        %v2203 = vunpack.c.l.b16 %v1938
        %v2204 = vunpack.c.l.b16 %v1939
        %v2205 = vunpack.c.l.b16 %v1940
        %v2206 = vunpack.c.l.b16 %v1941
        %v2207 = vunpack.c.l.b16 %v1942
        %v2208 = vunpack.c.l.b16 %v1943
        %v2209 = vpack.c.b16 %v2202, %v2201
        %v2210 = vpack.c.b16 %v2204, %v2203
        %v2211 = vpack.c.b16 %v2206, %v2205
        %v2212 = vpack.c.b16 %v2208, %v2207
        %v2218 = vsel %vm1944, %v2192, 0
        %2220 = vmatprep.subr.bf16.mxu0 0
        %2221 = vmatpush1.bf16.msra.mxu0 %v2209
        %2222 = vmatprep.subr.bf16.mxu0 0
        %2223 = vmatpush1.bf16.msra.mxu0 %v2210
        %2224 = vmatprep.subr.bf16.mxu0 0
        %2225 = vmatpush1.bf16.msra.mxu0 %v2211
        %2226 = vmatprep.subr.bf16.mxu0 0
        %2227 = vmatpush1.bf16.msra.mxu0 %v2212
        %2228 = vmatprep.subr.bf16.mxu0 0
        %2229 = vmatpush1.bf16.msra.mxu0 0
        %2230 = vmatprep.subr.bf16.mxu0 0
        %2231 = vmatpush1.bf16.msra.mxu0 0
        %2232 = vmatprep.subr.bf16.mxu0 0
        %2233 = vmatpush1.bf16.msra.mxu0 0
        %2234 = vmatprep.subr.bf16.mxu0 0
        %2235 = vmatpush1.bf16.msra.mxu0 0
        %2236 = vmatprep.subr.bf16.mxu0 0
        %2237 = vmatpush1.bf16.msra.mxu0 0
        %2238 = vmatprep.subr.bf16.mxu0 0
        %2239 = vmatpush1.bf16.msra.mxu0 0
        %2240 = vmatprep.subr.bf16.mxu0 0
        %2241 = vmatpush1.bf16.msra.mxu0 0
        %2242 = vmatprep.subr.bf16.mxu0 0
        %2243 = vmatpush1.bf16.msra.mxu0 0
        %2244 = vmatprep.subr.bf16.mxu0 0
        %2245 = vmatpush1.bf16.msra.mxu0 0
        %2246 = vmatprep.subr.bf16.mxu0 0
        %2247 = vmatpush1.bf16.msra.mxu0 0
        %2248 = vmatprep.subr.bf16.mxu0 0
        %2249 = vmatpush1.bf16.msra.mxu0 0
        %2250 = vmatprep.subr.bf16.mxu0 0
        %2251 = vmatpush1.bf16.msra.mxu0 0
        %2252 = vmatprep.mubr.bf16.mxu0 0
        %2253 = vmatmul.mubr.bf16.gmra.mrb[0].mxu0 %v2218
        %v2254 = vpop.f32.mrb[0].mxu0
        %v2255 = vadd.f32 0.0, %v2254
        %v2256 = vpop.f32.mrb[0].mxu0
        %v2257 = vpop.f32.mrb[0].mxu0
        %v2258 = vadd.f32 0.0, %v2257
        %v2259 = vpop.f32.mrb[0].mxu0
        %2260 = vdwg.mxu0
        %v2269 = vunpack.c.l.b16 %v1928
        %v2270 = vunpack.c.l.b16 %v1929
        %v2271 = vunpack.c.l.b16 %v1930
        %v2272 = vunpack.c.l.b16 %v1931
        %v2273 = vunpack.c.l.b16 %v1932
        %v2274 = vunpack.c.l.b16 %v1933
        %v2275 = vunpack.c.l.b16 %v1934
        %v2276 = vunpack.c.l.b16 %v1935
        %v2277 = vpack.c.b16 %v2270, %v2269
        %v2278 = vpack.c.b16 %v2272, %v2271
        %v2279 = vpack.c.b16 %v2274, %v2273
        %v2280 = vpack.c.b16 %v2276, %v2275
        %v2286 = vsel %vm1944, %v2065, 0
        %2288 = vmatprep.subr.bf16.mxu0 0
        %2289 = vmatpush1.bf16.msra.mxu0 %v2277
        %2290 = vmatprep.subr.bf16.mxu0 0
        %2291 = vmatpush1.bf16.msra.mxu0 %v2278
        %2292 = vmatprep.subr.bf16.mxu0 0
        %2293 = vmatpush1.bf16.msra.mxu0 %v2279
        %2294 = vmatprep.subr.bf16.mxu0 0
        %2295 = vmatpush1.bf16.msra.mxu0 %v2280
        %2296 = vmatprep.subr.bf16.mxu0 0
        %2297 = vmatpush1.bf16.msra.mxu0 0
        %2298 = vmatprep.subr.bf16.mxu0 0
        %2299 = vmatpush1.bf16.msra.mxu0 0
        %2300 = vmatprep.subr.bf16.mxu0 0
        %2301 = vmatpush1.bf16.msra.mxu0 0
        %2302 = vmatprep.subr.bf16.mxu0 0
        %2303 = vmatpush1.bf16.msra.mxu0 0
        %2304 = vmatprep.subr.bf16.mxu0 0
        %2305 = vmatpush1.bf16.msra.mxu0 0
        %2306 = vmatprep.subr.bf16.mxu0 0
        %2307 = vmatpush1.bf16.msra.mxu0 0
        %2308 = vmatprep.subr.bf16.mxu0 0
        %2309 = vmatpush1.bf16.msra.mxu0 0
        %2310 = vmatprep.subr.bf16.mxu0 0
        %2311 = vmatpush1.bf16.msra.mxu0 0
        %2312 = vmatprep.subr.bf16.mxu0 0
        %2313 = vmatpush1.bf16.msra.mxu0 0
        %2314 = vmatprep.subr.bf16.mxu0 0
        %2315 = vmatpush1.bf16.msra.mxu0 0
        %2316 = vmatprep.subr.bf16.mxu0 0
        %2317 = vmatpush1.bf16.msra.mxu0 0
        %2318 = vmatprep.subr.bf16.mxu0 0
        %2319 = vmatpush1.bf16.msra.mxu0 0
        %2320 = vmatprep.mubr.bf16.mxu0 0
        %2321 = vmatmul.mubr.bf16.gmra.mrb[0].mxu0 %v2286
        %v2322 = vpop.f32.mrb[0].mxu0
        %v2323 = vadd.f32 %v2255, %v2322
        %v2324 = vpop.f32.mrb[0].mxu0
        %v2325 = vpop.f32.mrb[0].mxu0
        %v2326 = vadd.f32 %v2258, %v2325
        %v2327 = vpop.f32.mrb[0].mxu0
        %2328 = vdwg.mxu0
        %v2329 = vadd.f32 %v1609, %v2323
        %v2330 = vadd.f32 %v1610, %v2326
        %v2331 = vld [vmem:[%s1003] sm:$0x1]
        %v2333 = vlaneseq
        %v2334 = vshrl.u32 %v2333, 7
        %v2335 = vsub.s32 0, %v2334
        %v2336 = vrot.slane %v2331, %v2335
        %v2338 = vadd.f32 %v2329, %v2336
        %v2339 = vadd.f32 %v2330, %v2336
        %v2340 = vld [vmem:[%s1006] sm:$0x1]
        %v2341 = vld [vmem:[%s1009] sm:$0x1]
        %2342 = vadd.xlane.f32.xlu0 %v2338
        %v2343 = vpop.xlane.xlu0 %2342
        %v2344 = vsel %vm1615, %v2339, 0.0
        %2345 = vadd.xlane.f32.xlu0 %v2344
        %v2346 = vpop.xlane.xlu0 %2345
        %v2347 = vmul.f32 %v2343, %v1619
        %v2348 = vmul.f32 %v2346, %v1619
        %v2349 = vmul.f32 %v2338, %v2338
        %v2350 = vmul.f32 %v2339, %v2339
        %2351 = vadd.xlane.f32.xlu0 %v2349
        %v2352 = vpop.xlane.xlu0 %2351
        %v2353 = vsel %vm1615, %v2350, 0.0
        %2354 = vadd.xlane.f32.xlu0 %v2353
        %v2355 = vpop.xlane.xlu0 %2354
        %v2356 = vmul.f32 %v2352, %v1619
        %v2357 = vmul.f32 %v2355, %v1619
        %v2358 = vmul.f32 %v2347, %v2347
        %v2359 = vmul.f32 %v2348, %v2348
        %v2360 = vsub.f32 %v2356, %v2358
        %v2361 = vsub.f32 %v2357, %v2359
        %v2362 = vsub.f32 %v2338, %v2347
        %v2363 = vsub.f32 %v2339, %v2348
        %v2364 = vadd.f32 %v2360, 1e-05
        %v2365 = vadd.f32 %v2361, 1e-05
        %v2366 = vrsqrt.pop %v2364
        %v2367 = vrsqrt.pop %v2365
        %v2368 = vmul.f32 %v2362, %v2366
        %v2369 = vmul.f32 %v2363, %v2367
        %v2371 = vlaneseq
        %v2372 = vshrl.u32 %v2371, 7
        %v2373 = vsub.s32 0, %v2372
        %v2374 = vrot.slane %v2340, %v2373
        %v2376 = vmul.f32 %v2368, %v2374
        %v2377 = vmul.f32 %v2369, %v2374
        %v2379 = vlaneseq
        %v2380 = vshrl.u32 %v2379, 7
        %v2381 = vsub.s32 0, %v2380
        %v2382 = vrot.slane %v2341, %v2381
        %v2384 = vadd.f32 %v2376, %v2382
        %v2385 = vadd.f32 %v2377, %v2382
        %v2386 = vpack.c.bf16 %v2385, %v2384
        %v2387 = vld [vmem:[%s1014] sm:$0xff]
        %v2388 = vld [vmem:[%s1014 + $0x8] sm:$0xff]
        %v2389 = vld [vmem:[%s1014 + $0x10] sm:$0xff]
        %v2390 = vld [vmem:[%s1014 + $0x18] sm:$0xff]
        %v2391 = vld [vmem:[%s1014 + $0x20] sm:$0xff]
        %v2392 = vld [vmem:[%s1014 + $0x28] sm:$0xff]
        %v2393 = vld [vmem:[%s1014 + $0x30] sm:$0xff]
        %v2394 = vld [vmem:[%s1014 + $0x38] sm:$0xff]
        %v2395 = vld [vmem:[%s1014 + $0x40] sm:$0xff]
        %v2396 = vld [vmem:[%s1014 + $0x48] sm:$0xff]
        %v2397 = vld [vmem:[%s1014 + $0x50] sm:$0xff]
        %v2398 = vld [vmem:[%s1014 + $0x58] sm:$0xff]
        %v2399 = vld [vmem:[%s1014 + $0x60] sm:$0xff]
        %v2400 = vld [vmem:[%s1014 + $0x68] sm:$0xff]
        %v2401 = vld [vmem:[%s1014 + $0x70] sm:$0xff]
        %v2402 = vld [vmem:[%s1014 + $0x78] sm:$0xff]
        %v2403 = vld [vmem:[%s1014 + $0x80] sm:$0xff]
        %v2404 = vld [vmem:[%s1014 + $0x88] sm:$0xff]
        %v2405 = vld [vmem:[%s1014 + $0x90] sm:$0xff]
        %v2406 = vld [vmem:[%s1014 + $0x98] sm:$0xff]
        %v2407 = vld [vmem:[%s1014 + $0xa0] sm:$0xff]
        %v2408 = vld [vmem:[%s1014 + $0xa8] sm:$0xff]
        %v2409 = vld [vmem:[%s1014 + $0xb0] sm:$0xff]
        %v2410 = vld [vmem:[%s1014 + $0xb8] sm:$0xff]
        %v2411 = vld [vmem:[%s1014 + $0xc0] sm:$0xff]
        %v2412 = vld [vmem:[%s1014 + $0xc8] sm:$0xff]
        %v2413 = vld [vmem:[%s1014 + $0xd0] sm:$0xff]
        %v2414 = vld [vmem:[%s1014 + $0xd8] sm:$0xff]
        %v2415 = vld [vmem:[%s1014 + $0xe0] sm:$0xff]
        %v2416 = vld [vmem:[%s1014 + $0xe8] sm:$0xff]
        %v2417 = vld [vmem:[%s1014 + $0xf0] sm:$0xff]
        %v2418 = vld [vmem:[%s1014 + $0xf8] sm:$0xff]
        %v2419 = vld [vmem:[%s1018] sm:$0xf]
        %v2421 = vlaneseq
        %v2422 = vshrl.u32 %v2421, 7
        %v2423 = vsub.s32 0, %v2422
        %v2424 = vrot.slane %v2419, %v2423
        %v2425 = vlaneseq
        %v2426 = vshrl.u32 %v2425, 7
        %v2427 = vsub.s32 1, %v2426
        %v2428 = vrot.slane %v2419, %v2427
        %v2429 = vlaneseq
        %v2430 = vshrl.u32 %v2429, 7
        %v2431 = vsub.s32 2, %v2430
        %v2432 = vrot.slane %v2419, %v2431
        %v2433 = vlaneseq
        %v2434 = vshrl.u32 %v2433, 7
        %v2435 = vsub.s32 3, %v2434
        %v2436 = vrot.slane %v2419, %v2435
        %v2473 = vunpack.c.l.b16 %v2387
        %v2474 = vunpack.c.h.b16 %v2387
        %v2475 = vunpack.c.l.b16 %v2388
        %v2476 = vunpack.c.h.b16 %v2388
        %v2477 = vunpack.c.l.b16 %v2389
        %v2478 = vunpack.c.h.b16 %v2389
        %v2479 = vunpack.c.l.b16 %v2390
        %v2480 = vunpack.c.h.b16 %v2390
        %v2481 = vunpack.c.l.b16 %v2391
        %v2482 = vunpack.c.h.b16 %v2391
        %v2483 = vunpack.c.l.b16 %v2392
        %v2484 = vunpack.c.h.b16 %v2392
        %v2485 = vunpack.c.l.b16 %v2393
        %v2486 = vunpack.c.h.b16 %v2393
        %v2487 = vunpack.c.l.b16 %v2394
        %v2488 = vunpack.c.h.b16 %v2394
        %v2489 = vunpack.c.l.b16 %v2395
        %v2490 = vunpack.c.h.b16 %v2395
        %v2491 = vunpack.c.l.b16 %v2396
        %v2492 = vunpack.c.h.b16 %v2396
        %v2493 = vunpack.c.l.b16 %v2397
        %v2494 = vunpack.c.h.b16 %v2397
        %v2495 = vunpack.c.l.b16 %v2398
        %v2496 = vunpack.c.h.b16 %v2398
        %v2497 = vunpack.c.l.b16 %v2399
        %v2498 = vunpack.c.h.b16 %v2399
        %v2499 = vunpack.c.l.b16 %v2400
        %v2500 = vunpack.c.h.b16 %v2400
        %v2501 = vunpack.c.l.b16 %v2401
        %v2502 = vunpack.c.h.b16 %v2401
        %v2503 = vunpack.c.l.b16 %v2402
        %v2504 = vunpack.c.h.b16 %v2402
        %v2505 = vunpack.c.l.b16 %v2403
        %v2506 = vunpack.c.h.b16 %v2403
        %v2507 = vunpack.c.l.b16 %v2404
        %v2508 = vunpack.c.h.b16 %v2404
        %v2509 = vunpack.c.l.b16 %v2405
        %v2510 = vunpack.c.h.b16 %v2405
        %v2511 = vunpack.c.l.b16 %v2406
        %v2512 = vunpack.c.h.b16 %v2406
        %v2513 = vunpack.c.l.b16 %v2407
        %v2514 = vunpack.c.h.b16 %v2407
        %v2515 = vunpack.c.l.b16 %v2408
        %v2516 = vunpack.c.h.b16 %v2408
        %v2517 = vunpack.c.l.b16 %v2409
        %v2518 = vunpack.c.h.b16 %v2409
        %v2519 = vunpack.c.l.b16 %v2410
        %v2520 = vunpack.c.h.b16 %v2410
        %v2521 = vunpack.c.l.b16 %v2411
        %v2522 = vunpack.c.h.b16 %v2411
        %v2523 = vunpack.c.l.b16 %v2412
        %v2524 = vunpack.c.h.b16 %v2412
        %v2525 = vunpack.c.l.b16 %v2413
        %v2526 = vunpack.c.h.b16 %v2413
        %v2527 = vunpack.c.l.b16 %v2414
        %v2528 = vunpack.c.h.b16 %v2414
        %v2529 = vunpack.c.l.b16 %v2415
        %v2530 = vunpack.c.h.b16 %v2415
        %v2531 = vunpack.c.l.b16 %v2416
        %v2532 = vunpack.c.h.b16 %v2416
        %v2533 = vunpack.c.l.b16 %v2417
        %v2534 = vunpack.c.h.b16 %v2417
        %v2535 = vunpack.c.l.b16 %v2418
        %v2536 = vunpack.c.h.b16 %v2418
        %v2537 = vpack.c.b16 %v2477, %v2473
        %v2538 = vpack.c.b16 %v2478, %v2474
        %v2539 = vpack.c.b16 %v2479, %v2475
        %v2540 = vpack.c.b16 %v2480, %v2476
        %v2541 = vpack.c.b16 %v2485, %v2481
        %v2542 = vpack.c.b16 %v2486, %v2482
        %v2543 = vpack.c.b16 %v2487, %v2483
        %v2544 = vpack.c.b16 %v2488, %v2484
        %v2545 = vpack.c.b16 %v2493, %v2489
        %v2546 = vpack.c.b16 %v2494, %v2490
        %v2547 = vpack.c.b16 %v2495, %v2491
        %v2548 = vpack.c.b16 %v2496, %v2492
        %v2549 = vpack.c.b16 %v2501, %v2497
        %v2550 = vpack.c.b16 %v2502, %v2498
        %v2551 = vpack.c.b16 %v2503, %v2499
        %v2552 = vpack.c.b16 %v2504, %v2500
        %v2553 = vpack.c.b16 %v2509, %v2505
        %v2554 = vpack.c.b16 %v2510, %v2506
        %v2555 = vpack.c.b16 %v2511, %v2507
        %v2556 = vpack.c.b16 %v2512, %v2508
        %v2557 = vpack.c.b16 %v2517, %v2513
        %v2558 = vpack.c.b16 %v2518, %v2514
        %v2559 = vpack.c.b16 %v2519, %v2515
        %v2560 = vpack.c.b16 %v2520, %v2516
        %v2561 = vpack.c.b16 %v2525, %v2521
        %v2562 = vpack.c.b16 %v2526, %v2522
        %v2563 = vpack.c.b16 %v2527, %v2523
        %v2564 = vpack.c.b16 %v2528, %v2524
        %v2565 = vpack.c.b16 %v2533, %v2529
        %v2566 = vpack.c.b16 %v2534, %v2530
        %v2567 = vpack.c.b16 %v2535, %v2531
        %v2568 = vpack.c.b16 %v2536, %v2532
        %2601 = vmatprep.subr.bf16.mxu0 %v2538
        %2602 = vmatpush1.bf16.msra.mxu0 %v2537
        %2603 = vmatprep.subr.bf16.mxu0 %v2542
        %2604 = vmatpush1.bf16.msra.mxu0 %v2541
        %2605 = vmatprep.subr.bf16.mxu0 %v2546
        %2606 = vmatpush1.bf16.msra.mxu0 %v2545
        %2607 = vmatprep.subr.bf16.mxu0 %v2550
        %2608 = vmatpush1.bf16.msra.mxu0 %v2549
        %2609 = vmatprep.subr.bf16.mxu0 %v2554
        %2610 = vmatpush1.bf16.msra.mxu0 %v2553
        %2611 = vmatprep.subr.bf16.mxu0 %v2558
        %2612 = vmatpush1.bf16.msra.mxu0 %v2557
        %2613 = vmatprep.subr.bf16.mxu0 %v2562
        %2614 = vmatpush1.bf16.msra.mxu0 %v2561
        %2615 = vmatprep.subr.bf16.mxu0 %v2566
        %2616 = vmatpush1.bf16.msra.mxu0 %v2565
        %2617 = vmatprep.subr.bf16.mxu0 0
        %2618 = vmatpush1.bf16.msra.mxu0 0
        %2619 = vmatprep.subr.bf16.mxu0 0
        %2620 = vmatpush1.bf16.msra.mxu0 0
        %2621 = vmatprep.subr.bf16.mxu0 0
        %2622 = vmatpush1.bf16.msra.mxu0 0
        %2623 = vmatprep.subr.bf16.mxu0 0
        %2624 = vmatpush1.bf16.msra.mxu0 0
        %2625 = vmatprep.subr.bf16.mxu0 0
        %2626 = vmatpush1.bf16.msra.mxu0 0
        %2627 = vmatprep.subr.bf16.mxu0 0
        %2628 = vmatpush1.bf16.msra.mxu0 0
        %2629 = vmatprep.subr.bf16.mxu0 0
        %2630 = vmatpush1.bf16.msra.mxu0 0
        %2631 = vmatprep.subr.bf16.mxu0 0
        %2632 = vmatpush1.bf16.msra.mxu0 0
        %2633 = vmatprep.mubr.bf16.mxu0 0
        %2634 = vmatmul.mubr.bf16.gmra.mrb[0].mxu0 %v2386
        %v2635 = vpop.f32.mrb[0].mxu0
        %v2636 = vadd.f32 %v2424, %v2635
        %v2637 = vpop.f32.mrb[0].mxu0
        %v2638 = vadd.f32 %v2428, %v2637
        %v2639 = vpop.f32.mrb[0].mxu0
        %v2640 = vadd.f32 %v2424, %v2639
        %v2641 = vpop.f32.mrb[0].mxu0
        %v2642 = vadd.f32 %v2428, %v2641
        %2643 = vdwg.mxu0
        %2644 = vmatprep.subr.bf16.mxu0 %v2540
        %2645 = vmatpush1.bf16.msra.mxu0 %v2539
        %2646 = vmatprep.subr.bf16.mxu0 %v2544
        %2647 = vmatpush1.bf16.msra.mxu0 %v2543
        %2648 = vmatprep.subr.bf16.mxu0 %v2548
        %2649 = vmatpush1.bf16.msra.mxu0 %v2547
        %2650 = vmatprep.subr.bf16.mxu0 %v2552
        %2651 = vmatpush1.bf16.msra.mxu0 %v2551
        %2652 = vmatprep.subr.bf16.mxu0 %v2556
        %2653 = vmatpush1.bf16.msra.mxu0 %v2555
        %2654 = vmatprep.subr.bf16.mxu0 %v2560
        %2655 = vmatpush1.bf16.msra.mxu0 %v2559
        %2656 = vmatprep.subr.bf16.mxu0 %v2564
        %2657 = vmatpush1.bf16.msra.mxu0 %v2563
        %2658 = vmatprep.subr.bf16.mxu0 %v2568
        %2659 = vmatpush1.bf16.msra.mxu0 %v2567
        %2660 = vmatprep.subr.bf16.mxu0 0
        %2661 = vmatpush1.bf16.msra.mxu0 0
        %2662 = vmatprep.subr.bf16.mxu0 0
        %2663 = vmatpush1.bf16.msra.mxu0 0
        %2664 = vmatprep.subr.bf16.mxu0 0
        %2665 = vmatpush1.bf16.msra.mxu0 0
        %2666 = vmatprep.subr.bf16.mxu0 0
        %2667 = vmatpush1.bf16.msra.mxu0 0
        %2668 = vmatprep.subr.bf16.mxu0 0
        %2669 = vmatpush1.bf16.msra.mxu0 0
        %2670 = vmatprep.subr.bf16.mxu0 0
        %2671 = vmatpush1.bf16.msra.mxu0 0
        %2672 = vmatprep.subr.bf16.mxu0 0
        %2673 = vmatpush1.bf16.msra.mxu0 0
        %2674 = vmatprep.subr.bf16.mxu0 0
        %2675 = vmatpush1.bf16.msra.mxu0 0
        %2676 = vmatprep.mubr.bf16.mxu0 0
        %2677 = vmatmul.mubr.bf16.gmra.mrb[0].mxu0 %v2386
        %v2678 = vpop.f32.mrb[0].mxu0
        %v2679 = vadd.f32 %v2432, %v2678
        %v2680 = vpop.f32.mrb[0].mxu0
        %v2681 = vadd.f32 %v2436, %v2680
        %v2682 = vpop.f32.mrb[0].mxu0
        %v2683 = vadd.f32 %v2432, %v2682
        %v2684 = vpop.f32.mrb[0].mxu0
        %v2685 = vadd.f32 %v2436, %v2684
        %2686 = vdwg.mxu0
        %v2687 = vmul.f32 %v2636, 1.702
        %v2688 = vmul.f32 %v2638, 1.702
        %v2689 = vmul.f32 %v2679, 1.702
        %v2690 = vmul.f32 %v2681, 1.702
        %v2691 = vmul.f32 %v2640, 1.702
        %v2692 = vmul.f32 %v2642, 1.702
        %v2693 = vmul.f32 %v2683, 1.702
        %v2694 = vmul.f32 %v2685, 1.702
        %v2695 = vxor.u32 %v2687, 2147483648
        %v2696 = vxor.u32 %v2688, 2147483648
        %v2697 = vxor.u32 %v2689, 2147483648
        %v2698 = vxor.u32 %v2690, 2147483648
        %v2699 = vxor.u32 %v2691, 2147483648
        %v2700 = vxor.u32 %v2692, 2147483648
        %v2701 = vxor.u32 %v2693, 2147483648
        %v2702 = vxor.u32 %v2694, 2147483648
        %v2703 = vmul.f32 %v2695, 1.442695
        %v2704 = vpow.pop %v2703
        %v2705 = vmul.f32 %v2696, 1.442695
        %v2706 = vpow.pop %v2705
        %v2707 = vmul.f32 %v2697, 1.442695
        %v2708 = vpow.pop %v2707
        %v2709 = vmul.f32 %v2698, 1.442695
        %v2710 = vpow.pop %v2709
        %v2711 = vmul.f32 %v2699, 1.442695
        %v2712 = vpow.pop %v2711
        %v2713 = vmul.f32 %v2700, 1.442695
        %v2714 = vpow.pop %v2713
        %v2715 = vmul.f32 %v2701, 1.442695
        %v2716 = vpow.pop %v2715
        %v2717 = vmul.f32 %v2702, 1.442695
        %v2718 = vpow.pop %v2717
        %v2719 = vadd.f32 %v2704, 1.0
        %v2720 = vadd.f32 %v2706, 1.0
        %v2721 = vadd.f32 %v2708, 1.0
        %v2722 = vadd.f32 %v2710, 1.0
        %v2723 = vadd.f32 %v2712, 1.0
        %v2724 = vadd.f32 %v2714, 1.0
        %v2725 = vadd.f32 %v2716, 1.0
        %v2726 = vadd.f32 %v2718, 1.0
        %v2727 = vrcp.pop %v2719
        %v2728 = vmul.f32 1.0, %v2727
        %v2729 = vrcp.pop %v2720
        %v2730 = vmul.f32 1.0, %v2729
        %v2731 = vrcp.pop %v2721
        %v2732 = vmul.f32 1.0, %v2731
        %v2733 = vrcp.pop %v2722
        %v2734 = vmul.f32 1.0, %v2733
        %v2735 = vrcp.pop %v2723
        %v2736 = vmul.f32 1.0, %v2735
        %v2737 = vrcp.pop %v2724
        %v2738 = vmul.f32 1.0, %v2737
        %v2739 = vrcp.pop %v2725
        %v2740 = vmul.f32 1.0, %v2739
        %v2741 = vrcp.pop %v2726
        %v2742 = vmul.f32 1.0, %v2741
        %v2743 = vmul.f32 %v2636, %v2728
        %v2744 = vmul.f32 %v2638, %v2730
        %v2745 = vmul.f32 %v2679, %v2732
        %v2746 = vmul.f32 %v2681, %v2734
        %v2747 = vmul.f32 %v2640, %v2736
        %v2748 = vmul.f32 %v2642, %v2738
        %v2749 = vmul.f32 %v2683, %v2740
        %v2750 = vmul.f32 %v2685, %v2742
        %v2751 = vpack.c.bf16 %v2747, %v2743
        %v2752 = vpack.c.bf16 %v2748, %v2744
        %v2753 = vpack.c.bf16 %v2749, %v2745
        %v2754 = vpack.c.bf16 %v2750, %v2746
        %v2755 = vld [vmem:[%s1023] sm:$0xf]
        %v2756 = vld [vmem:[%s1023 + $0x4] sm:$0xf]
        %v2757 = vld [vmem:[%s1023 + $0x8] sm:$0xf]
        %v2758 = vld [vmem:[%s1023 + $0xc] sm:$0xf]
        %v2759 = vld [vmem:[%s1023 + $0x10] sm:$0xf]
        %v2760 = vld [vmem:[%s1023 + $0x14] sm:$0xf]
        %v2761 = vld [vmem:[%s1023 + $0x18] sm:$0xf]
        %v2762 = vld [vmem:[%s1023 + $0x1c] sm:$0xf]
        %v2763 = vld [vmem:[%s1023 + $0x20] sm:$0xf]
        %v2764 = vld [vmem:[%s1023 + $0x24] sm:$0xf]
        %v2765 = vld [vmem:[%s1023 + $0x28] sm:$0xf]
        %v2766 = vld [vmem:[%s1023 + $0x2c] sm:$0xf]
        %v2767 = vld [vmem:[%s1023 + $0x30] sm:$0xf]
        %v2768 = vld [vmem:[%s1023 + $0x34] sm:$0xf]
        %v2769 = vld [vmem:[%s1023 + $0x38] sm:$0xf]
        %v2770 = vld [vmem:[%s1023 + $0x3c] sm:$0xf]
        %v2771 = vld [vmem:[%s1023 + $0x40] sm:$0xf]
        %v2772 = vld [vmem:[%s1023 + $0x44] sm:$0xf]
        %v2773 = vld [vmem:[%s1023 + $0x48] sm:$0xf]
        %v2774 = vld [vmem:[%s1023 + $0x4c] sm:$0xf]
        %v2775 = vld [vmem:[%s1023 + $0x50] sm:$0xf]
        %v2776 = vld [vmem:[%s1023 + $0x54] sm:$0xf]
        %v2777 = vld [vmem:[%s1023 + $0x58] sm:$0xf]
        %v2778 = vld [vmem:[%s1023 + $0x5c] sm:$0xf]
        %v2779 = vld [vmem:[%s1023 + $0x60] sm:$0xf]
        %v2780 = vld [vmem:[%s1023 + $0x64] sm:$0xf]
        %v2781 = vld [vmem:[%s1023 + $0x68] sm:$0xf]
        %v2782 = vld [vmem:[%s1023 + $0x6c] sm:$0xf]
        %v2783 = vld [vmem:[%s1023 + $0x70] sm:$0xf]
        %v2784 = vld [vmem:[%s1023 + $0x74] sm:$0xf]
        %v2785 = vld [vmem:[%s1023 + $0x78] sm:$0xf]
        %v2786 = vld [vmem:[%s1023 + $0x7c] sm:$0xf]
        %v2787 = vld [vmem:[%s1023 + $0x80] sm:$0xf]
        %v2788 = vld [vmem:[%s1023 + $0x84] sm:$0xf]
        %v2789 = vld [vmem:[%s1023 + $0x88] sm:$0xf]
        %v2790 = vld [vmem:[%s1023 + $0x8c] sm:$0xf]
        %v2791 = vld [vmem:[%s1023 + $0x90] sm:$0xf]
        %v2792 = vld [vmem:[%s1023 + $0x94] sm:$0xf]
        %v2793 = vld [vmem:[%s1023 + $0x98] sm:$0xf]
        %v2794 = vld [vmem:[%s1023 + $0x9c] sm:$0xf]
        %v2795 = vld [vmem:[%s1023 + $0xa0] sm:$0xf]
        %v2796 = vld [vmem:[%s1023 + $0xa4] sm:$0xf]
        %v2797 = vld [vmem:[%s1023 + $0xa8] sm:$0xf]
        %v2798 = vld [vmem:[%s1023 + $0xac] sm:$0xf]
        %v2799 = vld [vmem:[%s1023 + $0xb0] sm:$0xf]
        %v2800 = vld [vmem:[%s1023 + $0xb4] sm:$0xf]
        %v2801 = vld [vmem:[%s1023 + $0xb8] sm:$0xf]
        %v2802 = vld [vmem:[%s1023 + $0xbc] sm:$0xf]
        %v2803 = vld [vmem:[%s1023 + $0xc0] sm:$0xf]
        %v2804 = vld [vmem:[%s1023 + $0xc4] sm:$0xf]
        %v2805 = vld [vmem:[%s1023 + $0xc8] sm:$0xf]
        %v2806 = vld [vmem:[%s1023 + $0xcc] sm:$0xf]
        %v2807 = vld [vmem:[%s1023 + $0xd0] sm:$0xf]
        %v2808 = vld [vmem:[%s1023 + $0xd4] sm:$0xf]
        %v2809 = vld [vmem:[%s1023 + $0xd8] sm:$0xf]
        %v2810 = vld [vmem:[%s1023 + $0xdc] sm:$0xf]
        %v2811 = vld [vmem:[%s1023 + $0xe0] sm:$0xf]
        %v2812 = vld [vmem:[%s1023 + $0xe4] sm:$0xf]
        %v2813 = vld [vmem:[%s1023 + $0xe8] sm:$0xf]
        %v2814 = vld [vmem:[%s1023 + $0xec] sm:$0xf]
        %v2815 = vld [vmem:[%s1023 + $0xf0] sm:$0xf]
        %v2816 = vld [vmem:[%s1023 + $0xf4] sm:$0xf]
        %v2817 = vld [vmem:[%s1023 + $0xf8] sm:$0xf]
        %v2818 = vld [vmem:[%s1023 + $0xfc] sm:$0xf]
        %v2819 = vld [vmem:[%s1026] sm:$0x1]
        %v2821 = vlaneseq
        %v2822 = vshrl.u32 %v2821, 7
        %v2823 = vsub.s32 0, %v2822
        %v2824 = vrot.slane %v2819, %v2823
        %v2890 = vunpack.c.l.b16 %v2755
        %v2891 = vunpack.c.l.b16 %v2756
        %v2892 = vunpack.c.l.b16 %v2757
        %v2893 = vunpack.c.l.b16 %v2758
        %v2894 = vunpack.c.l.b16 %v2759
        %v2895 = vunpack.c.l.b16 %v2760
        %v2896 = vunpack.c.l.b16 %v2761
        %v2897 = vunpack.c.l.b16 %v2762
        %v2898 = vunpack.c.l.b16 %v2763
        %v2899 = vunpack.c.l.b16 %v2764
        %v2900 = vunpack.c.l.b16 %v2765
        %v2901 = vunpack.c.l.b16 %v2766
        %v2902 = vunpack.c.l.b16 %v2767
        %v2903 = vunpack.c.l.b16 %v2768
        %v2904 = vunpack.c.l.b16 %v2769
        %v2905 = vunpack.c.l.b16 %v2770
        %v2906 = vunpack.c.l.b16 %v2771
        %v2907 = vunpack.c.l.b16 %v2772
        %v2908 = vunpack.c.l.b16 %v2773
        %v2909 = vunpack.c.l.b16 %v2774
        %v2910 = vunpack.c.l.b16 %v2775
        %v2911 = vunpack.c.l.b16 %v2776
        %v2912 = vunpack.c.l.b16 %v2777
        %v2913 = vunpack.c.l.b16 %v2778
        %v2914 = vunpack.c.l.b16 %v2779
        %v2915 = vunpack.c.l.b16 %v2780
        %v2916 = vunpack.c.l.b16 %v2781
        %v2917 = vunpack.c.l.b16 %v2782
        %v2918 = vunpack.c.l.b16 %v2783
        %v2919 = vunpack.c.l.b16 %v2784
        %v2920 = vunpack.c.l.b16 %v2785
        %v2921 = vunpack.c.l.b16 %v2786
        %v2922 = vunpack.c.l.b16 %v2787
        %v2923 = vunpack.c.l.b16 %v2788
        %v2924 = vunpack.c.l.b16 %v2789
        %v2925 = vunpack.c.l.b16 %v2790
        %v2926 = vunpack.c.l.b16 %v2791
        %v2927 = vunpack.c.l.b16 %v2792
        %v2928 = vunpack.c.l.b16 %v2793
        %v2929 = vunpack.c.l.b16 %v2794
        %v2930 = vunpack.c.l.b16 %v2795
        %v2931 = vunpack.c.l.b16 %v2796
        %v2932 = vunpack.c.l.b16 %v2797
        %v2933 = vunpack.c.l.b16 %v2798
        %v2934 = vunpack.c.l.b16 %v2799
        %v2935 = vunpack.c.l.b16 %v2800
        %v2936 = vunpack.c.l.b16 %v2801
        %v2937 = vunpack.c.l.b16 %v2802
        %v2938 = vunpack.c.l.b16 %v2803
        %v2939 = vunpack.c.l.b16 %v2804
        %v2940 = vunpack.c.l.b16 %v2805
        %v2941 = vunpack.c.l.b16 %v2806
        %v2942 = vunpack.c.l.b16 %v2807
        %v2943 = vunpack.c.l.b16 %v2808
        %v2944 = vunpack.c.l.b16 %v2809
        %v2945 = vunpack.c.l.b16 %v2810
        %v2946 = vunpack.c.l.b16 %v2811
        %v2947 = vunpack.c.l.b16 %v2812
        %v2948 = vunpack.c.l.b16 %v2813
        %v2949 = vunpack.c.l.b16 %v2814
        %v2950 = vunpack.c.l.b16 %v2815
        %v2951 = vunpack.c.l.b16 %v2816
        %v2952 = vunpack.c.l.b16 %v2817
        %v2953 = vunpack.c.l.b16 %v2818
        %v2954 = vpack.c.b16 %v2891, %v2890
        %v2955 = vpack.c.b16 %v2893, %v2892
        %v2956 = vpack.c.b16 %v2895, %v2894
        %v2957 = vpack.c.b16 %v2897, %v2896
        %v2958 = vpack.c.b16 %v2899, %v2898
        %v2959 = vpack.c.b16 %v2901, %v2900
        %v2960 = vpack.c.b16 %v2903, %v2902
        %v2961 = vpack.c.b16 %v2905, %v2904
        %v2962 = vpack.c.b16 %v2907, %v2906
        %v2963 = vpack.c.b16 %v2909, %v2908
        %v2964 = vpack.c.b16 %v2911, %v2910
        %v2965 = vpack.c.b16 %v2913, %v2912
        %v2966 = vpack.c.b16 %v2915, %v2914
        %v2967 = vpack.c.b16 %v2917, %v2916
        %v2968 = vpack.c.b16 %v2919, %v2918
        %v2969 = vpack.c.b16 %v2921, %v2920
        %v2970 = vpack.c.b16 %v2923, %v2922
        %v2971 = vpack.c.b16 %v2925, %v2924
        %v2972 = vpack.c.b16 %v2927, %v2926
        %v2973 = vpack.c.b16 %v2929, %v2928
        %v2974 = vpack.c.b16 %v2931, %v2930
        %v2975 = vpack.c.b16 %v2933, %v2932
        %v2976 = vpack.c.b16 %v2935, %v2934
        %v2977 = vpack.c.b16 %v2937, %v2936
        %v2978 = vpack.c.b16 %v2939, %v2938
        %v2979 = vpack.c.b16 %v2941, %v2940
        %v2980 = vpack.c.b16 %v2943, %v2942
        %v2981 = vpack.c.b16 %v2945, %v2944
        %v2982 = vpack.c.b16 %v2947, %v2946
        %v2983 = vpack.c.b16 %v2949, %v2948
        %v2984 = vpack.c.b16 %v2951, %v2950
        %v2985 = vpack.c.b16 %v2953, %v2952
        %3018 = vmatprep.subr.bf16.mxu0 0
        %3019 = vmatpush1.bf16.msra.mxu0 %v2954
        %3020 = vmatprep.subr.bf16.mxu0 0
        %3021 = vmatpush1.bf16.msra.mxu0 %v2955
        %3022 = vmatprep.subr.bf16.mxu0 0
        %3023 = vmatpush1.bf16.msra.mxu0 %v2956
        %3024 = vmatprep.subr.bf16.mxu0 0
        %3025 = vmatpush1.bf16.msra.mxu0 %v2957
        %3026 = vmatprep.subr.bf16.mxu0 0
        %3027 = vmatpush1.bf16.msra.mxu0 %v2958
        %3028 = vmatprep.subr.bf16.mxu0 0
        %3029 = vmatpush1.bf16.msra.mxu0 %v2959
        %3030 = vmatprep.subr.bf16.mxu0 0
        %3031 = vmatpush1.bf16.msra.mxu0 %v2960
        %3032 = vmatprep.subr.bf16.mxu0 0
        %3033 = vmatpush1.bf16.msra.mxu0 %v2961
        %3034 = vmatprep.subr.bf16.mxu0 0
        %3035 = vmatpush1.bf16.msra.mxu0 %v2962
        %3036 = vmatprep.subr.bf16.mxu0 0
        %3037 = vmatpush1.bf16.msra.mxu0 %v2963
        %3038 = vmatprep.subr.bf16.mxu0 0
        %3039 = vmatpush1.bf16.msra.mxu0 %v2964
        %3040 = vmatprep.subr.bf16.mxu0 0
        %3041 = vmatpush1.bf16.msra.mxu0 %v2965
        %3042 = vmatprep.subr.bf16.mxu0 0
        %3043 = vmatpush1.bf16.msra.mxu0 %v2966
        %3044 = vmatprep.subr.bf16.mxu0 0
        %3045 = vmatpush1.bf16.msra.mxu0 %v2967
        %3046 = vmatprep.subr.bf16.mxu0 0
        %3047 = vmatpush1.bf16.msra.mxu0 %v2968
        %3048 = vmatprep.subr.bf16.mxu0 0
        %3049 = vmatpush1.bf16.msra.mxu0 %v2969
        %3050 = vmatprep.mubr.bf16.mxu0 %v2752
        %3051 = vmatmul.mubr.bf16.gmra.mrb[0].mxu0 %v2751
        %v3052 = vpop.f32.mrb[0].mxu0
        %v3053 = vadd.f32 %v2824, %v3052
        %v3054 = vpop.f32.mrb[0].mxu0
        %v3055 = vpop.f32.mrb[0].mxu0
        %v3056 = vadd.f32 %v2824, %v3055
        %v3057 = vpop.f32.mrb[0].mxu0
        %3058 = vdwg.mxu0
        %3059 = vmatprep.subr.bf16.mxu0 0
        %3060 = vmatpush1.bf16.msra.mxu0 %v2970
        %3061 = vmatprep.subr.bf16.mxu0 0
        %3062 = vmatpush1.bf16.msra.mxu0 %v2971
        %3063 = vmatprep.subr.bf16.mxu0 0
        %3064 = vmatpush1.bf16.msra.mxu0 %v2972
        %3065 = vmatprep.subr.bf16.mxu0 0
        %3066 = vmatpush1.bf16.msra.mxu0 %v2973
        %3067 = vmatprep.subr.bf16.mxu0 0
        %3068 = vmatpush1.bf16.msra.mxu0 %v2974
        %3069 = vmatprep.subr.bf16.mxu0 0
        %3070 = vmatpush1.bf16.msra.mxu0 %v2975
        %3071 = vmatprep.subr.bf16.mxu0 0
        %3072 = vmatpush1.bf16.msra.mxu0 %v2976
        %3073 = vmatprep.subr.bf16.mxu0 0
        %3074 = vmatpush1.bf16.msra.mxu0 %v2977
        %3075 = vmatprep.subr.bf16.mxu0 0
        %3076 = vmatpush1.bf16.msra.mxu0 %v2978
        %3077 = vmatprep.subr.bf16.mxu0 0
        %3078 = vmatpush1.bf16.msra.mxu0 %v2979
        %3079 = vmatprep.subr.bf16.mxu0 0
        %3080 = vmatpush1.bf16.msra.mxu0 %v2980
        %3081 = vmatprep.subr.bf16.mxu0 0
        %3082 = vmatpush1.bf16.msra.mxu0 %v2981
        %3083 = vmatprep.subr.bf16.mxu0 0
        %3084 = vmatpush1.bf16.msra.mxu0 %v2982
        %3085 = vmatprep.subr.bf16.mxu0 0
        %3086 = vmatpush1.bf16.msra.mxu0 %v2983
        %3087 = vmatprep.subr.bf16.mxu0 0
        %3088 = vmatpush1.bf16.msra.mxu0 %v2984
        %3089 = vmatprep.subr.bf16.mxu0 0
        %3090 = vmatpush1.bf16.msra.mxu0 %v2985
        %3091 = vmatprep.mubr.bf16.mxu0 %v2754
        %3092 = vmatmul.mubr.bf16.gmra.mrb[0].mxu0 %v2753
        %v3093 = vpop.f32.mrb[0].mxu0
        %v3094 = vadd.f32 %v3053, %v3093
        %v3095 = vpop.f32.mrb[0].mxu0
        %v3096 = vpop.f32.mrb[0].mxu0
        %v3097 = vadd.f32 %v3056, %v3096
        %v3098 = vpop.f32.mrb[0].mxu0
        %3099 = vdwg.mxu0
        %v3100 = vadd.f32 %v2338, %v3094
        %v3101 = vadd.f32 %v2339, %v3097
        %3102 = vst [vmem:[#allocation2] sm:$0xff] %v3100
        %3103 = vst [vmem:[#allocation2 + $0x8] sm:$0x3] %v3101
        %p3104 = scmp.eq.s32.totalorder %s41, 1
        // Predicated region
        $region121: #{_lambda_.1} parent=115 // pred_check
          %p3105 = pneg %p3104
        $region122: #{_lambda_.1} parent=115 // pred_check_branch
          %3107 = sbr.rel (%p3105) target = $region124
        $region123: #{_lambda_.1} parent=115 // pred_region
          %v3108 = vld [vmem:[%s980] sm:$0x3]
          %v3110 = vsel %vm1992, %v3108, 0
          %v3113 = vsel %vm1615, %v3101, 0
          %3115 = vmatprep.subr.mxu0 0.0
          %3116 = vmatpush1.msra.mxu0 %v3100
          %3117 = vmatprep.subr.mxu0 0.0
          %3118 = vmatpush1.msra.mxu0 %v3113
          %3119 = vmatprep.subr.mxu0 0.0
          %3120 = vmatpush1.msra.mxu0 0.0
          %3121 = vmatprep.subr.mxu0 0.0
          %3122 = vmatpush1.msra.mxu0 0.0
          %3123 = vmatprep.subr.mxu0 0.0
          %3124 = vmatpush1.msra.mxu0 0.0
          %3125 = vmatprep.subr.mxu0 0.0
          %3126 = vmatpush1.msra.mxu0 0.0
          %3127 = vmatprep.subr.mxu0 0.0
          %3128 = vmatpush1.msra.mxu0 0.0
          %3129 = vmatprep.subr.mxu0 0.0
          %3130 = vmatpush1.msra.mxu0 0.0
          %3131 = vmatprep.subr.mxu0 0.0
          %3132 = vmatpush1.msra.mxu0 0.0
          %3133 = vmatprep.subr.mxu0 0.0
          %3134 = vmatpush1.msra.mxu0 0.0
          %3135 = vmatprep.subr.mxu0 0.0
          %3136 = vmatpush1.msra.mxu0 0.0
          %3137 = vmatprep.subr.mxu0 0.0
          %3138 = vmatpush1.msra.mxu0 0.0
          %3139 = vmatprep.subr.mxu0 0.0
          %3140 = vmatpush1.msra.mxu0 0.0
          %3141 = vmatprep.subr.mxu0 0.0
          %3142 = vmatpush1.msra.mxu0 0.0
          %3143 = vmatprep.subr.mxu0 0.0
          %3144 = vmatpush1.msra.mxu0 0.0
          %3145 = vmatprep.subr.mxu0 0.0
          %3146 = vmatpush1.msra.mxu0 0.0
          %3147 = vmatprep.subr.mxu0 0.0
          %3148 = vmatpush1.msra.mxu0 0.0
          %3149 = vmatprep.subr.mxu0 0.0
          %3150 = vmatpush1.msra.mxu0 0.0
          %3151 = vmatprep.subr.mxu0 0.0
          %3152 = vmatpush1.msra.mxu0 0.0
          %3153 = vmatprep.subr.mxu0 0.0
          %3154 = vmatpush1.msra.mxu0 0.0
          %3155 = vmatprep.subr.mxu0 0.0
          %3156 = vmatpush1.msra.mxu0 0.0
          %3157 = vmatprep.subr.mxu0 0.0
          %3158 = vmatpush1.msra.mxu0 0.0
          %3159 = vmatprep.subr.mxu0 0.0
          %3160 = vmatpush1.msra.mxu0 0.0
          %3161 = vmatprep.subr.mxu0 0.0
          %3162 = vmatpush1.msra.mxu0 0.0
          %3163 = vmatprep.subr.mxu0 0.0
          %3164 = vmatpush1.msra.mxu0 0.0
          %3165 = vmatprep.subr.mxu0 0.0
          %3166 = vmatpush1.msra.mxu0 0.0
          %3167 = vmatprep.subr.mxu0 0.0
          %3168 = vmatpush1.msra.mxu0 0.0
          %3169 = vmatprep.subr.mxu0 0.0
          %3170 = vmatpush1.msra.mxu0 0.0
          %3171 = vmatprep.subr.mxu0 0.0
          %3172 = vmatpush1.msra.mxu0 0.0
          %3173 = vmatprep.subr.mxu0 0.0
          %3174 = vmatpush1.msra.mxu0 0.0
          %3175 = vmatprep.subr.mxu0 0.0
          %3176 = vmatpush1.msra.mxu0 0.0
          %3177 = vmatprep.subr.mxu0 0.0
          %3178 = vmatpush1.msra.mxu0 0.0
          %3179 = vmatprep.mubr.f32.mxu0 0.0
          %3180 = vmatmul.mubr.f32.gmra.mrb[0].mxu0 %v3110
          %v3181 = vpop.f32.mrb[0].mxu0
          %v3182 = vadd.f32 0.0, %v3181
          %v3183 = vpop.f32.mrb[0].mxu0
          %3184 = vdwg.mxu0
          %v3185 = vld [vmem:[%s19] sm:$0x1]
          %v3186 = vld [vmem:[%s20] sm:$0x1]
          %v3187 = vsel %vm1615, %v3182, 0.0
          %3188 = vadd.xlane.f32.xlu0 %v3187
          %v3189 = vpop.xlane.xlu0 %3188
          %v3190 = vmul.f32 %v3189, %v1619
          %v3191 = vmul.f32 %v3182, %v3182
          %v3192 = vsel %vm1615, %v3191, 0.0
          %3193 = vadd.xlane.f32.xlu0 %v3192
          %v3194 = vpop.xlane.xlu0 %3193
          %v3195 = vmul.f32 %v3194, %v1619
          %v3196 = vmul.f32 %v3190, %v3190
          %v3197 = vsub.f32 %v3195, %v3196
          %v3198 = vsub.f32 %v3182, %v3190
          %v3199 = vadd.f32 %v3197, 1e-05
          %v3200 = vrsqrt.pop %v3199
          %v3201 = vmul.f32 %v3198, %v3200
          %v3203 = vlaneseq
          %v3204 = vshrl.u32 %v3203, 7
          %v3205 = vsub.s32 0, %v3204
          %v3206 = vrot.slane %v3185, %v3205
          %v3208 = vmul.f32 %v3201, %v3206
          %v3210 = vlaneseq
          %v3211 = vshrl.u32 %v3210, 7
          %v3212 = vsub.s32 0, %v3211
          %v3213 = vrot.slane %v3186, %v3212
          %v3215 = vadd.f32 %v3208, %v3213
          %v3216 = vpack.c.bf16 %v3215, %v3215
          %v3217 = vld [vmem:[%s21] sm:$0xff]
          %v3218 = vld [vmem:[%s21 + $0x8] sm:$0xff]
          %v3219 = vld [vmem:[%s21 + $0x10] sm:$0xff]
          %v3220 = vld [vmem:[%s21 + $0x18] sm:$0xff]
          %v3221 = vld [vmem:[%s21 + $0x20] sm:$0xff]
          %v3222 = vld [vmem:[%s21 + $0x28] sm:$0xff]
          %v3223 = vld [vmem:[%s21 + $0x30] sm:$0xff]
          %v3224 = vld [vmem:[%s21 + $0x38] sm:$0xff]
          %v3225 = vld [vmem:[%s21 + $0x40] sm:$0xff]
          %v3226 = vld [vmem:[%s21 + $0x48] sm:$0xff]
          %v3227 = vld [vmem:[%s21 + $0x50] sm:$0xff]
          %v3228 = vld [vmem:[%s21 + $0x58] sm:$0xff]
          %v3229 = vld [vmem:[%s21 + $0x60] sm:$0xff]
          %v3230 = vld [vmem:[%s21 + $0x68] sm:$0xff]
          %v3231 = vld [vmem:[%s21 + $0x70] sm:$0xff]
          %v3232 = vld [vmem:[%s21 + $0x78] sm:$0xff]
          %v3233 = vld [vmem:[%s21 + $0x80] sm:$0xff]
          %v3234 = vld [vmem:[%s21 + $0x88] sm:$0xff]
          %v3235 = vld [vmem:[%s21 + $0x90] sm:$0xff]
          %v3236 = vld [vmem:[%s21 + $0x98] sm:$0xff]
          %v3237 = vld [vmem:[%s21 + $0xa0] sm:$0xff]
          %v3238 = vld [vmem:[%s21 + $0xa8] sm:$0xff]
          %v3239 = vld [vmem:[%s21 + $0xb0] sm:$0xff]
          %v3240 = vld [vmem:[%s21 + $0xb8] sm:$0xff]
          %v3241 = vld [vmem:[%s21 + $0xc0] sm:$0xff]
          %v3242 = vld [vmem:[%s21 + $0xc8] sm:$0xff]
          %v3243 = vld [vmem:[%s21 + $0xd0] sm:$0xff]
          %v3244 = vld [vmem:[%s21 + $0xd8] sm:$0xff]
          %v3245 = vld [vmem:[%s21 + $0xe0] sm:$0xff]
          %v3246 = vld [vmem:[%s21 + $0xe8] sm:$0xff]
          %v3247 = vld [vmem:[%s21 + $0xf0] sm:$0xff]
          %v3248 = vld [vmem:[%s21 + $0xf8] sm:$0xff]
          %v3281 = vunpack.c.l.b16 %v3217
          %v3282 = vunpack.c.h.b16 %v3217
          %v3283 = vunpack.c.l.b16 %v3218
          %v3284 = vunpack.c.h.b16 %v3218
          %v3285 = vunpack.c.l.b16 %v3219
          %v3286 = vunpack.c.h.b16 %v3219
          %v3287 = vunpack.c.l.b16 %v3220
          %v3288 = vunpack.c.h.b16 %v3220
          %v3289 = vunpack.c.l.b16 %v3221
          %v3290 = vunpack.c.h.b16 %v3221
          %v3291 = vunpack.c.l.b16 %v3222
          %v3292 = vunpack.c.h.b16 %v3222
          %v3293 = vunpack.c.l.b16 %v3223
          %v3294 = vunpack.c.h.b16 %v3223
          %v3295 = vunpack.c.l.b16 %v3224
          %v3296 = vunpack.c.h.b16 %v3224
          %v3297 = vunpack.c.l.b16 %v3225
          %v3298 = vunpack.c.h.b16 %v3225
          %v3299 = vunpack.c.l.b16 %v3226
          %v3300 = vunpack.c.h.b16 %v3226
          %v3301 = vunpack.c.l.b16 %v3227
          %v3302 = vunpack.c.h.b16 %v3227
          %v3303 = vunpack.c.l.b16 %v3228
          %v3304 = vunpack.c.h.b16 %v3228
          %v3305 = vunpack.c.l.b16 %v3229
          %v3306 = vunpack.c.h.b16 %v3229
          %v3307 = vunpack.c.l.b16 %v3230
          %v3308 = vunpack.c.h.b16 %v3230
          %v3309 = vunpack.c.l.b16 %v3231
          %v3310 = vunpack.c.h.b16 %v3231
          %v3311 = vunpack.c.l.b16 %v3232
          %v3312 = vunpack.c.h.b16 %v3232
          %v3313 = vunpack.c.l.b16 %v3233
          %v3314 = vunpack.c.h.b16 %v3233
          %v3315 = vunpack.c.l.b16 %v3234
          %v3316 = vunpack.c.h.b16 %v3234
          %v3317 = vunpack.c.l.b16 %v3235
          %v3318 = vunpack.c.h.b16 %v3235
          %v3319 = vunpack.c.l.b16 %v3236
          %v3320 = vunpack.c.h.b16 %v3236
          %v3321 = vunpack.c.l.b16 %v3237
          %v3322 = vunpack.c.h.b16 %v3237
          %v3323 = vunpack.c.l.b16 %v3238
          %v3324 = vunpack.c.h.b16 %v3238
          %v3325 = vunpack.c.l.b16 %v3239
          %v3326 = vunpack.c.h.b16 %v3239
          %v3327 = vunpack.c.l.b16 %v3240
          %v3328 = vunpack.c.h.b16 %v3240
          %v3329 = vunpack.c.l.b16 %v3241
          %v3330 = vunpack.c.h.b16 %v3241
          %v3331 = vunpack.c.l.b16 %v3242
          %v3332 = vunpack.c.h.b16 %v3242
          %v3333 = vunpack.c.l.b16 %v3243
          %v3334 = vunpack.c.h.b16 %v3243
          %v3335 = vunpack.c.l.b16 %v3244
          %v3336 = vunpack.c.h.b16 %v3244
          %v3337 = vunpack.c.l.b16 %v3245
          %v3338 = vunpack.c.h.b16 %v3245
          %v3339 = vunpack.c.l.b16 %v3246
          %v3340 = vunpack.c.h.b16 %v3246
          %v3341 = vunpack.c.l.b16 %v3247
          %v3342 = vunpack.c.h.b16 %v3247
          %v3343 = vunpack.c.l.b16 %v3248
          %v3344 = vunpack.c.h.b16 %v3248
          %v3345 = vpack.c.b16 %v3285, %v3281
          %v3346 = vpack.c.b16 %v3286, %v3282
          %v3347 = vpack.c.b16 %v3287, %v3283
          %v3348 = vpack.c.b16 %v3288, %v3284
          %v3349 = vpack.c.b16 %v3293, %v3289
          %v3350 = vpack.c.b16 %v3294, %v3290
          %v3351 = vpack.c.b16 %v3295, %v3291
          %v3352 = vpack.c.b16 %v3296, %v3292
          %v3353 = vpack.c.b16 %v3301, %v3297
          %v3354 = vpack.c.b16 %v3302, %v3298
          %v3355 = vpack.c.b16 %v3303, %v3299
          %v3356 = vpack.c.b16 %v3304, %v3300
          %v3357 = vpack.c.b16 %v3309, %v3305
          %v3358 = vpack.c.b16 %v3310, %v3306
          %v3359 = vpack.c.b16 %v3311, %v3307
          %v3360 = vpack.c.b16 %v3312, %v3308
          %v3361 = vpack.c.b16 %v3317, %v3313
          %v3362 = vpack.c.b16 %v3318, %v3314
          %v3363 = vpack.c.b16 %v3319, %v3315
          %v3364 = vpack.c.b16 %v3320, %v3316
          %v3365 = vpack.c.b16 %v3325, %v3321
          %v3366 = vpack.c.b16 %v3326, %v3322
          %v3367 = vpack.c.b16 %v3327, %v3323
          %v3368 = vpack.c.b16 %v3328, %v3324
          %v3369 = vpack.c.b16 %v3333, %v3329
          %v3370 = vpack.c.b16 %v3334, %v3330
          %v3371 = vpack.c.b16 %v3335, %v3331
          %v3372 = vpack.c.b16 %v3336, %v3332
          %v3373 = vpack.c.b16 %v3341, %v3337
          %v3374 = vpack.c.b16 %v3342, %v3338
          %v3375 = vpack.c.b16 %v3343, %v3339
          %v3376 = vpack.c.b16 %v3344, %v3340
          %3409 = vmatprep.subr.bf16.mxu0 %v3346
          %3410 = vmatpush1.bf16.msra.mxu0 %v3345
          %3411 = vmatprep.subr.bf16.mxu0 %v3350
          %3412 = vmatpush1.bf16.msra.mxu0 %v3349
          %3413 = vmatprep.subr.bf16.mxu0 %v3354
          %3414 = vmatpush1.bf16.msra.mxu0 %v3353
          %3415 = vmatprep.subr.bf16.mxu0 %v3358
          %3416 = vmatpush1.bf16.msra.mxu0 %v3357
          %3417 = vmatprep.subr.bf16.mxu0 %v3362
          %3418 = vmatpush1.bf16.msra.mxu0 %v3361
          %3419 = vmatprep.subr.bf16.mxu0 %v3366
          %3420 = vmatpush1.bf16.msra.mxu0 %v3365
          %3421 = vmatprep.subr.bf16.mxu0 %v3370
          %3422 = vmatpush1.bf16.msra.mxu0 %v3369
          %3423 = vmatprep.subr.bf16.mxu0 %v3374
          %3424 = vmatpush1.bf16.msra.mxu0 %v3373
          %3425 = vmatprep.subr.bf16.mxu0 0
          %3426 = vmatpush1.bf16.msra.mxu0 0
          %3427 = vmatprep.subr.bf16.mxu0 0
          %3428 = vmatpush1.bf16.msra.mxu0 0
          %3429 = vmatprep.subr.bf16.mxu0 0
          %3430 = vmatpush1.bf16.msra.mxu0 0
          %3431 = vmatprep.subr.bf16.mxu0 0
          %3432 = vmatpush1.bf16.msra.mxu0 0
          %3433 = vmatprep.subr.bf16.mxu0 0
          %3434 = vmatpush1.bf16.msra.mxu0 0
          %3435 = vmatprep.subr.bf16.mxu0 0
          %3436 = vmatpush1.bf16.msra.mxu0 0
          %3437 = vmatprep.subr.bf16.mxu0 0
          %3438 = vmatpush1.bf16.msra.mxu0 0
          %3439 = vmatprep.subr.bf16.mxu0 0
          %3440 = vmatpush1.bf16.msra.mxu0 0
          %3441 = vmatprep.mubr.bf16.mxu0 0
          %3442 = vmatmul.mubr.bf16.gmra.mrb[0].mxu0 %v3216
          %v3443 = vpop.f32.mrb[0].mxu0
          %v3444 = vadd.f32 0.0, %v3443
          %v3445 = vpop.f32.mrb[0].mxu0
          %v3446 = vadd.f32 0.0, %v3445
          %v3447 = vpop.f32.mrb[0].mxu0
          %v3448 = vpop.f32.mrb[0].mxu0
          %3449 = vdwg.mxu0
          %3450 = vmatprep.subr.bf16.mxu0 %v3348
          %3451 = vmatpush1.bf16.msra.mxu0 %v3347
          %3452 = vmatprep.subr.bf16.mxu0 %v3352
          %3453 = vmatpush1.bf16.msra.mxu0 %v3351
          %3454 = vmatprep.subr.bf16.mxu0 %v3356
          %3455 = vmatpush1.bf16.msra.mxu0 %v3355
          %3456 = vmatprep.subr.bf16.mxu0 %v3360
          %3457 = vmatpush1.bf16.msra.mxu0 %v3359
          %3458 = vmatprep.subr.bf16.mxu0 %v3364
          %3459 = vmatpush1.bf16.msra.mxu0 %v3363
          %3460 = vmatprep.subr.bf16.mxu0 %v3368
          %3461 = vmatpush1.bf16.msra.mxu0 %v3367
          %3462 = vmatprep.subr.bf16.mxu0 %v3372
          %3463 = vmatpush1.bf16.msra.mxu0 %v3371
          %3464 = vmatprep.subr.bf16.mxu0 %v3376
          %3465 = vmatpush1.bf16.msra.mxu0 %v3375
          %3466 = vmatprep.subr.bf16.mxu0 0
          %3467 = vmatpush1.bf16.msra.mxu0 0
          %3468 = vmatprep.subr.bf16.mxu0 0
          %3469 = vmatpush1.bf16.msra.mxu0 0
          %3470 = vmatprep.subr.bf16.mxu0 0
          %3471 = vmatpush1.bf16.msra.mxu0 0
          %3472 = vmatprep.subr.bf16.mxu0 0
          %3473 = vmatpush1.bf16.msra.mxu0 0
          %3474 = vmatprep.subr.bf16.mxu0 0
          %3475 = vmatpush1.bf16.msra.mxu0 0
          %3476 = vmatprep.subr.bf16.mxu0 0
          %3477 = vmatpush1.bf16.msra.mxu0 0
          %3478 = vmatprep.subr.bf16.mxu0 0
          %3479 = vmatpush1.bf16.msra.mxu0 0
          %3480 = vmatprep.subr.bf16.mxu0 0
          %3481 = vmatpush1.bf16.msra.mxu0 0
          %3482 = vmatprep.mubr.bf16.mxu0 0
          %3483 = vmatmul.mubr.bf16.gmra.mrb[0].mxu0 %v3216
          %v3484 = vpop.f32.mrb[0].mxu0
          %v3485 = vadd.f32 0.0, %v3484
          %v3486 = vpop.f32.mrb[0].mxu0
          %v3487 = vadd.f32 0.0, %v3486
          %v3488 = vpop.f32.mrb[0].mxu0
          %v3489 = vpop.f32.mrb[0].mxu0
          %3490 = vdwg.mxu0
          %v3491 = vpack.c.bf16 %v3444, %v3444
          %v3492 = vpack.c.bf16 %v3446, %v3446
          %v3493 = vpack.c.bf16 %v3485, %v3485
          %v3494 = vpack.c.bf16 %v3487, %v3487
          %v3495 = vld [vmem:[%s22] sm:$0xf]
          %v3496 = vld [vmem:[%s22 + $0x4] sm:$0xf]
          %v3497 = vld [vmem:[%s22 + $0x8] sm:$0xf]
          %v3498 = vld [vmem:[%s22 + $0xc] sm:$0xf]
          %v3499 = vld [vmem:[%s22 + $0x10] sm:$0xf]
          %v3500 = vld [vmem:[%s22 + $0x14] sm:$0xf]
          %v3501 = vld [vmem:[%s22 + $0x18] sm:$0xf]
          %v3502 = vld [vmem:[%s22 + $0x1c] sm:$0xf]
          %v3503 = vld [vmem:[%s22 + $0x20] sm:$0xf]
          %v3504 = vld [vmem:[%s22 + $0x24] sm:$0xf]
          %v3505 = vld [vmem:[%s22 + $0x28] sm:$0xf]
          %v3506 = vld [vmem:[%s22 + $0x2c] sm:$0xf]
          %v3507 = vld [vmem:[%s22 + $0x30] sm:$0xf]
          %v3508 = vld [vmem:[%s22 + $0x34] sm:$0xf]
          %v3509 = vld [vmem:[%s22 + $0x38] sm:$0xf]
          %v3510 = vld [vmem:[%s22 + $0x3c] sm:$0xf]
          %v3511 = vld [vmem:[%s22 + $0x40] sm:$0xf]
          %v3512 = vld [vmem:[%s22 + $0x44] sm:$0xf]
          %v3513 = vld [vmem:[%s22 + $0x48] sm:$0xf]
          %v3514 = vld [vmem:[%s22 + $0x4c] sm:$0xf]
          %v3515 = vld [vmem:[%s22 + $0x50] sm:$0xf]
          %v3516 = vld [vmem:[%s22 + $0x54] sm:$0xf]
          %v3517 = vld [vmem:[%s22 + $0x58] sm:$0xf]
          %v3518 = vld [vmem:[%s22 + $0x5c] sm:$0xf]
          %v3519 = vld [vmem:[%s22 + $0x60] sm:$0xf]
          %v3520 = vld [vmem:[%s22 + $0x64] sm:$0xf]
          %v3521 = vld [vmem:[%s22 + $0x68] sm:$0xf]
          %v3522 = vld [vmem:[%s22 + $0x6c] sm:$0xf]
          %v3523 = vld [vmem:[%s22 + $0x70] sm:$0xf]
          %v3524 = vld [vmem:[%s22 + $0x74] sm:$0xf]
          %v3525 = vld [vmem:[%s22 + $0x78] sm:$0xf]
          %v3526 = vld [vmem:[%s22 + $0x7c] sm:$0xf]
          %v3527 = vld [vmem:[%s22 + $0x80] sm:$0xf]
          %v3528 = vld [vmem:[%s22 + $0x84] sm:$0xf]
          %v3529 = vld [vmem:[%s22 + $0x88] sm:$0xf]
          %v3530 = vld [vmem:[%s22 + $0x8c] sm:$0xf]
          %v3531 = vld [vmem:[%s22 + $0x90] sm:$0xf]
          %v3532 = vld [vmem:[%s22 + $0x94] sm:$0xf]
          %v3533 = vld [vmem:[%s22 + $0x98] sm:$0xf]
          %v3534 = vld [vmem:[%s22 + $0x9c] sm:$0xf]
          %v3535 = vld [vmem:[%s22 + $0xa0] sm:$0xf]
          %v3536 = vld [vmem:[%s22 + $0xa4] sm:$0xf]
          %v3537 = vld [vmem:[%s22 + $0xa8] sm:$0xf]
          %v3538 = vld [vmem:[%s22 + $0xac] sm:$0xf]
          %v3539 = vld [vmem:[%s22 + $0xb0] sm:$0xf]
          %v3540 = vld [vmem:[%s22 + $0xb4] sm:$0xf]
          %v3541 = vld [vmem:[%s22 + $0xb8] sm:$0xf]
          %v3542 = vld [vmem:[%s22 + $0xbc] sm:$0xf]
          %v3543 = vld [vmem:[%s22 + $0xc0] sm:$0xf]
          %v3544 = vld [vmem:[%s22 + $0xc4] sm:$0xf]
          %v3545 = vld [vmem:[%s22 + $0xc8] sm:$0xf]
          %v3546 = vld [vmem:[%s22 + $0xcc] sm:$0xf]
          %v3547 = vld [vmem:[%s22 + $0xd0] sm:$0xf]
          %v3548 = vld [vmem:[%s22 + $0xd4] sm:$0xf]
          %v3549 = vld [vmem:[%s22 + $0xd8] sm:$0xf]
          %v3550 = vld [vmem:[%s22 + $0xdc] sm:$0xf]
          %v3551 = vld [vmem:[%s22 + $0xe0] sm:$0xf]
          %v3552 = vld [vmem:[%s22 + $0xe4] sm:$0xf]
          %v3553 = vld [vmem:[%s22 + $0xe8] sm:$0xf]
          %v3554 = vld [vmem:[%s22 + $0xec] sm:$0xf]
          %v3555 = vld [vmem:[%s22 + $0xf0] sm:$0xf]
          %v3556 = vld [vmem:[%s22 + $0xf4] sm:$0xf]
          %v3557 = vld [vmem:[%s22 + $0xf8] sm:$0xf]
          %v3558 = vld [vmem:[%s22 + $0xfc] sm:$0xf]
          %v3559 = vld [vmem:[%s23] sm:$0x1]
          %v3561 = vlaneseq
          %v3562 = vshrl.u32 %v3561, 7
          %v3563 = vsub.s32 0, %v3562
          %v3564 = vrot.slane %v3559, %v3563
          %v3630 = vunpack.c.l.b16 %v3495
          %v3631 = vunpack.c.l.b16 %v3496
          %v3632 = vunpack.c.l.b16 %v3497
          %v3633 = vunpack.c.l.b16 %v3498
          %v3634 = vunpack.c.l.b16 %v3499
          %v3635 = vunpack.c.l.b16 %v3500
          %v3636 = vunpack.c.l.b16 %v3501
          %v3637 = vunpack.c.l.b16 %v3502
          %v3638 = vunpack.c.l.b16 %v3503
          %v3639 = vunpack.c.l.b16 %v3504
          %v3640 = vunpack.c.l.b16 %v3505
          %v3641 = vunpack.c.l.b16 %v3506
          %v3642 = vunpack.c.l.b16 %v3507
          %v3643 = vunpack.c.l.b16 %v3508
          %v3644 = vunpack.c.l.b16 %v3509
          %v3645 = vunpack.c.l.b16 %v3510
          %v3646 = vunpack.c.l.b16 %v3511
          %v3647 = vunpack.c.l.b16 %v3512
          %v3648 = vunpack.c.l.b16 %v3513
          %v3649 = vunpack.c.l.b16 %v3514
          %v3650 = vunpack.c.l.b16 %v3515
          %v3651 = vunpack.c.l.b16 %v3516
          %v3652 = vunpack.c.l.b16 %v3517
          %v3653 = vunpack.c.l.b16 %v3518
          %v3654 = vunpack.c.l.b16 %v3519
          %v3655 = vunpack.c.l.b16 %v3520
          %v3656 = vunpack.c.l.b16 %v3521
          %v3657 = vunpack.c.l.b16 %v3522
          %v3658 = vunpack.c.l.b16 %v3523
          %v3659 = vunpack.c.l.b16 %v3524
          %v3660 = vunpack.c.l.b16 %v3525
          %v3661 = vunpack.c.l.b16 %v3526
          %v3662 = vunpack.c.l.b16 %v3527
          %v3663 = vunpack.c.l.b16 %v3528
          %v3664 = vunpack.c.l.b16 %v3529
          %v3665 = vunpack.c.l.b16 %v3530
          %v3666 = vunpack.c.l.b16 %v3531
          %v3667 = vunpack.c.l.b16 %v3532
          %v3668 = vunpack.c.l.b16 %v3533
          %v3669 = vunpack.c.l.b16 %v3534
          %v3670 = vunpack.c.l.b16 %v3535
          %v3671 = vunpack.c.l.b16 %v3536
          %v3672 = vunpack.c.l.b16 %v3537
          %v3673 = vunpack.c.l.b16 %v3538
          %v3674 = vunpack.c.l.b16 %v3539
          %v3675 = vunpack.c.l.b16 %v3540
          %v3676 = vunpack.c.l.b16 %v3541
          %v3677 = vunpack.c.l.b16 %v3542
          %v3678 = vunpack.c.l.b16 %v3543
          %v3679 = vunpack.c.l.b16 %v3544
          %v3680 = vunpack.c.l.b16 %v3545
          %v3681 = vunpack.c.l.b16 %v3546
          %v3682 = vunpack.c.l.b16 %v3547
          %v3683 = vunpack.c.l.b16 %v3548
          %v3684 = vunpack.c.l.b16 %v3549
          %v3685 = vunpack.c.l.b16 %v3550
          %v3686 = vunpack.c.l.b16 %v3551
          %v3687 = vunpack.c.l.b16 %v3552
          %v3688 = vunpack.c.l.b16 %v3553
          %v3689 = vunpack.c.l.b16 %v3554
          %v3690 = vunpack.c.l.b16 %v3555
          %v3691 = vunpack.c.l.b16 %v3556
          %v3692 = vunpack.c.l.b16 %v3557
          %v3693 = vunpack.c.l.b16 %v3558
          %v3694 = vpack.c.b16 %v3631, %v3630
          %v3695 = vpack.c.b16 %v3633, %v3632
          %v3696 = vpack.c.b16 %v3635, %v3634
          %v3697 = vpack.c.b16 %v3637, %v3636
          %v3698 = vpack.c.b16 %v3639, %v3638
          %v3699 = vpack.c.b16 %v3641, %v3640
          %v3700 = vpack.c.b16 %v3643, %v3642
          %v3701 = vpack.c.b16 %v3645, %v3644
          %v3702 = vpack.c.b16 %v3647, %v3646
          %v3703 = vpack.c.b16 %v3649, %v3648
          %v3704 = vpack.c.b16 %v3651, %v3650
          %v3705 = vpack.c.b16 %v3653, %v3652
          %v3706 = vpack.c.b16 %v3655, %v3654
          %v3707 = vpack.c.b16 %v3657, %v3656
          %v3708 = vpack.c.b16 %v3659, %v3658
          %v3709 = vpack.c.b16 %v3661, %v3660
          %v3710 = vpack.c.b16 %v3663, %v3662
          %v3711 = vpack.c.b16 %v3665, %v3664
          %v3712 = vpack.c.b16 %v3667, %v3666
          %v3713 = vpack.c.b16 %v3669, %v3668
          %v3714 = vpack.c.b16 %v3671, %v3670
          %v3715 = vpack.c.b16 %v3673, %v3672
          %v3716 = vpack.c.b16 %v3675, %v3674
          %v3717 = vpack.c.b16 %v3677, %v3676
          %v3718 = vpack.c.b16 %v3679, %v3678
          %v3719 = vpack.c.b16 %v3681, %v3680
          %v3720 = vpack.c.b16 %v3683, %v3682
          %v3721 = vpack.c.b16 %v3685, %v3684
          %v3722 = vpack.c.b16 %v3687, %v3686
          %v3723 = vpack.c.b16 %v3689, %v3688
          %v3724 = vpack.c.b16 %v3691, %v3690
          %v3725 = vpack.c.b16 %v3693, %v3692
          %3758 = vmatprep.subr.bf16.mxu0 0
          %3759 = vmatpush1.bf16.msra.mxu0 %v3694
          %3760 = vmatprep.subr.bf16.mxu0 0
          %3761 = vmatpush1.bf16.msra.mxu0 %v3695
          %3762 = vmatprep.subr.bf16.mxu0 0
          %3763 = vmatpush1.bf16.msra.mxu0 %v3696
          %3764 = vmatprep.subr.bf16.mxu0 0
          %3765 = vmatpush1.bf16.msra.mxu0 %v3697
          %3766 = vmatprep.subr.bf16.mxu0 0
          %3767 = vmatpush1.bf16.msra.mxu0 %v3698
          %3768 = vmatprep.subr.bf16.mxu0 0
          %3769 = vmatpush1.bf16.msra.mxu0 %v3699
          %3770 = vmatprep.subr.bf16.mxu0 0
          %3771 = vmatpush1.bf16.msra.mxu0 %v3700
          %3772 = vmatprep.subr.bf16.mxu0 0
          %3773 = vmatpush1.bf16.msra.mxu0 %v3701
          %3774 = vmatprep.subr.bf16.mxu0 0
          %3775 = vmatpush1.bf16.msra.mxu0 %v3702
          %3776 = vmatprep.subr.bf16.mxu0 0
          %3777 = vmatpush1.bf16.msra.mxu0 %v3703
          %3778 = vmatprep.subr.bf16.mxu0 0
          %3779 = vmatpush1.bf16.msra.mxu0 %v3704
          %3780 = vmatprep.subr.bf16.mxu0 0
          %3781 = vmatpush1.bf16.msra.mxu0 %v3705
          %3782 = vmatprep.subr.bf16.mxu0 0
          %3783 = vmatpush1.bf16.msra.mxu0 %v3706
          %3784 = vmatprep.subr.bf16.mxu0 0
          %3785 = vmatpush1.bf16.msra.mxu0 %v3707
          %3786 = vmatprep.subr.bf16.mxu0 0
          %3787 = vmatpush1.bf16.msra.mxu0 %v3708
          %3788 = vmatprep.subr.bf16.mxu0 0
          %3789 = vmatpush1.bf16.msra.mxu0 %v3709
          %3790 = vmatprep.mubr.bf16.mxu0 %v3492
          %3791 = vmatmul.mubr.bf16.gmra.mrb[0].mxu0 %v3491
          %v3792 = vpop.f32.mrb[0].mxu0
          %v3793 = vadd.f32 %v3564, %v3792
          %v3794 = vpop.f32.mrb[0].mxu0
          %v3795 = vpop.f32.mrb[0].mxu0
          %v3796 = vpop.f32.mrb[0].mxu0
          %3797 = vdwg.mxu0
          %3798 = vmatprep.subr.bf16.mxu0 0
          %3799 = vmatpush1.bf16.msra.mxu0 %v3710
          %3800 = vmatprep.subr.bf16.mxu0 0
          %3801 = vmatpush1.bf16.msra.mxu0 %v3711
          %3802 = vmatprep.subr.bf16.mxu0 0
          %3803 = vmatpush1.bf16.msra.mxu0 %v3712
          %3804 = vmatprep.subr.bf16.mxu0 0
          %3805 = vmatpush1.bf16.msra.mxu0 %v3713
          %3806 = vmatprep.subr.bf16.mxu0 0
          %3807 = vmatpush1.bf16.msra.mxu0 %v3714
          %3808 = vmatprep.subr.bf16.mxu0 0
          %3809 = vmatpush1.bf16.msra.mxu0 %v3715
          %3810 = vmatprep.subr.bf16.mxu0 0
          %3811 = vmatpush1.bf16.msra.mxu0 %v3716
          %3812 = vmatprep.subr.bf16.mxu0 0
          %3813 = vmatpush1.bf16.msra.mxu0 %v3717
          %3814 = vmatprep.subr.bf16.mxu0 0
          %3815 = vmatpush1.bf16.msra.mxu0 %v3718
          %3816 = vmatprep.subr.bf16.mxu0 0
          %3817 = vmatpush1.bf16.msra.mxu0 %v3719
          %3818 = vmatprep.subr.bf16.mxu0 0
          %3819 = vmatpush1.bf16.msra.mxu0 %v3720
          %3820 = vmatprep.subr.bf16.mxu0 0
          %3821 = vmatpush1.bf16.msra.mxu0 %v3721
          %3822 = vmatprep.subr.bf16.mxu0 0
          %3823 = vmatpush1.bf16.msra.mxu0 %v3722
          %3824 = vmatprep.subr.bf16.mxu0 0
          %3825 = vmatpush1.bf16.msra.mxu0 %v3723
          %3826 = vmatprep.subr.bf16.mxu0 0
          %3827 = vmatpush1.bf16.msra.mxu0 %v3724
          %3828 = vmatprep.subr.bf16.mxu0 0
          %3829 = vmatpush1.bf16.msra.mxu0 %v3725
          %3830 = vmatprep.mubr.bf16.mxu0 %v3494
          %3831 = vmatmul.mubr.bf16.gmra.mrb[0].mxu0 %v3493
          %v3832 = vpop.f32.mrb[0].mxu0
          %v3833 = vadd.f32 %v3793, %v3832
          %v3834 = vpop.f32.mrb[0].mxu0
          %v3835 = vpop.f32.mrb[0].mxu0
          %v3836 = vpop.f32.mrb[0].mxu0
          %3837 = vdwg.mxu0
          %vm3838 = vcmask 9216
          %3839 = vst.msk [vmem:[#allocation3] sm:$0x3] %vm3838, %v3833
        $region124: #{_lambda_.1} parent=115 // pred_fallthru
          _
        // Predicated region
        $region125: #{_lambda_.1} parent=115 // pred_check
          %p3840 = pneg %p654
        $region126: #{_lambda_.1} parent=115 // pred_check_branch
          %3842 = sbr.rel (%p3840) target = $region128
        $region127: #{_lambda_.1} parent=115 // pred_region
          %s3844 = ssub.s32 32, 32
          %3845 = vsyncadd [#allocation4], %s3844
          %s3846 = smul.addr %s40, 32
          %s3847 = scalar_lea.hbm %s24, %s3846
          %s3849 = sshll.u32 [#allocation3], 4
          %s3850 = int_to_ptr.vmem [resolvable:$true] %s3849
          %3852 = dma.vmem_to_hbm [thread:$0]  %s3850, 32, %s3847, [#allocation4]
        $region128: #{_lambda_.1} parent=115 // pred_fallthru
          _
        // Predicated region
        $region129: #{_lambda_.1} parent=115 // pred_check
          %p3853 = pneg %p654
        $region130: #{_lambda_.1} parent=115 // pred_check_branch
          %3855 = sbr.rel (%p3853) target = $region132
        $region131: #{_lambda_.1} parent=115 // pred_region
          %3856 = dma.done [#allocation4], 32
        $region132: #{_lambda_.1} parent=115 // pred_fallthru
          _
      $region116: #{_lambda_.1} parent=5 // pred_fallthru
        _
      %p3857 = scmp.le.s32.totalorder 2, %s31
      // Predicated region
      $region133: #{_lambda_.1} parent=5 // pred_check
        %p3858 = pneg %p3857
      $region134: #{_lambda_.1} parent=5 // pred_check_branch
        %3860 = sbr.rel (%p3858) target = $region136
      $region135: #{_lambda_.1} parent=5 // pred_region
        %s3861 = ssub.s32 %s31, 2
      $region136: #{_lambda_.1} parent=5 // pred_fallthru
        _
    $region6: #{_lambda_.1} parent=1 // loop_footer
      %s35 = sadd.s32 1, %s31
    $region7: #{_lambda_.1} parent=1 // loop_footer_branch
      %30 = sbr.rel target = $region3
    $region8: #{_lambda_.1} parent=1 // loop_exit
      _
    %3862 = vsyncpa [#allocation4], 1
    %s3863 = scalar_lea.sflag [#allocation4], 1
    %3864 = vsyncpa %s3863, 1

</llo_original>
